<compile_context>
chip_gen: v6e
topology: v6e:2x2x1
jax: 0.10.0
libtpu: 0.0.40
codegen_flags: <defaults>
</compile_context>

<pallas_src>
import jax
import jax.numpy as jnp
from jax import lax
from jax.experimental import pallas as pl
from jax.experimental.pallas import tpu as pltpu

# --- constants (same convention as the reference repo) ---
PAD_IDX = 0
SOS_IDX = 1
EOS_IDX = 2
UNK_IDX = 3

# --- hyper-params (small, consistent with the module) ---
EMBED_SIZE = 32
HIDDEN_SIZE = 32
NUM_TAGS_IOB = 8
NUM_TAGS_NER = 16
NUM_OUTPUT_RNN = max(NUM_TAGS_IOB, NUM_TAGS_NER)   # "maximum number of outputs"
WTI_SIZE = 50
CTI_SIZE = 30
BATCH = 2
SEQ = 8              # T ; xw / yiob / yner have T+1 columns (leading SOS)

VMEM_SPEC = pl.BlockSpec(memory_space=pltpu.MemorySpace.VMEM)
SMEM_SPEC = pl.BlockSpec(memory_space=pltpu.MemorySpace.SMEM)


# ----------------------------------------------------------------------------
# Fused kernel: LSTM + output Linear + two tag heads + two CRFs + loss
# ----------------------------------------------------------------------------
def rnn_two_crf_kernel(
    # VMEM inputs
    x_ref, maskw_ref,
    wih_ref, whh_ref, bg_ref, wout_ref, bout_ref,
    wiob_ref, biob_ref, wner_ref, bner_ref,
    transT_iob_ref, eos_iob_ref, transT_ner_ref, eos_ner_ref,
    # SMEM inputs (scalar tables)
    trans_iob_sm, trans_ner_sm, yiob_sm, yner_sm, miob_sm, mner_sm,
    # output
    loss_ref,
    # scratch
    h_scr,
):
    B, T, H = BATCH, SEQ, HIDDEN_SIZE

    # ---- 1. LSTM: input projection hoisted out of the recurrence (one MXU call)
    gates_x = (jnp.dot(x_ref[...], wih_ref[...],
                       preferred_element_type=jnp.float32) + bg_ref[...])   # (T*B, 4H)
    whh = whh_ref[...]

    h = jnp.zeros((B, H), jnp.float32)
    c = jnp.zeros((B, H), jnp.float32)
    for t in range(T):                               # static unroll (T is tiny)
        g = gates_x[t * B:(t + 1) * B, :] + jnp.dot(
            h, whh, preferred_element_type=jnp.float32)          # (B, 4H)
        sg = jax.nn.sigmoid(g)                       # full-width EUP call
        tg = jnp.tanh(g)                             # full-width EUP call
        i_g = sg[:, 0 * H:1 * H]
        f_g = sg[:, 1 * H:2 * H]
        g_g = tg[:, 2 * H:3 * H]
        o_g = sg[:, 3 * H:4 * H]
        c = f_g * c + i_g * g_g
        h = o_g * jnp.tanh(c)
        h_scr[pl.ds(t * B, B), :] = h
        # NOTE: no pack_padded state freezing -- masked-step emissions are zeroed
        # below and the final hidden state is discarded, so the loss is identical.

    # ---- 2. batched output Linear + mask (`h *= mask`) + the two tag heads ----
    rnn_out = (jnp.dot(h_scr[...], wout_ref[...],
                       preferred_element_type=jnp.float32) + bout_ref[...])  # (T*B, O)
    rnn_out = rnn_out * maskw_ref[...]
    iob_fc = (jnp.dot(rnn_out, wiob_ref[...],
                      preferred_element_type=jnp.float32) + biob_ref[...])   # (T*B, Kiob)
    ner_fc = (jnp.dot(rnn_out, wner_ref[...],
                      preferred_element_type=jnp.float32) + bner_ref[...])   # (T*B, Kner)

    # ---- 3. the two CRFs: forward log-partition Z + gold path score ----
    def col_from_scalars(vals, row, dtype):
        # build a (B, 1) vector from B scalars (B is tiny & static)
        out = jnp.broadcast_to(vals[0].astype(dtype), row.shape)
        for b in range(1, len(vals)):
            out = jnp.where(row == b, vals[b].astype(dtype), out)
        return out

    def crf(emit, transT_ref, eos_ref, trans_sm, y_sm, m_sm, K):
        transT = transT_ref[...]                     # (K_prev, K_cur) = trans.T
        lane = lax.broadcasted_iota(jnp.int32, (B, K), 1)
        row = lax.broadcasted_iota(jnp.int32, (B, 1), 0)
        score = jnp.where(lane == SOS_IDX, 0.0, -10000.0).astype(jnp.float32)
        gold = jnp.zeros((B, 1), jnp.float32)
        length = [0] * B                             # per-row scalar lengths

        for t in range(T):                           # static unroll
            emit_t = emit[t * B:(t + 1) * B, :]      # (B, K)

            # scalars from SMEM: mask, current / previous gold tags
            m_sc = [m_sm[b, t] for b in range(B)]
            yc_sc = [y_sm[b, t + 1] for b in range(B)]
            yp_sc = [y_sm[b, t] for b in range(B)]
            m_vec = col_from_scalars(m_sc, row, jnp.float32)     # (B, 1)
            yc_vec = col_from_scalars(yc_sc, row, jnp.int32)     # (B, 1)

            # forward recursion: emit hoisted out of the logsumexp; the reduced
            # (previous-tag) axis sits on sublanes.
            s = score[:, :, None] + transT[None, :, :]           # (B, Kp, Kc)
            mx = jnp.max(s, axis=1)                              # (B, Kc)
            lse = mx + jnp.log(jnp.sum(jnp.exp(s - mx[:, None, :]), axis=1))
            new_score = emit_t + lse
            score = m_vec * new_score + (1.0 - m_vec) * score

            # gold path: emission via in-register one-hot select, transition via
            # scalar SMEM lookup trans[y_cur, y_prev].
            e_term = jnp.sum(jnp.where(lane == yc_vec, emit_t, 0.0),
                             axis=1, keepdims=True)              # (B, 1)
            t_sc = [trans_sm[yc_sc[b], yp_sc[b]] for b in range(B)]
            t_vec = col_from_scalars(t_sc, row, jnp.float32)
            gold = gold + (e_term + t_vec) * m_vec
            length = [length[b] + m_sc[b].astype(jnp.int32) for b in range(B)]

        # termination: Z = logsumexp(score + trans[EOS]);  gold += trans[EOS, last]
        final = score + eos_ref[...]                             # (B, K)
        mx = jnp.max(final, axis=1, keepdims=True)
        z = mx + jnp.log(jnp.sum(jnp.exp(final - mx), axis=1, keepdims=True))
        eos_sc = [trans_sm[EOS_IDX, y_sm[b, length[b]]] for b in range(B)]
        gold = gold + col_from_scalars(eos_sc, row, jnp.float32)
        return z, gold

    z_iob, g_iob = crf(iob_fc, transT_iob_ref, eos_iob_ref,
                       trans_iob_sm, yiob_sm, miob_sm, NUM_TAGS_IOB)
    z_ner, g_ner = crf(ner_fc, transT_ner_ref, eos_ner_ref,
                       trans_ner_sm, yner_sm, mner_sm, NUM_TAGS_NER)

    # ---- 4. loss = mean((Ziob + Zner - (scoreiob + scorener))^2) ----
    diff = (z_iob + z_ner) - (g_iob + g_ner)                     # (B, 1)
    loss_ref[...] = jnp.sum(diff * diff, axis=0, keepdims=True) * (1.0 / B)


# ----------------------------------------------------------------------------
# Wrapper (embedding lookup / transposes are plain-JAX glue)
# ----------------------------------------------------------------------------
def init_params(key):
    ks = jax.random.split(key, 12)
    E, H, O = EMBED_SIZE, HIDDEN_SIZE, NUM_OUTPUT_RNN

    def make_trans(k, K):
        trans = jax.random.normal(k, (K, K), jnp.float32)
        trans = trans.at[SOS_IDX, :].set(-10000.0)
        trans = trans.at[:, EOS_IDX].set(-10000.0)
        trans = trans.at[:, PAD_IDX].set(-10000.0)
        trans = trans.at[PAD_IDX, :].set(-10000.0)
        trans = trans.at[PAD_IDX, EOS_IDX].set(0.0)
        trans = trans.at[PAD_IDX, PAD_IDX].set(0.0)
        return trans

    return dict(
        w_emb=0.1 * jax.random.normal(ks[0], (WTI_SIZE, E), jnp.float32),
        wih_t=0.1 * jax.random.normal(ks[1], (E, 4 * H), jnp.float32),   # W_ih^T
        whh_t=0.1 * jax.random.normal(ks[2], (H, 4 * H), jnp.float32),   # W_hh^T
        b_g=0.1 * jax.random.normal(ks[3], (1, 4 * H), jnp.float32),     # b_ih + b_hh
        wout_t=0.1 * jax.random.normal(ks[4], (H, O), jnp.float32),      # out.weight^T
        bout=0.1 * jax.random.normal(ks[5], (1, O), jnp.float32),
        wiob_t=0.1 * jax.random.normal(ks[6], (O, NUM_TAGS_IOB), jnp.float32),
        biob=0.1 * jax.random.normal(ks[7], (1, NUM_TAGS_IOB), jnp.float32),
        wner_t=0.1 * jax.random.normal(ks[8], (O, NUM_TAGS_NER), jnp.float32),
        bner=0.1 * jax.random.normal(ks[9], (1, NUM_TAGS_NER), jnp.float32),
        trans_iob=make_trans(ks[10], NUM_TAGS_IOB),
        trans_ner=make_trans(ks[11], NUM_TAGS_NER),
    )


@jax.jit
def rnn_two_crf_forward(params, xc, xw, yiob, yner):
    del xc   # TODO(synk): char-level embedding not modeled (embed source missing)
    B = xw.shape[0]
    T = xw.shape[1] - 1

    mask_w = (xw[:, 1:] > PAD_IDX).astype(jnp.float32)       # (B, T)
    mask_iob = (yiob[:, 1:] > PAD_IDX).astype(jnp.float32)
    mask_ner = (yner[:, 1:] > PAD_IDX).astype(jnp.float32)

    # literal pack_padded behaviour (max length == T): the RNN consumes positions
    # 0..T-1 of xw (SOS + first T-1 words); padded steps are zeroed by `h *= mask`.
    x = jnp.take(params["w_emb"], xw[:, :-1], axis=0)        # (B, T, E)
    x_flat = jnp.transpose(x, (1, 0, 2)).reshape(T * B, EMBED_SIZE)   # time-major
    maskw_col = jnp.transpose(mask_w, (1, 0)).reshape(T * B, 1)

    out = pl.pallas_call(
        rnn_two_crf_kernel,
        out_shape=jax.ShapeDtypeStruct((1, 1), jnp.float32),
        in_specs=[VMEM_SPEC] * 15 + [SMEM_SPEC] * 6,
        out_specs=VMEM_SPEC,
        scratch_shapes=[pltpu.VMEM((T * B, HIDDEN_SIZE), jnp.float32)],
    )(
        # VMEM
        x_flat, maskw_col,
        params["wih_t"], params["whh_t"], params["b_g"],
        params["wout_t"], params["bout"],
        params["wiob_t"], params["biob"], params["wner_t"], params["bner"],
        params["trans_iob"].T, params["trans_iob"][EOS_IDX:EOS_IDX + 1, :],
        params["trans_ner"].T, params["trans_ner"][EOS_IDX:EOS_IDX + 1, :],
        # SMEM
        params["trans_iob"], params["trans_ner"],
        yiob, yner, mask_iob, mask_ner,
    )
    return out[0, 0]


if __name__ == "__main__":
    key = jax.random.PRNGKey(0)
    kp, kw, ki, kn, kc = jax.random.split(key, 5)

    params = init_params(kp)

    # deterministic synthetic batch: lengths [8, 5] (sorted desc, pack-padded style)
    lengths = jnp.array([SEQ, 5], dtype=jnp.int32)
    pos = jnp.arange(SEQ, dtype=jnp.int32)[None, :]
    valid = pos < lengths[:, None]                            # (B, T)
    sos_col = jnp.full((BATCH, 1), SOS_IDX, dtype=jnp.int32)

    words = jnp.where(
        valid,
        jax.random.randint(kw, (BATCH, SEQ), UNK_IDX + 1, WTI_SIZE, dtype=jnp.int32),
        PAD_IDX)
    xw = jnp.concatenate([sos_col, words], axis=1)            # (B, T+1)

    tags_iob = jnp.where(
        valid,
        jax.random.randint(ki, (BATCH, SEQ), EOS_IDX + 1, NUM_TAGS_IOB, dtype=jnp.int32),
        PAD_IDX)
    yiob = jnp.concatenate([sos_col, tags_iob], axis=1)       # (B, T+1)

    tags_ner = jnp.where(
        valid,
        jax.random.randint(kn, (BATCH, SEQ), EOS_IDX + 1, NUM_TAGS_NER, dtype=jnp.int32),
        PAD_IDX)
    yner = jnp.concatenate([sos_col, tags_ner], axis=1)       # (B, T+1)

    xc = jax.random.randint(kc, (BATCH, SEQ, 4), 1, CTI_SIZE, dtype=jnp.int32)  # unused

    loss = rnn_two_crf_forward(params, xc, xw, yiob, yner)
    jax.block_until_ready(loss)
    assert loss.shape == () and bool(jnp.isfinite(loss))
    print("KERNEL_OK")
</pallas_src>

<mosaic_0001>
module attributes {stable_mosaic.version = 11 : i64} {
  func.func @rnn_two_crf_kernel(%arg0: memref<16x32xf32, #tpu.memory_space<vmem>>, %arg1: memref<16x1xf32, #tpu.memory_space<vmem>>, %arg2: memref<32x128xf32, #tpu.memory_space<vmem>>, %arg3: memref<32x128xf32, #tpu.memory_space<vmem>>, %arg4: memref<1x128xf32, #tpu.memory_space<vmem>>, %arg5: memref<32x16xf32, #tpu.memory_space<vmem>>, %arg6: memref<1x16xf32, #tpu.memory_space<vmem>>, %arg7: memref<16x8xf32, #tpu.memory_space<vmem>>, %arg8: memref<1x8xf32, #tpu.memory_space<vmem>>, %arg9: memref<16x16xf32, #tpu.memory_space<vmem>>, %arg10: memref<1x16xf32, #tpu.memory_space<vmem>>, %arg11: memref<8x8xf32, #tpu.memory_space<vmem>>, %arg12: memref<1x8xf32, #tpu.memory_space<vmem>>, %arg13: memref<16x16xf32, #tpu.memory_space<vmem>>, %arg14: memref<1x16xf32, #tpu.memory_space<vmem>>, %arg15: memref<8x8xf32, #tpu.memory_space<smem>>, %arg16: memref<16x16xf32, #tpu.memory_space<smem>>, %arg17: memref<2x9xi32, #tpu.memory_space<smem>>, %arg18: memref<2x9xi32, #tpu.memory_space<smem>>, %arg19: memref<2x8xf32, #tpu.memory_space<smem>>, %arg20: memref<2x8xf32, #tpu.memory_space<smem>>, %arg21: memref<1x1xf32, #tpu.memory_space<vmem>>, %arg22: memref<16x32xf32, #tpu.memory_space<vmem>>) attributes {dimension_semantics = [], scalar_prefetch = 0 : i64, scratch_operands = 1 : i64, tpu.core_type = #tpu.core_type<tc>} {
    %c0 = arith.constant 0 : index
    %c0_0 = arith.constant 0 : index
    %0 = vector.load %arg0[%c0, %c0_0] : memref<16x32xf32, #tpu.memory_space<vmem>>, vector<16x32xf32>
    %c0_1 = arith.constant 0 : index
    %c0_2 = arith.constant 0 : index
    %1 = vector.load %arg2[%c0_1, %c0_2] : memref<32x128xf32, #tpu.memory_space<vmem>>, vector<32x128xf32>
    %cst = arith.constant dense<0.000000e+00> : vector<16x128xf32>
    %2 = tpu.matmul %0, %1, %cst {dimension_numbers = #tpu.dot_dimension_numbers<[1], [0], [0], [1], [0, 0, 1, 1], [], []>} : vector<16x32xf32>, vector<32x128xf32>, vector<16x128xf32> -> vector<16x128xf32>
    %c0_3 = arith.constant 0 : index
    %c0_4 = arith.constant 0 : index
    %3 = vector.load %arg4[%c0_3, %c0_4] : memref<1x128xf32, #tpu.memory_space<vmem>>, vector<1x128xf32>
    %4 = vector.broadcast %3 : vector<1x128xf32> to vector<16x128xf32>
    %5 = arith.addf %2, %4 : vector<16x128xf32>
    %c0_5 = arith.constant 0 : index
    %c0_6 = arith.constant 0 : index
    %6 = vector.load %arg3[%c0_5, %c0_6] : memref<32x128xf32, #tpu.memory_space<vmem>>, vector<32x128xf32>
    %cst_7 = arith.constant 0.000000e+00 : f32
    %7 = vector.broadcast %cst_7 : f32 to vector<2x32xf32>
    %cst_8 = arith.constant 0.000000e+00 : f32
    %8 = vector.broadcast %cst_8 : f32 to vector<2x32xf32>
    %9 = vector.extract_strided_slice %5 {offsets = [0, 0], sizes = [2, 128], strides = [1, 1]} : vector<16x128xf32> to vector<2x128xf32>
    %cst_9 = arith.constant dense<0.000000e+00> : vector<2x128xf32>
    %10 = tpu.matmul %7, %6, %cst_9 {dimension_numbers = #tpu.dot_dimension_numbers<[1], [0], [0], [1], [0, 0, 1, 1], [], []>} : vector<2x32xf32>, vector<32x128xf32>, vector<2x128xf32> -> vector<2x128xf32>
    %11 = arith.addf %9, %10 : vector<2x128xf32>
    %12 = arith.negf %11 : vector<2x128xf32>
    %13 = math.exp %12 : vector<2x128xf32>
    %cst_10 = arith.constant 1.000000e+00 : f32
    %14 = vector.broadcast %cst_10 : f32 to vector<2x128xf32>
    %15 = arith.addf %14, %13 : vector<2x128xf32>
    %16 = arith.divf %14, %15 : vector<2x128xf32>
    %17 = math.tanh %11 : vector<2x128xf32>
    %18 = vector.extract_strided_slice %16 {offsets = [0, 0], sizes = [2, 32], strides = [1, 1]} : vector<2x128xf32> to vector<2x32xf32>
    %19 = vector.extract_strided_slice %16 {offsets = [0, 32], sizes = [2, 32], strides = [1, 1]} : vector<2x128xf32> to vector<2x32xf32>
    %20 = vector.extract_strided_slice %17 {offsets = [0, 64], sizes = [2, 32], strides = [1, 1]} : vector<2x128xf32> to vector<2x32xf32>
    %21 = vector.extract_strided_slice %16 {offsets = [0, 96], sizes = [2, 32], strides = [1, 1]} : vector<2x128xf32> to vector<2x32xf32>
    %22 = arith.mulf %19, %8 : vector<2x32xf32>
    %23 = arith.mulf %18, %20 : vector<2x32xf32>
    %24 = arith.addf %22, %23 : vector<2x32xf32>
    %25 = math.tanh %24 : vector<2x32xf32>
    %26 = arith.mulf %21, %25 : vector<2x32xf32>
    %c0_11 = arith.constant 0 : index
    %c0_12 = arith.constant 0 : index
    %27 = vector.load %arg22[%c0_11, %c0_12] : memref<16x32xf32, #tpu.memory_space<vmem>>, vector<2x32xf32>
    tpu.vector_store %arg22[%c0_11, %c0_12], %26 {strides = array<i32>} : memref<16x32xf32, #tpu.memory_space<vmem>>, vector<2x32xf32>,
    %28 = vector.extract_strided_slice %5 {offsets = [2, 0], sizes = [2, 128], strides = [1, 1]} : vector<16x128xf32> to vector<2x128xf32>
    %cst_13 = arith.constant dense<0.000000e+00> : vector<2x128xf32>
    %29 = tpu.matmul %26, %6, %cst_13 {dimension_numbers = #tpu.dot_dimension_numbers<[1], [0], [0], [1], [0, 0, 1, 1], [], []>} : vector<2x32xf32>, vector<32x128xf32>, vector<2x128xf32> -> vector<2x128xf32>
    %30 = arith.addf %28, %29 : vector<2x128xf32>
    %31 = arith.negf %30 : vector<2x128xf32>
    %32 = math.exp %31 : vector<2x128xf32>
    %cst_14 = arith.constant 1.000000e+00 : f32
    %33 = vector.broadcast %cst_14 : f32 to vector<2x128xf32>
    %34 = arith.addf %33, %32 : vector<2x128xf32>
    %35 = arith.divf %33, %34 : vector<2x128xf32>
    %36 = math.tanh %30 : vector<2x128xf32>
    %37 = vector.extract_strided_slice %35 {offsets = [0, 0], sizes = [2, 32], strides = [1, 1]} : vector<2x128xf32> to vector<2x32xf32>
    %38 = vector.extract_strided_slice %35 {offsets = [0, 32], sizes = [2, 32], strides = [1, 1]} : vector<2x128xf32> to vector<2x32xf32>
    %39 = vector.extract_strided_slice %36 {offsets = [0, 64], sizes = [2, 32], strides = [1, 1]} : vector<2x128xf32> to vector<2x32xf32>
    %40 = vector.extract_strided_slice %35 {offsets = [0, 96], sizes = [2, 32], strides = [1, 1]} : vector<2x128xf32> to vector<2x32xf32>
    %41 = arith.mulf %38, %24 : vector<2x32xf32>
    %42 = arith.mulf %37, %39 : vector<2x32xf32>
    %43 = arith.addf %41, %42 : vector<2x32xf32>
    %44 = math.tanh %43 : vector<2x32xf32>
    %45 = arith.mulf %40, %44 : vector<2x32xf32>
    %c2 = arith.constant 2 : index
    %c0_15 = arith.constant 0 : index
    %46 = vector.load %arg22[%c2, %c0_15] : memref<16x32xf32, #tpu.memory_space<vmem>>, vector<2x32xf32>
    tpu.vector_store %arg22[%c2, %c0_15], %45 {strides = array<i32>} : memref<16x32xf32, #tpu.memory_space<vmem>>, vector<2x32xf32>,
    %47 = vector.extract_strided_slice %5 {offsets = [4, 0], sizes = [2, 128], strides = [1, 1]} : vector<16x128xf32> to vector<2x128xf32>
    %cst_16 = arith.constant dense<0.000000e+00> : vector<2x128xf32>
    %48 = tpu.matmul %45, %6, %cst_16 {dimension_numbers = #tpu.dot_dimension_numbers<[1], [0], [0], [1], [0, 0, 1, 1], [], []>} : vector<2x32xf32>, vector<32x128xf32>, vector<2x128xf32> -> vector<2x128xf32>
    %49 = arith.addf %47, %48 : vector<2x128xf32>
    %50 = arith.negf %49 : vector<2x128xf32>
    %51 = math.exp %50 : vector<2x128xf32>
    %cst_17 = arith.constant 1.000000e+00 : f32
    %52 = vector.broadcast %cst_17 : f32 to vector<2x128xf32>
    %53 = arith.addf %52, %51 : vector<2x128xf32>
    %54 = arith.divf %52, %53 : vector<2x128xf32>
    %55 = math.tanh %49 : vector<2x128xf32>
    %56 = vector.extract_strided_slice %54 {offsets = [0, 0], sizes = [2, 32], strides = [1, 1]} : vector<2x128xf32> to vector<2x32xf32>
    %57 = vector.extract_strided_slice %54 {offsets = [0, 32], sizes = [2, 32], strides = [1, 1]} : vector<2x128xf32> to vector<2x32xf32>
    %58 = vector.extract_strided_slice %55 {offsets = [0, 64], sizes = [2, 32], strides = [1, 1]} : vector<2x128xf32> to vector<2x32xf32>
    %59 = vector.extract_strided_slice %54 {offsets = [0, 96], sizes = [2, 32], strides = [1, 1]} : vector<2x128xf32> to vector<2x32xf32>
    %60 = arith.mulf %57, %43 : vector<2x32xf32>
    %61 = arith.mulf %56, %58 : vector<2x32xf32>
    %62 = arith.addf %60, %61 : vector<2x32xf32>
    %63 = math.tanh %62 : vector<2x32xf32>
    %64 = arith.mulf %59, %63 : vector<2x32xf32>
    %c4 = arith.constant 4 : index
    %c0_18 = arith.constant 0 : index
    %65 = vector.load %arg22[%c4, %c0_18] : memref<16x32xf32, #tpu.memory_space<vmem>>, vector<2x32xf32>
    tpu.vector_store %arg22[%c4, %c0_18], %64 {strides = array<i32>} : memref<16x32xf32, #tpu.memory_space<vmem>>, vector<2x32xf32>,
    %66 = vector.extract_strided_slice %5 {offsets = [6, 0], sizes = [2, 128], strides = [1, 1]} : vector<16x128xf32> to vector<2x128xf32>
    %cst_19 = arith.constant dense<0.000000e+00> : vector<2x128xf32>
    %67 = tpu.matmul %64, %6, %cst_19 {dimension_numbers = #tpu.dot_dimension_numbers<[1], [0], [0], [1], [0, 0, 1, 1], [], []>} : vector<2x32xf32>, vector<32x128xf32>, vector<2x128xf32> -> vector<2x128xf32>
    %68 = arith.addf %66, %67 : vector<2x128xf32>
    %69 = arith.negf %68 : vector<2x128xf32>
    %70 = math.exp %69 : vector<2x128xf32>
    %cst_20 = arith.constant 1.000000e+00 : f32
    %71 = vector.broadcast %cst_20 : f32 to vector<2x128xf32>
    %72 = arith.addf %71, %70 : vector<2x128xf32>
    %73 = arith.divf %71, %72 : vector<2x128xf32>
    %74 = math.tanh %68 : vector<2x128xf32>
    %75 = vector.extract_strided_slice %73 {offsets = [0, 0], sizes = [2, 32], strides = [1, 1]} : vector<2x128xf32> to vector<2x32xf32>
    %76 = vector.extract_strided_slice %73 {offsets = [0, 32], sizes = [2, 32], strides = [1, 1]} : vector<2x128xf32> to vector<2x32xf32>
    %77 = vector.extract_strided_slice %74 {offsets = [0, 64], sizes = [2, 32], strides = [1, 1]} : vector<2x128xf32> to vector<2x32xf32>
    %78 = vector.extract_strided_slice %73 {offsets = [0, 96], sizes = [2, 32], strides = [1, 1]} : vector<2x128xf32> to vector<2x32xf32>
    %79 = arith.mulf %76, %62 : vector<2x32xf32>
    %80 = arith.mulf %75, %77 : vector<2x32xf32>
    %81 = arith.addf %79, %80 : vector<2x32xf32>
    %82 = math.tanh %81 : vector<2x32xf32>
    %83 = arith.mulf %78, %82 : vector<2x32xf32>
    %c6 = arith.constant 6 : index
    %c0_21 = arith.constant 0 : index
    %84 = vector.load %arg22[%c6, %c0_21] : memref<16x32xf32, #tpu.memory_space<vmem>>, vector<2x32xf32>
    tpu.vector_store %arg22[%c6, %c0_21], %83 {strides = array<i32>} : memref<16x32xf32, #tpu.memory_space<vmem>>, vector<2x32xf32>,
    %85 = vector.extract_strided_slice %5 {offsets = [8, 0], sizes = [2, 128], strides = [1, 1]} : vector<16x128xf32> to vector<2x128xf32>
    %cst_22 = arith.constant dense<0.000000e+00> : vector<2x128xf32>
    %86 = tpu.matmul %83, %6, %cst_22 {dimension_numbers = #tpu.dot_dimension_numbers<[1], [0], [0], [1], [0, 0, 1, 1], [], []>} : vector<2x32xf32>, vector<32x128xf32>, vector<2x128xf32> -> vector<2x128xf32>
    %87 = arith.addf %85, %86 : vector<2x128xf32>
    %88 = arith.negf %87 : vector<2x128xf32>
    %89 = math.exp %88 : vector<2x128xf32>
    %cst_23 = arith.constant 1.000000e+00 : f32
    %90 = vector.broadcast %cst_23 : f32 to vector<2x128xf32>
    %91 = arith.addf %90, %89 : vector<2x128xf32>
    %92 = arith.divf %90, %91 : vector<2x128xf32>
    %93 = math.tanh %87 : vector<2x128xf32>
    %94 = vector.extract_strided_slice %92 {offsets = [0, 0], sizes = [2, 32], strides = [1, 1]} : vector<2x128xf32> to vector<2x32xf32>
    %95 = vector.extract_strided_slice %92 {offsets = [0, 32], sizes = [2, 32], strides = [1, 1]} : vector<2x128xf32> to vector<2x32xf32>
    %96 = vector.extract_strided_slice %93 {offsets = [0, 64], sizes = [2, 32], strides = [1, 1]} : vector<2x128xf32> to vector<2x32xf32>
    %97 = vector.extract_strided_slice %92 {offsets = [0, 96], sizes = [2, 32], strides = [1, 1]} : vector<2x128xf32> to vector<2x32xf32>
    %98 = arith.mulf %95, %81 : vector<2x32xf32>
    %99 = arith.mulf %94, %96 : vector<2x32xf32>
    %100 = arith.addf %98, %99 : vector<2x32xf32>
    %101 = math.tanh %100 : vector<2x32xf32>
    %102 = arith.mulf %97, %101 : vector<2x32xf32>
    %c8 = arith.constant 8 : index
    %c0_24 = arith.constant 0 : index
    %103 = vector.load %arg22[%c8, %c0_24] : memref<16x32xf32, #tpu.memory_space<vmem>>, vector<2x32xf32>
    tpu.vector_store %arg22[%c8, %c0_24], %102 {strides = array<i32>} : memref<16x32xf32, #tpu.memory_space<vmem>>, vector<2x32xf32>,
    %104 = vector.extract_strided_slice %5 {offsets = [10, 0], sizes = [2, 128], strides = [1, 1]} : vector<16x128xf32> to vector<2x128xf32>
    %cst_25 = arith.constant dense<0.000000e+00> : vector<2x128xf32>
    %105 = tpu.matmul %102, %6, %cst_25 {dimension_numbers = #tpu.dot_dimension_numbers<[1], [0], [0], [1], [0, 0, 1, 1], [], []>} : vector<2x32xf32>, vector<32x128xf32>, vector<2x128xf32> -> vector<2x128xf32>
    %106 = arith.addf %104, %105 : vector<2x128xf32>
    %107 = arith.negf %106 : vector<2x128xf32>
    %108 = math.exp %107 : vector<2x128xf32>
    %cst_26 = arith.constant 1.000000e+00 : f32
    %109 = vector.broadcast %cst_26 : f32 to vector<2x128xf32>
    %110 = arith.addf %109, %108 : vector<2x128xf32>
    %111 = arith.divf %109, %110 : vector<2x128xf32>
    %112 = math.tanh %106 : vector<2x128xf32>
    %113 = vector.extract_strided_slice %111 {offsets = [0, 0], sizes = [2, 32], strides = [1, 1]} : vector<2x128xf32> to vector<2x32xf32>
    %114 = vector.extract_strided_slice %111 {offsets = [0, 32], sizes = [2, 32], strides = [1, 1]} : vector<2x128xf32> to vector<2x32xf32>
    %115 = vector.extract_strided_slice %112 {offsets = [0, 64], sizes = [2, 32], strides = [1, 1]} : vector<2x128xf32> to vector<2x32xf32>
    %116 = vector.extract_strided_slice %111 {offsets = [0, 96], sizes = [2, 32], strides = [1, 1]} : vector<2x128xf32> to vector<2x32xf32>
    %117 = arith.mulf %114, %100 : vector<2x32xf32>
    %118 = arith.mulf %113, %115 : vector<2x32xf32>
    %119 = arith.addf %117, %118 : vector<2x32xf32>
    %120 = math.tanh %119 : vector<2x32xf32>
    %121 = arith.mulf %116, %120 : vector<2x32xf32>
    %c10 = arith.constant 10 : index
    %c0_27 = arith.constant 0 : index
    %122 = vector.load %arg22[%c10, %c0_27] : memref<16x32xf32, #tpu.memory_space<vmem>>, vector<2x32xf32>
    tpu.vector_store %arg22[%c10, %c0_27], %121 {strides = array<i32>} : memref<16x32xf32, #tpu.memory_space<vmem>>, vector<2x32xf32>,
    %123 = vector.extract_strided_slice %5 {offsets = [12, 0], sizes = [2, 128], strides = [1, 1]} : vector<16x128xf32> to vector<2x128xf32>
    %cst_28 = arith.constant dense<0.000000e+00> : vector<2x128xf32>
    %124 = tpu.matmul %121, %6, %cst_28 {dimension_numbers = #tpu.dot_dimension_numbers<[1], [0], [0], [1], [0, 0, 1, 1], [], []>} : vector<2x32xf32>, vector<32x128xf32>, vector<2x128xf32> -> vector<2x128xf32>
    %125 = arith.addf %123, %124 : vector<2x128xf32>
    %126 = arith.negf %125 : vector<2x128xf32>
    %127 = math.exp %126 : vector<2x128xf32>
    %cst_29 = arith.constant 1.000000e+00 : f32
    %128 = vector.broadcast %cst_29 : f32 to vector<2x128xf32>
    %129 = arith.addf %128, %127 : vector<2x128xf32>
    %130 = arith.divf %128, %129 : vector<2x128xf32>
    %131 = math.tanh %125 : vector<2x128xf32>
    %132 = vector.extract_strided_slice %130 {offsets = [0, 0], sizes = [2, 32], strides = [1, 1]} : vector<2x128xf32> to vector<2x32xf32>
    %133 = vector.extract_strided_slice %130 {offsets = [0, 32], sizes = [2, 32], strides = [1, 1]} : vector<2x128xf32> to vector<2x32xf32>
    %134 = vector.extract_strided_slice %131 {offsets = [0, 64], sizes = [2, 32], strides = [1, 1]} : vector<2x128xf32> to vector<2x32xf32>
    %135 = vector.extract_strided_slice %130 {offsets = [0, 96], sizes = [2, 32], strides = [1, 1]} : vector<2x128xf32> to vector<2x32xf32>
    %136 = arith.mulf %133, %119 : vector<2x32xf32>
    %137 = arith.mulf %132, %134 : vector<2x32xf32>
    %138 = arith.addf %136, %137 : vector<2x32xf32>
    %139 = math.tanh %138 : vector<2x32xf32>
    %140 = arith.mulf %135, %139 : vector<2x32xf32>
    %c12 = arith.constant 12 : index
    %c0_30 = arith.constant 0 : index
    %141 = vector.load %arg22[%c12, %c0_30] : memref<16x32xf32, #tpu.memory_space<vmem>>, vector<2x32xf32>
    tpu.vector_store %arg22[%c12, %c0_30], %140 {strides = array<i32>} : memref<16x32xf32, #tpu.memory_space<vmem>>, vector<2x32xf32>,
    %142 = vector.extract_strided_slice %5 {offsets = [14, 0], sizes = [2, 128], strides = [1, 1]} : vector<16x128xf32> to vector<2x128xf32>
    %cst_31 = arith.constant dense<0.000000e+00> : vector<2x128xf32>
    %143 = tpu.matmul %140, %6, %cst_31 {dimension_numbers = #tpu.dot_dimension_numbers<[1], [0], [0], [1], [0, 0, 1, 1], [], []>} : vector<2x32xf32>, vector<32x128xf32>, vector<2x128xf32> -> vector<2x128xf32>
    %144 = arith.addf %142, %143 : vector<2x128xf32>
    %145 = arith.negf %144 : vector<2x128xf32>
    %146 = math.exp %145 : vector<2x128xf32>
    %cst_32 = arith.constant 1.000000e+00 : f32
    %147 = vector.broadcast %cst_32 : f32 to vector<2x128xf32>
    %148 = arith.addf %147, %146 : vector<2x128xf32>
    %149 = arith.divf %147, %148 : vector<2x128xf32>
    %150 = math.tanh %144 : vector<2x128xf32>
    %151 = vector.extract_strided_slice %149 {offsets = [0, 0], sizes = [2, 32], strides = [1, 1]} : vector<2x128xf32> to vector<2x32xf32>
    %152 = vector.extract_strided_slice %149 {offsets = [0, 32], sizes = [2, 32], strides = [1, 1]} : vector<2x128xf32> to vector<2x32xf32>
    %153 = vector.extract_strided_slice %150 {offsets = [0, 64], sizes = [2, 32], strides = [1, 1]} : vector<2x128xf32> to vector<2x32xf32>
    %154 = vector.extract_strided_slice %149 {offsets = [0, 96], sizes = [2, 32], strides = [1, 1]} : vector<2x128xf32> to vector<2x32xf32>
    %155 = arith.mulf %152, %138 : vector<2x32xf32>
    %156 = arith.mulf %151, %153 : vector<2x32xf32>
    %157 = arith.addf %155, %156 : vector<2x32xf32>
    %158 = math.tanh %157 : vector<2x32xf32>
    %159 = arith.mulf %154, %158 : vector<2x32xf32>
    %c14 = arith.constant 14 : index
    %c0_33 = arith.constant 0 : index
    %160 = vector.load %arg22[%c14, %c0_33] : memref<16x32xf32, #tpu.memory_space<vmem>>, vector<2x32xf32>
    tpu.vector_store %arg22[%c14, %c0_33], %159 {strides = array<i32>} : memref<16x32xf32, #tpu.memory_space<vmem>>, vector<2x32xf32>,
    %c0_34 = arith.constant 0 : index
    %c0_35 = arith.constant 0 : index
    %161 = vector.load %arg22[%c0_34, %c0_35] : memref<16x32xf32, #tpu.memory_space<vmem>>, vector<16x32xf32>
    %c0_36 = arith.constant 0 : index
    %c0_37 = arith.constant 0 : index
    %162 = vector.load %arg5[%c0_36, %c0_37] : memref<32x16xf32, #tpu.memory_space<vmem>>, vector<32x16xf32>
    %cst_38 = arith.constant dense<0.000000e+00> : vector<16x16xf32>
    %163 = tpu.matmul %161, %162, %cst_38 {dimension_numbers = #tpu.dot_dimension_numbers<[1], [0], [0], [1], [0, 0, 1, 1], [], []>} : vector<16x32xf32>, vector<32x16xf32>, vector<16x16xf32> -> vector<16x16xf32>
    %c0_39 = arith.constant 0 : index
    %c0_40 = arith.constant 0 : index
    %164 = vector.load %arg6[%c0_39, %c0_40] : memref<1x16xf32, #tpu.memory_space<vmem>>, vector<1x16xf32>
    %165 = vector.broadcast %164 : vector<1x16xf32> to vector<16x16xf32>
    %166 = arith.addf %163, %165 : vector<16x16xf32>
    %c0_41 = arith.constant 0 : index
    %c0_42 = arith.constant 0 : index
    %167 = vector.load %arg1[%c0_41, %c0_42] : memref<16x1xf32, #tpu.memory_space<vmem>>, vector<16x1xf32>
    %168 = vector.broadcast %167 : vector<16x1xf32> to vector<16x16xf32>
    %169 = arith.mulf %166, %168 : vector<16x16xf32>
    %c0_43 = arith.constant 0 : index
    %c0_44 = arith.constant 0 : index
    %170 = vector.load %arg7[%c0_43, %c0_44] : memref<16x8xf32, #tpu.memory_space<vmem>>, vector<16x8xf32>
    %cst_45 = arith.constant dense<0.000000e+00> : vector<16x8xf32>
    %171 = tpu.matmul %169, %170, %cst_45 {dimension_numbers = #tpu.dot_dimension_numbers<[1], [0], [0], [1], [0, 0, 1, 1], [], []>} : vector<16x16xf32>, vector<16x8xf32>, vector<16x8xf32> -> vector<16x8xf32>
    %c0_46 = arith.constant 0 : index
    %c0_47 = arith.constant 0 : index
    %172 = vector.load %arg8[%c0_46, %c0_47] : memref<1x8xf32, #tpu.memory_space<vmem>>, vector<1x8xf32>
    %173 = vector.broadcast %172 : vector<1x8xf32> to vector<16x8xf32>
    %174 = arith.addf %171, %173 : vector<16x8xf32>
    %c0_48 = arith.constant 0 : index
    %c0_49 = arith.constant 0 : index
    %175 = vector.load %arg9[%c0_48, %c0_49] : memref<16x16xf32, #tpu.memory_space<vmem>>, vector<16x16xf32>
    %cst_50 = arith.constant dense<0.000000e+00> : vector<16x16xf32>
    %176 = tpu.matmul %169, %175, %cst_50 {dimension_numbers = #tpu.dot_dimension_numbers<[1], [0], [0], [1], [0, 0, 1, 1], [], []>} : vector<16x16xf32>, vector<16x16xf32>, vector<16x16xf32> -> vector<16x16xf32>
    %c0_51 = arith.constant 0 : index
    %c0_52 = arith.constant 0 : index
    %177 = vector.load %arg10[%c0_51, %c0_52] : memref<1x16xf32, #tpu.memory_space<vmem>>, vector<1x16xf32>
    %178 = vector.broadcast %177 : vector<1x16xf32> to vector<16x16xf32>
    %179 = arith.addf %176, %178 : vector<16x16xf32>
    %c0_53 = arith.constant 0 : index
    %c0_54 = arith.constant 0 : index
    %180 = vector.load %arg11[%c0_53, %c0_54] : memref<8x8xf32, #tpu.memory_space<vmem>>, vector<8x8xf32>
    %181 = tpu.iota {dimensions = array<i32: 1>} : vector<2x8xi32>
    %182 = tpu.iota {dimensions = array<i32: 0>} : vector<2x1xi32>
    %c1_i32 = arith.constant 1 : i32
    %183 = vector.broadcast %c1_i32 : i32 to vector<2x8xi32>
    %184 = arith.cmpi eq, %181, %183 : vector<2x8xi32>
    %cst_55 = arith.constant 0.000000e+00 : f32
    %cst_56 = arith.constant -1.000000e+04 : f32
    %185 = vector.broadcast %cst_55 : f32 to vector<2x8xf32>
    %186 = vector.broadcast %cst_56 : f32 to vector<2x8xf32>
    %187 = arith.select %184, %185, %186 : vector<2x8xi1>, vector<2x8xf32>
    %cst_57 = arith.constant 0.000000e+00 : f32
    %188 = vector.broadcast %cst_57 : f32 to vector<2x1xf32>
    %189 = vector.extract_strided_slice %174 {offsets = [0, 0], sizes = [2, 8], strides = [1, 1]} : vector<16x8xf32> to vector<2x8xf32>
    %c0_58 = arith.constant 0 : index
    %c0_59 = arith.constant 0 : index
    %190 = memref.load %arg19[%c0_58, %c0_59] : memref<2x8xf32, #tpu.memory_space<smem>>
    %c1 = arith.constant 1 : index
    %c0_60 = arith.constant 0 : index
    %191 = memref.load %arg19[%c1, %c0_60] : memref<2x8xf32, #tpu.memory_space<smem>>
    %c0_61 = arith.constant 0 : index
    %c1_62 = arith.constant 1 : index
    %192 = memref.load %arg17[%c0_61, %c1_62] : memref<2x9xi32, #tpu.memory_space<smem>>
    %c1_63 = arith.constant 1 : index
    %c1_64 = arith.constant 1 : index
    %193 = memref.load %arg17[%c1_63, %c1_64] : memref<2x9xi32, #tpu.memory_space<smem>>
    %c0_65 = arith.constant 0 : index
    %c0_66 = arith.constant 0 : index
    %194 = memref.load %arg17[%c0_65, %c0_66] : memref<2x9xi32, #tpu.memory_space<smem>>
    %c1_67 = arith.constant 1 : index
    %c0_68 = arith.constant 0 : index
    %195 = memref.load %arg17[%c1_67, %c0_68] : memref<2x9xi32, #tpu.memory_space<smem>>
    %196 = vector.broadcast %190 : f32 to vector<2x1xf32>
    %c1_i32_69 = arith.constant 1 : i32
    %197 = vector.broadcast %c1_i32_69 : i32 to vector<2x1xi32>
    %198 = arith.cmpi eq, %182, %197 : vector<2x1xi32>
    %199 = vector.broadcast %191 : f32 to vector<2x1xf32>
    %200 = arith.select %198, %199, %196 : vector<2x1xi1>, vector<2x1xf32>
    %201 = vector.broadcast %192 : i32 to vector<2x1xi32>
    %c1_i32_70 = arith.constant 1 : i32
    %202 = vector.broadcast %c1_i32_70 : i32 to vector<2x1xi32>
    %203 = arith.cmpi eq, %182, %202 : vector<2x1xi32>
    %204 = vector.broadcast %193 : i32 to vector<2x1xi32>
    %205 = arith.select %203, %204, %201 : vector<2x1xi1>, vector<2x1xi32>
    %206 = vector.shape_cast %187 : vector<2x8xf32> to vector<2x8x1xf32>
    %207 = vector.shape_cast %180 : vector<8x8xf32> to vector<1x8x8xf32>
    %208 = vector.broadcast %206 : vector<2x8x1xf32> to vector<2x8x8xf32>
    %209 = vector.broadcast %207 : vector<1x8x8xf32> to vector<2x8x8xf32>
    %210 = arith.addf %208, %209 : vector<2x8x8xf32>
    %cst_71 = arith.constant dense<0xFF800000> : vector<2x8xf32>
    %211 = vector.multi_reduction <maximumf>, %210, %cst_71 [1] : vector<2x8x8xf32> to vector<2x8xf32>
    %212 = vector.shape_cast %211 : vector<2x8xf32> to vector<2x1x8xf32>
    %213 = vector.broadcast %212 : vector<2x1x8xf32> to vector<2x8x8xf32>
    %214 = arith.subf %210, %213 : vector<2x8x8xf32>
    %215 = math.exp %214 : vector<2x8x8xf32>
    %cst_72 = arith.constant dense<0.000000e+00> : vector<2x8xf32>
    %216 = vector.multi_reduction <add>, %215, %cst_72 [1] : vector<2x8x8xf32> to vector<2x8xf32>
    %217 = math.log %216 : vector<2x8xf32>
    %218 = arith.addf %211, %217 : vector<2x8xf32>
    %219 = arith.addf %189, %218 : vector<2x8xf32>
    %220 = vector.broadcast %200 : vector<2x1xf32> to vector<2x8xf32>
    %221 = arith.mulf %220, %219 : vector<2x8xf32>
    %cst_73 = arith.constant 1.000000e+00 : f32
    %222 = vector.broadcast %cst_73 : f32 to vector<2x1xf32>
    %223 = arith.subf %222, %200 : vector<2x1xf32>
    %224 = vector.broadcast %223 : vector<2x1xf32> to vector<2x8xf32>
    %225 = arith.mulf %224, %187 : vector<2x8xf32>
    %226 = arith.addf %221, %225 : vector<2x8xf32>
    %227 = vector.broadcast %205 : vector<2x1xi32> to vector<2x8xi32>
    %228 = arith.cmpi eq, %181, %227 : vector<2x8xi32>
    %cst_74 = arith.constant 0.000000e+00 : f32
    %229 = vector.broadcast %cst_74 : f32 to vector<2x8xf32>
    %230 = arith.select %228, %189, %229 : vector<2x8xi1>, vector<2x8xf32>
    %cst_75 = arith.constant dense<0.000000e+00> : vector<2xf32>
    %231 = vector.multi_reduction <add>, %230, %cst_75 [1] : vector<2x8xf32> to vector<2xf32>
    %232 = vector.shape_cast %231 : vector<2xf32> to vector<2x1xf32>
    %233 = arith.index_cast %192 : i32 to index
    %234 = arith.index_cast %194 : i32 to index
    %235 = memref.load %arg15[%233, %234] : memref<8x8xf32, #tpu.memory_space<smem>>
    %236 = arith.index_cast %193 : i32 to index
    %237 = arith.index_cast %195 : i32 to index
    %238 = memref.load %arg15[%236, %237] : memref<8x8xf32, #tpu.memory_space<smem>>
    %239 = vector.broadcast %235 : f32 to vector<2x1xf32>
    %c1_i32_76 = arith.constant 1 : i32
    %240 = vector.broadcast %c1_i32_76 : i32 to vector<2x1xi32>
    %241 = arith.cmpi eq, %182, %240 : vector<2x1xi32>
    %242 = vector.broadcast %238 : f32 to vector<2x1xf32>
    %243 = arith.select %241, %242, %239 : vector<2x1xi1>, vector<2x1xf32>
    %244 = arith.addf %232, %243 : vector<2x1xf32>
    %245 = arith.mulf %244, %200 : vector<2x1xf32>
    %246 = arith.addf %188, %245 : vector<2x1xf32>
    %247 = arith.fptosi %190 : f32 to i32
    %c0_i32 = arith.constant 0 : i32
    %248 = arith.addi %c0_i32, %247 : i32
    %249 = arith.fptosi %191 : f32 to i32
    %c0_i32_77 = arith.constant 0 : i32
    %250 = arith.addi %c0_i32_77, %249 : i32
    %251 = vector.extract_strided_slice %174 {offsets = [2, 0], sizes = [2, 8], strides = [1, 1]} : vector<16x8xf32> to vector<2x8xf32>
    %c0_78 = arith.constant 0 : index
    %c1_79 = arith.constant 1 : index
    %252 = memref.load %arg19[%c0_78, %c1_79] : memref<2x8xf32, #tpu.memory_space<smem>>
    %c1_80 = arith.constant 1 : index
    %c1_81 = arith.constant 1 : index
    %253 = memref.load %arg19[%c1_80, %c1_81] : memref<2x8xf32, #tpu.memory_space<smem>>
    %c0_82 = arith.constant 0 : index
    %c2_83 = arith.constant 2 : index
    %254 = memref.load %arg17[%c0_82, %c2_83] : memref<2x9xi32, #tpu.memory_space<smem>>
    %c1_84 = arith.constant 1 : index
    %c2_85 = arith.constant 2 : index
    %255 = memref.load %arg17[%c1_84, %c2_85] : memref<2x9xi32, #tpu.memory_space<smem>>
    %c0_86 = arith.constant 0 : index
    %c1_87 = arith.constant 1 : index
    %256 = memref.load %arg17[%c0_86, %c1_87] : memref<2x9xi32, #tpu.memory_space<smem>>
    %c1_88 = arith.constant 1 : index
    %c1_89 = arith.constant 1 : index
    %257 = memref.load %arg17[%c1_88, %c1_89] : memref<2x9xi32, #tpu.memory_space<smem>>
    %258 = vector.broadcast %252 : f32 to vector<2x1xf32>
    %c1_i32_90 = arith.constant 1 : i32
    %259 = vector.broadcast %c1_i32_90 : i32 to vector<2x1xi32>
    %260 = arith.cmpi eq, %182, %259 : vector<2x1xi32>
    %261 = vector.broadcast %253 : f32 to vector<2x1xf32>
    %262 = arith.select %260, %261, %258 : vector<2x1xi1>, vector<2x1xf32>
    %263 = vector.broadcast %254 : i32 to vector<2x1xi32>
    %c1_i32_91 = arith.constant 1 : i32
    %264 = vector.broadcast %c1_i32_91 : i32 to vector<2x1xi32>
    %265 = arith.cmpi eq, %182, %264 : vector<2x1xi32>
    %266 = vector.broadcast %255 : i32 to vector<2x1xi32>
    %267 = arith.select %265, %266, %263 : vector<2x1xi1>, vector<2x1xi32>
    %268 = vector.shape_cast %226 : vector<2x8xf32> to vector<2x8x1xf32>
    %269 = vector.shape_cast %180 : vector<8x8xf32> to vector<1x8x8xf32>
    %270 = vector.broadcast %268 : vector<2x8x1xf32> to vector<2x8x8xf32>
    %271 = vector.broadcast %269 : vector<1x8x8xf32> to vector<2x8x8xf32>
    %272 = arith.addf %270, %271 : vector<2x8x8xf32>
    %cst_92 = arith.constant dense<0xFF800000> : vector<2x8xf32>
    %273 = vector.multi_reduction <maximumf>, %272, %cst_92 [1] : vector<2x8x8xf32> to vector<2x8xf32>
    %274 = vector.shape_cast %273 : vector<2x8xf32> to vector<2x1x8xf32>
    %275 = vector.broadcast %274 : vector<2x1x8xf32> to vector<2x8x8xf32>
    %276 = arith.subf %272, %275 : vector<2x8x8xf32>
    %277 = math.exp %276 : vector<2x8x8xf32>
    %cst_93 = arith.constant dense<0.000000e+00> : vector<2x8xf32>
    %278 = vector.multi_reduction <add>, %277, %cst_93 [1] : vector<2x8x8xf32> to vector<2x8xf32>
    %279 = math.log %278 : vector<2x8xf32>
    %280 = arith.addf %273, %279 : vector<2x8xf32>
    %281 = arith.addf %251, %280 : vector<2x8xf32>
    %282 = vector.broadcast %262 : vector<2x1xf32> to vector<2x8xf32>
    %283 = arith.mulf %282, %281 : vector<2x8xf32>
    %cst_94 = arith.constant 1.000000e+00 : f32
    %284 = vector.broadcast %cst_94 : f32 to vector<2x1xf32>
    %285 = arith.subf %284, %262 : vector<2x1xf32>
    %286 = vector.broadcast %285 : vector<2x1xf32> to vector<2x8xf32>
    %287 = arith.mulf %286, %226 : vector<2x8xf32>
    %288 = arith.addf %283, %287 : vector<2x8xf32>
    %289 = vector.broadcast %267 : vector<2x1xi32> to vector<2x8xi32>
    %290 = arith.cmpi eq, %181, %289 : vector<2x8xi32>
    %cst_95 = arith.constant 0.000000e+00 : f32
    %291 = vector.broadcast %cst_95 : f32 to vector<2x8xf32>
    %292 = arith.select %290, %251, %291 : vector<2x8xi1>, vector<2x8xf32>
    %cst_96 = arith.constant dense<0.000000e+00> : vector<2xf32>
    %293 = vector.multi_reduction <add>, %292, %cst_96 [1] : vector<2x8xf32> to vector<2xf32>
    %294 = vector.shape_cast %293 : vector<2xf32> to vector<2x1xf32>
    %295 = arith.index_cast %254 : i32 to index
    %296 = arith.index_cast %256 : i32 to index
    %297 = memref.load %arg15[%295, %296] : memref<8x8xf32, #tpu.memory_space<smem>>
    %298 = arith.index_cast %255 : i32 to index
    %299 = arith.index_cast %257 : i32 to index
    %300 = memref.load %arg15[%298, %299] : memref<8x8xf32, #tpu.memory_space<smem>>
    %301 = vector.broadcast %297 : f32 to vector<2x1xf32>
    %c1_i32_97 = arith.constant 1 : i32
    %302 = vector.broadcast %c1_i32_97 : i32 to vector<2x1xi32>
    %303 = arith.cmpi eq, %182, %302 : vector<2x1xi32>
    %304 = vector.broadcast %300 : f32 to vector<2x1xf32>
    %305 = arith.select %303, %304, %301 : vector<2x1xi1>, vector<2x1xf32>
    %306 = arith.addf %294, %305 : vector<2x1xf32>
    %307 = arith.mulf %306, %262 : vector<2x1xf32>
    %308 = arith.addf %246, %307 : vector<2x1xf32>
    %309 = arith.fptosi %252 : f32 to i32
    %310 = arith.addi %248, %309 : i32
    %311 = arith.fptosi %253 : f32 to i32
    %312 = arith.addi %250, %311 : i32
    %313 = vector.extract_strided_slice %174 {offsets = [4, 0], sizes = [2, 8], strides = [1, 1]} : vector<16x8xf32> to vector<2x8xf32>
    %c0_98 = arith.constant 0 : index
    %c2_99 = arith.constant 2 : index
    %314 = memref.load %arg19[%c0_98, %c2_99] : memref<2x8xf32, #tpu.memory_space<smem>>
    %c1_100 = arith.constant 1 : index
    %c2_101 = arith.constant 2 : index
    %315 = memref.load %arg19[%c1_100, %c2_101] : memref<2x8xf32, #tpu.memory_space<smem>>
    %c0_102 = arith.constant 0 : index
    %c3 = arith.constant 3 : index
    %316 = memref.load %arg17[%c0_102, %c3] : memref<2x9xi32, #tpu.memory_space<smem>>
    %c1_103 = arith.constant 1 : index
    %c3_104 = arith.constant 3 : index
    %317 = memref.load %arg17[%c1_103, %c3_104] : memref<2x9xi32, #tpu.memory_space<smem>>
    %c0_105 = arith.constant 0 : index
    %c2_106 = arith.constant 2 : index
    %318 = memref.load %arg17[%c0_105, %c2_106] : memref<2x9xi32, #tpu.memory_space<smem>>
    %c1_107 = arith.constant 1 : index
    %c2_108 = arith.constant 2 : index
    %319 = memref.load %arg17[%c1_107, %c2_108] : memref<2x9xi32, #tpu.memory_space<smem>>
    %320 = vector.broadcast %314 : f32 to vector<2x1xf32>
    %c1_i32_109 = arith.constant 1 : i32
    %321 = vector.broadcast %c1_i32_109 : i32 to vector<2x1xi32>
    %322 = arith.cmpi eq, %182, %321 : vector<2x1xi32>
    %323 = vector.broadcast %315 : f32 to vector<2x1xf32>
    %324 = arith.select %322, %323, %320 : vector<2x1xi1>, vector<2x1xf32>
    %325 = vector.broadcast %316 : i32 to vector<2x1xi32>
    %c1_i32_110 = arith.constant 1 : i32
    %326 = vector.broadcast %c1_i32_110 : i32 to vector<2x1xi32>
    %327 = arith.cmpi eq, %182, %326 : vector<2x1xi32>
    %328 = vector.broadcast %317 : i32 to vector<2x1xi32>
    %329 = arith.select %327, %328, %325 : vector<2x1xi1>, vector<2x1xi32>
    %330 = vector.shape_cast %288 : vector<2x8xf32> to vector<2x8x1xf32>
    %331 = vector.shape_cast %180 : vector<8x8xf32> to vector<1x8x8xf32>
    %332 = vector.broadcast %330 : vector<2x8x1xf32> to vector<2x8x8xf32>
    %333 = vector.broadcast %331 : vector<1x8x8xf32> to vector<2x8x8xf32>
    %334 = arith.addf %332, %333 : vector<2x8x8xf32>
    %cst_111 = arith.constant dense<0xFF800000> : vector<2x8xf32>
    %335 = vector.multi_reduction <maximumf>, %334, %cst_111 [1] : vector<2x8x8xf32> to vector<2x8xf32>
    %336 = vector.shape_cast %335 : vector<2x8xf32> to vector<2x1x8xf32>
    %337 = vector.broadcast %336 : vector<2x1x8xf32> to vector<2x8x8xf32>
    %338 = arith.subf %334, %337 : vector<2x8x8xf32>
    %339 = math.exp %338 : vector<2x8x8xf32>
    %cst_112 = arith.constant dense<0.000000e+00> : vector<2x8xf32>
    %340 = vector.multi_reduction <add>, %339, %cst_112 [1] : vector<2x8x8xf32> to vector<2x8xf32>
    %341 = math.log %340 : vector<2x8xf32>
    %342 = arith.addf %335, %341 : vector<2x8xf32>
    %343 = arith.addf %313, %342 : vector<2x8xf32>
    %344 = vector.broadcast %324 : vector<2x1xf32> to vector<2x8xf32>
    %345 = arith.mulf %344, %343 : vector<2x8xf32>
    %cst_113 = arith.constant 1.000000e+00 : f32
    %346 = vector.broadcast %cst_113 : f32 to vector<2x1xf32>
    %347 = arith.subf %346, %324 : vector<2x1xf32>
    %348 = vector.broadcast %347 : vector<2x1xf32> to vector<2x8xf32>
    %349 = arith.mulf %348, %288 : vector<2x8xf32>
    %350 = arith.addf %345, %349 : vector<2x8xf32>
    %351 = vector.broadcast %329 : vector<2x1xi32> to vector<2x8xi32>
    %352 = arith.cmpi eq, %181, %351 : vector<2x8xi32>
    %cst_114 = arith.constant 0.000000e+00 : f32
    %353 = vector.broadcast %cst_114 : f32 to vector<2x8xf32>
    %354 = arith.select %352, %313, %353 : vector<2x8xi1>, vector<2x8xf32>
    %cst_115 = arith.constant dense<0.000000e+00> : vector<2xf32>
    %355 = vector.multi_reduction <add>, %354, %cst_115 [1] : vector<2x8xf32> to vector<2xf32>
    %356 = vector.shape_cast %355 : vector<2xf32> to vector<2x1xf32>
    %357 = arith.index_cast %316 : i32 to index
    %358 = arith.index_cast %318 : i32 to index
    %359 = memref.load %arg15[%357, %358] : memref<8x8xf32, #tpu.memory_space<smem>>
    %360 = arith.index_cast %317 : i32 to index
    %361 = arith.index_cast %319 : i32 to index
    %362 = memref.load %arg15[%360, %361] : memref<8x8xf32, #tpu.memory_space<smem>>
    %363 = vector.broadcast %359 : f32 to vector<2x1xf32>
    %c1_i32_116 = arith.constant 1 : i32
    %364 = vector.broadcast %c1_i32_116 : i32 to vector<2x1xi32>
    %365 = arith.cmpi eq, %182, %364 : vector<2x1xi32>
    %366 = vector.broadcast %362 : f32 to vector<2x1xf32>
    %367 = arith.select %365, %366, %363 : vector<2x1xi1>, vector<2x1xf32>
    %368 = arith.addf %356, %367 : vector<2x1xf32>
    %369 = arith.mulf %368, %324 : vector<2x1xf32>
    %370 = arith.addf %308, %369 : vector<2x1xf32>
    %371 = arith.fptosi %314 : f32 to i32
    %372 = arith.addi %310, %371 : i32
    %373 = arith.fptosi %315 : f32 to i32
    %374 = arith.addi %312, %373 : i32
    %375 = vector.extract_strided_slice %174 {offsets = [6, 0], sizes = [2, 8], strides = [1, 1]} : vector<16x8xf32> to vector<2x8xf32>
    %c0_117 = arith.constant 0 : index
    %c3_118 = arith.constant 3 : index
    %376 = memref.load %arg19[%c0_117, %c3_118] : memref<2x8xf32, #tpu.memory_space<smem>>
    %c1_119 = arith.constant 1 : index
    %c3_120 = arith.constant 3 : index
    %377 = memref.load %arg19[%c1_119, %c3_120] : memref<2x8xf32, #tpu.memory_space<smem>>
    %c0_121 = arith.constant 0 : index
    %c4_122 = arith.constant 4 : index
    %378 = memref.load %arg17[%c0_121, %c4_122] : memref<2x9xi32, #tpu.memory_space<smem>>
    %c1_123 = arith.constant 1 : index
    %c4_124 = arith.constant 4 : index
    %379 = memref.load %arg17[%c1_123, %c4_124] : memref<2x9xi32, #tpu.memory_space<smem>>
    %c0_125 = arith.constant 0 : index
    %c3_126 = arith.constant 3 : index
    %380 = memref.load %arg17[%c0_125, %c3_126] : memref<2x9xi32, #tpu.memory_space<smem>>
    %c1_127 = arith.constant 1 : index
    %c3_128 = arith.constant 3 : index
    %381 = memref.load %arg17[%c1_127, %c3_128] : memref<2x9xi32, #tpu.memory_space<smem>>
    %382 = vector.broadcast %376 : f32 to vector<2x1xf32>
    %c1_i32_129 = arith.constant 1 : i32
    %383 = vector.broadcast %c1_i32_129 : i32 to vector<2x1xi32>
    %384 = arith.cmpi eq, %182, %383 : vector<2x1xi32>
    %385 = vector.broadcast %377 : f32 to vector<2x1xf32>
    %386 = arith.select %384, %385, %382 : vector<2x1xi1>, vector<2x1xf32>
    %387 = vector.broadcast %378 : i32 to vector<2x1xi32>
    %c1_i32_130 = arith.constant 1 : i32
    %388 = vector.broadcast %c1_i32_130 : i32 to vector<2x1xi32>
    %389 = arith.cmpi eq, %182, %388 : vector<2x1xi32>
    %390 = vector.broadcast %379 : i32 to vector<2x1xi32>
    %391 = arith.select %389, %390, %387 : vector<2x1xi1>, vector<2x1xi32>
    %392 = vector.shape_cast %350 : vector<2x8xf32> to vector<2x8x1xf32>
    %393 = vector.shape_cast %180 : vector<8x8xf32> to vector<1x8x8xf32>
    %394 = vector.broadcast %392 : vector<2x8x1xf32> to vector<2x8x8xf32>
    %395 = vector.broadcast %393 : vector<1x8x8xf32> to vector<2x8x8xf32>
    %396 = arith.addf %394, %395 : vector<2x8x8xf32>
    %cst_131 = arith.constant dense<0xFF800000> : vector<2x8xf32>
    %397 = vector.multi_reduction <maximumf>, %396, %cst_131 [1] : vector<2x8x8xf32> to vector<2x8xf32>
    %398 = vector.shape_cast %397 : vector<2x8xf32> to vector<2x1x8xf32>
    %399 = vector.broadcast %398 : vector<2x1x8xf32> to vector<2x8x8xf32>
    %400 = arith.subf %396, %399 : vector<2x8x8xf32>
    %401 = math.exp %400 : vector<2x8x8xf32>
    %cst_132 = arith.constant dense<0.000000e+00> : vector<2x8xf32>
    %402 = vector.multi_reduction <add>, %401, %cst_132 [1] : vector<2x8x8xf32> to vector<2x8xf32>
    %403 = math.log %402 : vector<2x8xf32>
    %404 = arith.addf %397, %403 : vector<2x8xf32>
    %405 = arith.addf %375, %404 : vector<2x8xf32>
    %406 = vector.broadcast %386 : vector<2x1xf32> to vector<2x8xf32>
    %407 = arith.mulf %406, %405 : vector<2x8xf32>
    %cst_133 = arith.constant 1.000000e+00 : f32
    %408 = vector.broadcast %cst_133 : f32 to vector<2x1xf32>
    %409 = arith.subf %408, %386 : vector<2x1xf32>
    %410 = vector.broadcast %409 : vector<2x1xf32> to vector<2x8xf32>
    %411 = arith.mulf %410, %350 : vector<2x8xf32>
    %412 = arith.addf %407, %411 : vector<2x8xf32>
    %413 = vector.broadcast %391 : vector<2x1xi32> to vector<2x8xi32>
    %414 = arith.cmpi eq, %181, %413 : vector<2x8xi32>
    %cst_134 = arith.constant 0.000000e+00 : f32
    %415 = vector.broadcast %cst_134 : f32 to vector<2x8xf32>
    %416 = arith.select %414, %375, %415 : vector<2x8xi1>, vector<2x8xf32>
    %cst_135 = arith.constant dense<0.000000e+00> : vector<2xf32>
    %417 = vector.multi_reduction <add>, %416, %cst_135 [1] : vector<2x8xf32> to vector<2xf32>
    %418 = vector.shape_cast %417 : vector<2xf32> to vector<2x1xf32>
    %419 = arith.index_cast %378 : i32 to index
    %420 = arith.index_cast %380 : i32 to index
    %421 = memref.load %arg15[%419, %420] : memref<8x8xf32, #tpu.memory_space<smem>>
    %422 = arith.index_cast %379 : i32 to index
    %423 = arith.index_cast %381 : i32 to index
    %424 = memref.load %arg15[%422, %423] : memref<8x8xf32, #tpu.memory_space<smem>>
    %425 = vector.broadcast %421 : f32 to vector<2x1xf32>
    %c1_i32_136 = arith.constant 1 : i32
    %426 = vector.broadcast %c1_i32_136 : i32 to vector<2x1xi32>
    %427 = arith.cmpi eq, %182, %426 : vector<2x1xi32>
    %428 = vector.broadcast %424 : f32 to vector<2x1xf32>
    %429 = arith.select %427, %428, %425 : vector<2x1xi1>, vector<2x1xf32>
    %430 = arith.addf %418, %429 : vector<2x1xf32>
    %431 = arith.mulf %430, %386 : vector<2x1xf32>
    %432 = arith.addf %370, %431 : vector<2x1xf32>
    %433 = arith.fptosi %376 : f32 to i32
    %434 = arith.addi %372, %433 : i32
    %435 = arith.fptosi %377 : f32 to i32
    %436 = arith.addi %374, %435 : i32
    %437 = vector.extract_strided_slice %174 {offsets = [8, 0], sizes = [2, 8], strides = [1, 1]} : vector<16x8xf32> to vector<2x8xf32>
    %c0_137 = arith.constant 0 : index
    %c4_138 = arith.constant 4 : index
    %438 = memref.load %arg19[%c0_137, %c4_138] : memref<2x8xf32, #tpu.memory_space<smem>>
    %c1_139 = arith.constant 1 : index
    %c4_140 = arith.constant 4 : index
    %439 = memref.load %arg19[%c1_139, %c4_140] : memref<2x8xf32, #tpu.memory_space<smem>>
    %c0_141 = arith.constant 0 : index
    %c5 = arith.constant 5 : index
    %440 = memref.load %arg17[%c0_141, %c5] : memref<2x9xi32, #tpu.memory_space<smem>>
    %c1_142 = arith.constant 1 : index
    %c5_143 = arith.constant 5 : index
    %441 = memref.load %arg17[%c1_142, %c5_143] : memref<2x9xi32, #tpu.memory_space<smem>>
    %c0_144 = arith.constant 0 : index
    %c4_145 = arith.constant 4 : index
    %442 = memref.load %arg17[%c0_144, %c4_145] : memref<2x9xi32, #tpu.memory_space<smem>>
    %c1_146 = arith.constant 1 : index
    %c4_147 = arith.constant 4 : index
    %443 = memref.load %arg17[%c1_146, %c4_147] : memref<2x9xi32, #tpu.memory_space<smem>>
    %444 = vector.broadcast %438 : f32 to vector<2x1xf32>
    %c1_i32_148 = arith.constant 1 : i32
    %445 = vector.broadcast %c1_i32_148 : i32 to vector<2x1xi32>
    %446 = arith.cmpi eq, %182, %445 : vector<2x1xi32>
    %447 = vector.broadcast %439 : f32 to vector<2x1xf32>
    %448 = arith.select %446, %447, %444 : vector<2x1xi1>, vector<2x1xf32>
    %449 = vector.broadcast %440 : i32 to vector<2x1xi32>
    %c1_i32_149 = arith.constant 1 : i32
    %450 = vector.broadcast %c1_i32_149 : i32 to vector<2x1xi32>
    %451 = arith.cmpi eq, %182, %450 : vector<2x1xi32>
    %452 = vector.broadcast %441 : i32 to vector<2x1xi32>
    %453 = arith.select %451, %452, %449 : vector<2x1xi1>, vector<2x1xi32>
    %454 = vector.shape_cast %412 : vector<2x8xf32> to vector<2x8x1xf32>
    %455 = vector.shape_cast %180 : vector<8x8xf32> to vector<1x8x8xf32>
    %456 = vector.broadcast %454 : vector<2x8x1xf32> to vector<2x8x8xf32>
    %457 = vector.broadcast %455 : vector<1x8x8xf32> to vector<2x8x8xf32>
    %458 = arith.addf %456, %457 : vector<2x8x8xf32>
    %cst_150 = arith.constant dense<0xFF800000> : vector<2x8xf32>
    %459 = vector.multi_reduction <maximumf>, %458, %cst_150 [1] : vector<2x8x8xf32> to vector<2x8xf32>
    %460 = vector.shape_cast %459 : vector<2x8xf32> to vector<2x1x8xf32>
    %461 = vector.broadcast %460 : vector<2x1x8xf32> to vector<2x8x8xf32>
    %462 = arith.subf %458, %461 : vector<2x8x8xf32>
    %463 = math.exp %462 : vector<2x8x8xf32>
    %cst_151 = arith.constant dense<0.000000e+00> : vector<2x8xf32>
    %464 = vector.multi_reduction <add>, %463, %cst_151 [1] : vector<2x8x8xf32> to vector<2x8xf32>
    %465 = math.log %464 : vector<2x8xf32>
    %466 = arith.addf %459, %465 : vector<2x8xf32>
    %467 = arith.addf %437, %466 : vector<2x8xf32>
    %468 = vector.broadcast %448 : vector<2x1xf32> to vector<2x8xf32>
    %469 = arith.mulf %468, %467 : vector<2x8xf32>
    %cst_152 = arith.constant 1.000000e+00 : f32
    %470 = vector.broadcast %cst_152 : f32 to vector<2x1xf32>
    %471 = arith.subf %470, %448 : vector<2x1xf32>
    %472 = vector.broadcast %471 : vector<2x1xf32> to vector<2x8xf32>
    %473 = arith.mulf %472, %412 : vector<2x8xf32>
    %474 = arith.addf %469, %473 : vector<2x8xf32>
    %475 = vector.broadcast %453 : vector<2x1xi32> to vector<2x8xi32>
    %476 = arith.cmpi eq, %181, %475 : vector<2x8xi32>
    %cst_153 = arith.constant 0.000000e+00 : f32
    %477 = vector.broadcast %cst_153 : f32 to vector<2x8xf32>
    %478 = arith.select %476, %437, %477 : vector<2x8xi1>, vector<2x8xf32>
    %cst_154 = arith.constant dense<0.000000e+00> : vector<2xf32>
    %479 = vector.multi_reduction <add>, %478, %cst_154 [1] : vector<2x8xf32> to vector<2xf32>
    %480 = vector.shape_cast %479 : vector<2xf32> to vector<2x1xf32>
    %481 = arith.index_cast %440 : i32 to index
    %482 = arith.index_cast %442 : i32 to index
    %483 = memref.load %arg15[%481, %482] : memref<8x8xf32, #tpu.memory_space<smem>>
    %484 = arith.index_cast %441 : i32 to index
    %485 = arith.index_cast %443 : i32 to index
    %486 = memref.load %arg15[%484, %485] : memref<8x8xf32, #tpu.memory_space<smem>>
    %487 = vector.broadcast %483 : f32 to vector<2x1xf32>
    %c1_i32_155 = arith.constant 1 : i32
    %488 = vector.broadcast %c1_i32_155 : i32 to vector<2x1xi32>
    %489 = arith.cmpi eq, %182, %488 : vector<2x1xi32>
    %490 = vector.broadcast %486 : f32 to vector<2x1xf32>
    %491 = arith.select %489, %490, %487 : vector<2x1xi1>, vector<2x1xf32>
    %492 = arith.addf %480, %491 : vector<2x1xf32>
    %493 = arith.mulf %492, %448 : vector<2x1xf32>
    %494 = arith.addf %432, %493 : vector<2x1xf32>
    %495 = arith.fptosi %438 : f32 to i32
    %496 = arith.addi %434, %495 : i32
    %497 = arith.fptosi %439 : f32 to i32
    %498 = arith.addi %436, %497 : i32
    %499 = vector.extract_strided_slice %174 {offsets = [10, 0], sizes = [2, 8], strides = [1, 1]} : vector<16x8xf32> to vector<2x8xf32>
    %c0_156 = arith.constant 0 : index
    %c5_157 = arith.constant 5 : index
    %500 = memref.load %arg19[%c0_156, %c5_157] : memref<2x8xf32, #tpu.memory_space<smem>>
    %c1_158 = arith.constant 1 : index
    %c5_159 = arith.constant 5 : index
    %501 = memref.load %arg19[%c1_158, %c5_159] : memref<2x8xf32, #tpu.memory_space<smem>>
    %c0_160 = arith.constant 0 : index
    %c6_161 = arith.constant 6 : index
    %502 = memref.load %arg17[%c0_160, %c6_161] : memref<2x9xi32, #tpu.memory_space<smem>>
    %c1_162 = arith.constant 1 : index
    %c6_163 = arith.constant 6 : index
    %503 = memref.load %arg17[%c1_162, %c6_163] : memref<2x9xi32, #tpu.memory_space<smem>>
    %c0_164 = arith.constant 0 : index
    %c5_165 = arith.constant 5 : index
    %504 = memref.load %arg17[%c0_164, %c5_165] : memref<2x9xi32, #tpu.memory_space<smem>>
    %c1_166 = arith.constant 1 : index
    %c5_167 = arith.constant 5 : index
    %505 = memref.load %arg17[%c1_166, %c5_167] : memref<2x9xi32, #tpu.memory_space<smem>>
    %506 = vector.broadcast %500 : f32 to vector<2x1xf32>
    %c1_i32_168 = arith.constant 1 : i32
    %507 = vector.broadcast %c1_i32_168 : i32 to vector<2x1xi32>
    %508 = arith.cmpi eq, %182, %507 : vector<2x1xi32>
    %509 = vector.broadcast %501 : f32 to vector<2x1xf32>
    %510 = arith.select %508, %509, %506 : vector<2x1xi1>, vector<2x1xf32>
    %511 = vector.broadcast %502 : i32 to vector<2x1xi32>
    %c1_i32_169 = arith.constant 1 : i32
    %512 = vector.broadcast %c1_i32_169 : i32 to vector<2x1xi32>
    %513 = arith.cmpi eq, %182, %512 : vector<2x1xi32>
    %514 = vector.broadcast %503 : i32 to vector<2x1xi32>
    %515 = arith.select %513, %514, %511 : vector<2x1xi1>, vector<2x1xi32>
    %516 = vector.shape_cast %474 : vector<2x8xf32> to vector<2x8x1xf32>
    %517 = vector.shape_cast %180 : vector<8x8xf32> to vector<1x8x8xf32>
    %518 = vector.broadcast %516 : vector<2x8x1xf32> to vector<2x8x8xf32>
    %519 = vector.broadcast %517 : vector<1x8x8xf32> to vector<2x8x8xf32>
    %520 = arith.addf %518, %519 : vector<2x8x8xf32>
    %cst_170 = arith.constant dense<0xFF800000> : vector<2x8xf32>
    %521 = vector.multi_reduction <maximumf>, %520, %cst_170 [1] : vector<2x8x8xf32> to vector<2x8xf32>
    %522 = vector.shape_cast %521 : vector<2x8xf32> to vector<2x1x8xf32>
    %523 = vector.broadcast %522 : vector<2x1x8xf32> to vector<2x8x8xf32>
    %524 = arith.subf %520, %523 : vector<2x8x8xf32>
    %525 = math.exp %524 : vector<2x8x8xf32>
    %cst_171 = arith.constant dense<0.000000e+00> : vector<2x8xf32>
    %526 = vector.multi_reduction <add>, %525, %cst_171 [1] : vector<2x8x8xf32> to vector<2x8xf32>
    %527 = math.log %526 : vector<2x8xf32>
    %528 = arith.addf %521, %527 : vector<2x8xf32>
    %529 = arith.addf %499, %528 : vector<2x8xf32>
    %530 = vector.broadcast %510 : vector<2x1xf32> to vector<2x8xf32>
    %531 = arith.mulf %530, %529 : vector<2x8xf32>
    %cst_172 = arith.constant 1.000000e+00 : f32
    %532 = vector.broadcast %cst_172 : f32 to vector<2x1xf32>
    %533 = arith.subf %532, %510 : vector<2x1xf32>
    %534 = vector.broadcast %533 : vector<2x1xf32> to vector<2x8xf32>
    %535 = arith.mulf %534, %474 : vector<2x8xf32>
    %536 = arith.addf %531, %535 : vector<2x8xf32>
    %537 = vector.broadcast %515 : vector<2x1xi32> to vector<2x8xi32>
    %538 = arith.cmpi eq, %181, %537 : vector<2x8xi32>
    %cst_173 = arith.constant 0.000000e+00 : f32
    %539 = vector.broadcast %cst_173 : f32 to vector<2x8xf32>
    %540 = arith.select %538, %499, %539 : vector<2x8xi1>, vector<2x8xf32>
    %cst_174 = arith.constant dense<0.000000e+00> : vector<2xf32>
    %541 = vector.multi_reduction <add>, %540, %cst_174 [1] : vector<2x8xf32> to vector<2xf32>
    %542 = vector.shape_cast %541 : vector<2xf32> to vector<2x1xf32>
    %543 = arith.index_cast %502 : i32 to index
    %544 = arith.index_cast %504 : i32 to index
    %545 = memref.load %arg15[%543, %544] : memref<8x8xf32, #tpu.memory_space<smem>>
    %546 = arith.index_cast %503 : i32 to index
    %547 = arith.index_cast %505 : i32 to index
    %548 = memref.load %arg15[%546, %547] : memref<8x8xf32, #tpu.memory_space<smem>>
    %549 = vector.broadcast %545 : f32 to vector<2x1xf32>
    %c1_i32_175 = arith.constant 1 : i32
    %550 = vector.broadcast %c1_i32_175 : i32 to vector<2x1xi32>
    %551 = arith.cmpi eq, %182, %550 : vector<2x1xi32>
    %552 = vector.broadcast %548 : f32 to vector<2x1xf32>
    %553 = arith.select %551, %552, %549 : vector<2x1xi1>, vector<2x1xf32>
    %554 = arith.addf %542, %553 : vector<2x1xf32>
    %555 = arith.mulf %554, %510 : vector<2x1xf32>
    %556 = arith.addf %494, %555 : vector<2x1xf32>
    %557 = arith.fptosi %500 : f32 to i32
    %558 = arith.addi %496, %557 : i32
    %559 = arith.fptosi %501 : f32 to i32
    %560 = arith.addi %498, %559 : i32
    %561 = vector.extract_strided_slice %174 {offsets = [12, 0], sizes = [2, 8], strides = [1, 1]} : vector<16x8xf32> to vector<2x8xf32>
    %c0_176 = arith.constant 0 : index
    %c6_177 = arith.constant 6 : index
    %562 = memref.load %arg19[%c0_176, %c6_177] : memref<2x8xf32, #tpu.memory_space<smem>>
    %c1_178 = arith.constant 1 : index
    %c6_179 = arith.constant 6 : index
    %563 = memref.load %arg19[%c1_178, %c6_179] : memref<2x8xf32, #tpu.memory_space<smem>>
    %c0_180 = arith.constant 0 : index
    %c7 = arith.constant 7 : index
    %564 = memref.load %arg17[%c0_180, %c7] : memref<2x9xi32, #tpu.memory_space<smem>>
    %c1_181 = arith.constant 1 : index
    %c7_182 = arith.constant 7 : index
    %565 = memref.load %arg17[%c1_181, %c7_182] : memref<2x9xi32, #tpu.memory_space<smem>>
    %c0_183 = arith.constant 0 : index
    %c6_184 = arith.constant 6 : index
    %566 = memref.load %arg17[%c0_183, %c6_184] : memref<2x9xi32, #tpu.memory_space<smem>>
    %c1_185 = arith.constant 1 : index
    %c6_186 = arith.constant 6 : index
    %567 = memref.load %arg17[%c1_185, %c6_186] : memref<2x9xi32, #tpu.memory_space<smem>>
    %568 = vector.broadcast %562 : f32 to vector<2x1xf32>
    %c1_i32_187 = arith.constant 1 : i32
    %569 = vector.broadcast %c1_i32_187 : i32 to vector<2x1xi32>
    %570 = arith.cmpi eq, %182, %569 : vector<2x1xi32>
    %571 = vector.broadcast %563 : f32 to vector<2x1xf32>
    %572 = arith.select %570, %571, %568 : vector<2x1xi1>, vector<2x1xf32>
    %573 = vector.broadcast %564 : i32 to vector<2x1xi32>
    %c1_i32_188 = arith.constant 1 : i32
    %574 = vector.broadcast %c1_i32_188 : i32 to vector<2x1xi32>
    %575 = arith.cmpi eq, %182, %574 : vector<2x1xi32>
    %576 = vector.broadcast %565 : i32 to vector<2x1xi32>
    %577 = arith.select %575, %576, %573 : vector<2x1xi1>, vector<2x1xi32>
    %578 = vector.shape_cast %536 : vector<2x8xf32> to vector<2x8x1xf32>
    %579 = vector.shape_cast %180 : vector<8x8xf32> to vector<1x8x8xf32>
    %580 = vector.broadcast %578 : vector<2x8x1xf32> to vector<2x8x8xf32>
    %581 = vector.broadcast %579 : vector<1x8x8xf32> to vector<2x8x8xf32>
    %582 = arith.addf %580, %581 : vector<2x8x8xf32>
    %cst_189 = arith.constant dense<0xFF800000> : vector<2x8xf32>
    %583 = vector.multi_reduction <maximumf>, %582, %cst_189 [1] : vector<2x8x8xf32> to vector<2x8xf32>
    %584 = vector.shape_cast %583 : vector<2x8xf32> to vector<2x1x8xf32>
    %585 = vector.broadcast %584 : vector<2x1x8xf32> to vector<2x8x8xf32>
    %586 = arith.subf %582, %585 : vector<2x8x8xf32>
    %587 = math.exp %586 : vector<2x8x8xf32>
    %cst_190 = arith.constant dense<0.000000e+00> : vector<2x8xf32>
    %588 = vector.multi_reduction <add>, %587, %cst_190 [1] : vector<2x8x8xf32> to vector<2x8xf32>
    %589 = math.log %588 : vector<2x8xf32>
    %590 = arith.addf %583, %589 : vector<2x8xf32>
    %591 = arith.addf %561, %590 : vector<2x8xf32>
    %592 = vector.broadcast %572 : vector<2x1xf32> to vector<2x8xf32>
    %593 = arith.mulf %592, %591 : vector<2x8xf32>
    %cst_191 = arith.constant 1.000000e+00 : f32
    %594 = vector.broadcast %cst_191 : f32 to vector<2x1xf32>
    %595 = arith.subf %594, %572 : vector<2x1xf32>
    %596 = vector.broadcast %595 : vector<2x1xf32> to vector<2x8xf32>
    %597 = arith.mulf %596, %536 : vector<2x8xf32>
    %598 = arith.addf %593, %597 : vector<2x8xf32>
    %599 = vector.broadcast %577 : vector<2x1xi32> to vector<2x8xi32>
    %600 = arith.cmpi eq, %181, %599 : vector<2x8xi32>
    %cst_192 = arith.constant 0.000000e+00 : f32
    %601 = vector.broadcast %cst_192 : f32 to vector<2x8xf32>
    %602 = arith.select %600, %561, %601 : vector<2x8xi1>, vector<2x8xf32>
    %cst_193 = arith.constant dense<0.000000e+00> : vector<2xf32>
    %603 = vector.multi_reduction <add>, %602, %cst_193 [1] : vector<2x8xf32> to vector<2xf32>
    %604 = vector.shape_cast %603 : vector<2xf32> to vector<2x1xf32>
    %605 = arith.index_cast %564 : i32 to index
    %606 = arith.index_cast %566 : i32 to index
    %607 = memref.load %arg15[%605, %606] : memref<8x8xf32, #tpu.memory_space<smem>>
    %608 = arith.index_cast %565 : i32 to index
    %609 = arith.index_cast %567 : i32 to index
    %610 = memref.load %arg15[%608, %609] : memref<8x8xf32, #tpu.memory_space<smem>>
    %611 = vector.broadcast %607 : f32 to vector<2x1xf32>
    %c1_i32_194 = arith.constant 1 : i32
    %612 = vector.broadcast %c1_i32_194 : i32 to vector<2x1xi32>
    %613 = arith.cmpi eq, %182, %612 : vector<2x1xi32>
    %614 = vector.broadcast %610 : f32 to vector<2x1xf32>
    %615 = arith.select %613, %614, %611 : vector<2x1xi1>, vector<2x1xf32>
    %616 = arith.addf %604, %615 : vector<2x1xf32>
    %617 = arith.mulf %616, %572 : vector<2x1xf32>
    %618 = arith.addf %556, %617 : vector<2x1xf32>
    %619 = arith.fptosi %562 : f32 to i32
    %620 = arith.addi %558, %619 : i32
    %621 = arith.fptosi %563 : f32 to i32
    %622 = arith.addi %560, %621 : i32
    %623 = vector.extract_strided_slice %174 {offsets = [14, 0], sizes = [2, 8], strides = [1, 1]} : vector<16x8xf32> to vector<2x8xf32>
    %c0_195 = arith.constant 0 : index
    %c7_196 = arith.constant 7 : index
    %624 = memref.load %arg19[%c0_195, %c7_196] : memref<2x8xf32, #tpu.memory_space<smem>>
    %c1_197 = arith.constant 1 : index
    %c7_198 = arith.constant 7 : index
    %625 = memref.load %arg19[%c1_197, %c7_198] : memref<2x8xf32, #tpu.memory_space<smem>>
    %c0_199 = arith.constant 0 : index
    %c8_200 = arith.constant 8 : index
    %626 = memref.load %arg17[%c0_199, %c8_200] : memref<2x9xi32, #tpu.memory_space<smem>>
    %c1_201 = arith.constant 1 : index
    %c8_202 = arith.constant 8 : index
    %627 = memref.load %arg17[%c1_201, %c8_202] : memref<2x9xi32, #tpu.memory_space<smem>>
    %c0_203 = arith.constant 0 : index
    %c7_204 = arith.constant 7 : index
    %628 = memref.load %arg17[%c0_203, %c7_204] : memref<2x9xi32, #tpu.memory_space<smem>>
    %c1_205 = arith.constant 1 : index
    %c7_206 = arith.constant 7 : index
    %629 = memref.load %arg17[%c1_205, %c7_206] : memref<2x9xi32, #tpu.memory_space<smem>>
    %630 = vector.broadcast %624 : f32 to vector<2x1xf32>
    %c1_i32_207 = arith.constant 1 : i32
    %631 = vector.broadcast %c1_i32_207 : i32 to vector<2x1xi32>
    %632 = arith.cmpi eq, %182, %631 : vector<2x1xi32>
    %633 = vector.broadcast %625 : f32 to vector<2x1xf32>
    %634 = arith.select %632, %633, %630 : vector<2x1xi1>, vector<2x1xf32>
    %635 = vector.broadcast %626 : i32 to vector<2x1xi32>
    %c1_i32_208 = arith.constant 1 : i32
    %636 = vector.broadcast %c1_i32_208 : i32 to vector<2x1xi32>
    %637 = arith.cmpi eq, %182, %636 : vector<2x1xi32>
    %638 = vector.broadcast %627 : i32 to vector<2x1xi32>
    %639 = arith.select %637, %638, %635 : vector<2x1xi1>, vector<2x1xi32>
    %640 = vector.shape_cast %598 : vector<2x8xf32> to vector<2x8x1xf32>
    %641 = vector.shape_cast %180 : vector<8x8xf32> to vector<1x8x8xf32>
    %642 = vector.broadcast %640 : vector<2x8x1xf32> to vector<2x8x8xf32>
    %643 = vector.broadcast %641 : vector<1x8x8xf32> to vector<2x8x8xf32>
    %644 = arith.addf %642, %643 : vector<2x8x8xf32>
    %cst_209 = arith.constant dense<0xFF800000> : vector<2x8xf32>
    %645 = vector.multi_reduction <maximumf>, %644, %cst_209 [1] : vector<2x8x8xf32> to vector<2x8xf32>
    %646 = vector.shape_cast %645 : vector<2x8xf32> to vector<2x1x8xf32>
    %647 = vector.broadcast %646 : vector<2x1x8xf32> to vector<2x8x8xf32>
    %648 = arith.subf %644, %647 : vector<2x8x8xf32>
    %649 = math.exp %648 : vector<2x8x8xf32>
    %cst_210 = arith.constant dense<0.000000e+00> : vector<2x8xf32>
    %650 = vector.multi_reduction <add>, %649, %cst_210 [1] : vector<2x8x8xf32> to vector<2x8xf32>
    %651 = math.log %650 : vector<2x8xf32>
    %652 = arith.addf %645, %651 : vector<2x8xf32>
    %653 = arith.addf %623, %652 : vector<2x8xf32>
    %654 = vector.broadcast %634 : vector<2x1xf32> to vector<2x8xf32>
    %655 = arith.mulf %654, %653 : vector<2x8xf32>
    %cst_211 = arith.constant 1.000000e+00 : f32
    %656 = vector.broadcast %cst_211 : f32 to vector<2x1xf32>
    %657 = arith.subf %656, %634 : vector<2x1xf32>
    %658 = vector.broadcast %657 : vector<2x1xf32> to vector<2x8xf32>
    %659 = arith.mulf %658, %598 : vector<2x8xf32>
    %660 = arith.addf %655, %659 : vector<2x8xf32>
    %661 = vector.broadcast %639 : vector<2x1xi32> to vector<2x8xi32>
    %662 = arith.cmpi eq, %181, %661 : vector<2x8xi32>
    %cst_212 = arith.constant 0.000000e+00 : f32
    %663 = vector.broadcast %cst_212 : f32 to vector<2x8xf32>
    %664 = arith.select %662, %623, %663 : vector<2x8xi1>, vector<2x8xf32>
    %cst_213 = arith.constant dense<0.000000e+00> : vector<2xf32>
    %665 = vector.multi_reduction <add>, %664, %cst_213 [1] : vector<2x8xf32> to vector<2xf32>
    %666 = vector.shape_cast %665 : vector<2xf32> to vector<2x1xf32>
    %667 = arith.index_cast %626 : i32 to index
    %668 = arith.index_cast %628 : i32 to index
    %669 = memref.load %arg15[%667, %668] : memref<8x8xf32, #tpu.memory_space<smem>>
    %670 = arith.index_cast %627 : i32 to index
    %671 = arith.index_cast %629 : i32 to index
    %672 = memref.load %arg15[%670, %671] : memref<8x8xf32, #tpu.memory_space<smem>>
    %673 = vector.broadcast %669 : f32 to vector<2x1xf32>
    %c1_i32_214 = arith.constant 1 : i32
    %674 = vector.broadcast %c1_i32_214 : i32 to vector<2x1xi32>
    %675 = arith.cmpi eq, %182, %674 : vector<2x1xi32>
    %676 = vector.broadcast %672 : f32 to vector<2x1xf32>
    %677 = arith.select %675, %676, %673 : vector<2x1xi1>, vector<2x1xf32>
    %678 = arith.addf %666, %677 : vector<2x1xf32>
    %679 = arith.mulf %678, %634 : vector<2x1xf32>
    %680 = arith.addf %618, %679 : vector<2x1xf32>
    %681 = arith.fptosi %624 : f32 to i32
    %682 = arith.addi %620, %681 : i32
    %683 = arith.fptosi %625 : f32 to i32
    %684 = arith.addi %622, %683 : i32
    %c0_215 = arith.constant 0 : index
    %c0_216 = arith.constant 0 : index
    %685 = vector.load %arg12[%c0_215, %c0_216] : memref<1x8xf32, #tpu.memory_space<vmem>>, vector<1x8xf32>
    %686 = vector.broadcast %685 : vector<1x8xf32> to vector<2x8xf32>
    %687 = arith.addf %660, %686 : vector<2x8xf32>
    %cst_217 = arith.constant dense<0xFF800000> : vector<2xf32>
    %688 = vector.multi_reduction <maximumf>, %687, %cst_217 [1] : vector<2x8xf32> to vector<2xf32>
    %689 = vector.shape_cast %688 : vector<2xf32> to vector<2x1xf32>
    %690 = vector.broadcast %689 : vector<2x1xf32> to vector<2x8xf32>
    %691 = arith.subf %687, %690 : vector<2x8xf32>
    %692 = math.exp %691 : vector<2x8xf32>
    %cst_218 = arith.constant dense<0.000000e+00> : vector<2xf32>
    %693 = vector.multi_reduction <add>, %692, %cst_218 [1] : vector<2x8xf32> to vector<2xf32>
    %694 = vector.shape_cast %693 : vector<2xf32> to vector<2x1xf32>
    %695 = math.log %694 : vector<2x1xf32>
    %696 = arith.addf %689, %695 : vector<2x1xf32>
    %c0_219 = arith.constant 0 : index
    %697 = arith.index_cast %682 : i32 to index
    %698 = memref.load %arg17[%c0_219, %697] : memref<2x9xi32, #tpu.memory_space<smem>>
    %c2_220 = arith.constant 2 : index
    %699 = arith.index_cast %698 : i32 to index
    %700 = memref.load %arg15[%c2_220, %699] : memref<8x8xf32, #tpu.memory_space<smem>>
    %c1_221 = arith.constant 1 : index
    %701 = arith.index_cast %684 : i32 to index
    %702 = memref.load %arg17[%c1_221, %701] : memref<2x9xi32, #tpu.memory_space<smem>>
    %c2_222 = arith.constant 2 : index
    %703 = arith.index_cast %702 : i32 to index
    %704 = memref.load %arg15[%c2_222, %703] : memref<8x8xf32, #tpu.memory_space<smem>>
    %705 = vector.broadcast %700 : f32 to vector<2x1xf32>
    %c1_i32_223 = arith.constant 1 : i32
    %706 = vector.broadcast %c1_i32_223 : i32 to vector<2x1xi32>
    %707 = arith.cmpi eq, %182, %706 : vector<2x1xi32>
    %708 = vector.broadcast %704 : f32 to vector<2x1xf32>
    %709 = arith.select %707, %708, %705 : vector<2x1xi1>, vector<2x1xf32>
    %710 = arith.addf %680, %709 : vector<2x1xf32>
    %c0_224 = arith.constant 0 : index
    %c0_225 = arith.constant 0 : index
    %711 = vector.load %arg13[%c0_224, %c0_225] : memref<16x16xf32, #tpu.memory_space<vmem>>, vector<16x16xf32>
    %712 = tpu.iota {dimensions = array<i32: 1>} : vector<2x16xi32>
    %713 = tpu.iota {dimensions = array<i32: 0>} : vector<2x1xi32>
    %c1_i32_226 = arith.constant 1 : i32
    %714 = vector.broadcast %c1_i32_226 : i32 to vector<2x16xi32>
    %715 = arith.cmpi eq, %712, %714 : vector<2x16xi32>
    %cst_227 = arith.constant 0.000000e+00 : f32
    %cst_228 = arith.constant -1.000000e+04 : f32
    %716 = vector.broadcast %cst_227 : f32 to vector<2x16xf32>
    %717 = vector.broadcast %cst_228 : f32 to vector<2x16xf32>
    %718 = arith.select %715, %716, %717 : vector<2x16xi1>, vector<2x16xf32>
    %cst_229 = arith.constant 0.000000e+00 : f32
    %719 = vector.broadcast %cst_229 : f32 to vector<2x1xf32>
    %720 = vector.extract_strided_slice %179 {offsets = [0, 0], sizes = [2, 16], strides = [1, 1]} : vector<16x16xf32> to vector<2x16xf32>
    %c0_230 = arith.constant 0 : index
    %c0_231 = arith.constant 0 : index
    %721 = memref.load %arg20[%c0_230, %c0_231] : memref<2x8xf32, #tpu.memory_space<smem>>
    %c1_232 = arith.constant 1 : index
    %c0_233 = arith.constant 0 : index
    %722 = memref.load %arg20[%c1_232, %c0_233] : memref<2x8xf32, #tpu.memory_space<smem>>
    %c0_234 = arith.constant 0 : index
    %c1_235 = arith.constant 1 : index
    %723 = memref.load %arg18[%c0_234, %c1_235] : memref<2x9xi32, #tpu.memory_space<smem>>
    %c1_236 = arith.constant 1 : index
    %c1_237 = arith.constant 1 : index
    %724 = memref.load %arg18[%c1_236, %c1_237] : memref<2x9xi32, #tpu.memory_space<smem>>
    %c0_238 = arith.constant 0 : index
    %c0_239 = arith.constant 0 : index
    %725 = memref.load %arg18[%c0_238, %c0_239] : memref<2x9xi32, #tpu.memory_space<smem>>
    %c1_240 = arith.constant 1 : index
    %c0_241 = arith.constant 0 : index
    %726 = memref.load %arg18[%c1_240, %c0_241] : memref<2x9xi32, #tpu.memory_space<smem>>
    %727 = vector.broadcast %721 : f32 to vector<2x1xf32>
    %c1_i32_242 = arith.constant 1 : i32
    %728 = vector.broadcast %c1_i32_242 : i32 to vector<2x1xi32>
    %729 = arith.cmpi eq, %713, %728 : vector<2x1xi32>
    %730 = vector.broadcast %722 : f32 to vector<2x1xf32>
    %731 = arith.select %729, %730, %727 : vector<2x1xi1>, vector<2x1xf32>
    %732 = vector.broadcast %723 : i32 to vector<2x1xi32>
    %c1_i32_243 = arith.constant 1 : i32
    %733 = vector.broadcast %c1_i32_243 : i32 to vector<2x1xi32>
    %734 = arith.cmpi eq, %713, %733 : vector<2x1xi32>
    %735 = vector.broadcast %724 : i32 to vector<2x1xi32>
    %736 = arith.select %734, %735, %732 : vector<2x1xi1>, vector<2x1xi32>
    %737 = vector.shape_cast %718 : vector<2x16xf32> to vector<2x16x1xf32>
    %738 = vector.shape_cast %711 : vector<16x16xf32> to vector<1x16x16xf32>
    %739 = vector.broadcast %737 : vector<2x16x1xf32> to vector<2x16x16xf32>
    %740 = vector.broadcast %738 : vector<1x16x16xf32> to vector<2x16x16xf32>
    %741 = arith.addf %739, %740 : vector<2x16x16xf32>
    %cst_244 = arith.constant dense<0xFF800000> : vector<2x16xf32>
    %742 = vector.multi_reduction <maximumf>, %741, %cst_244 [1] : vector<2x16x16xf32> to vector<2x16xf32>
    %743 = vector.shape_cast %742 : vector<2x16xf32> to vector<2x1x16xf32>
    %744 = vector.broadcast %743 : vector<2x1x16xf32> to vector<2x16x16xf32>
    %745 = arith.subf %741, %744 : vector<2x16x16xf32>
    %746 = math.exp %745 : vector<2x16x16xf32>
    %cst_245 = arith.constant dense<0.000000e+00> : vector<2x16xf32>
    %747 = vector.multi_reduction <add>, %746, %cst_245 [1] : vector<2x16x16xf32> to vector<2x16xf32>
    %748 = math.log %747 : vector<2x16xf32>
    %749 = arith.addf %742, %748 : vector<2x16xf32>
    %750 = arith.addf %720, %749 : vector<2x16xf32>
    %751 = vector.broadcast %731 : vector<2x1xf32> to vector<2x16xf32>
    %752 = arith.mulf %751, %750 : vector<2x16xf32>
    %cst_246 = arith.constant 1.000000e+00 : f32
    %753 = vector.broadcast %cst_246 : f32 to vector<2x1xf32>
    %754 = arith.subf %753, %731 : vector<2x1xf32>
    %755 = vector.broadcast %754 : vector<2x1xf32> to vector<2x16xf32>
    %756 = arith.mulf %755, %718 : vector<2x16xf32>
    %757 = arith.addf %752, %756 : vector<2x16xf32>
    %758 = vector.broadcast %736 : vector<2x1xi32> to vector<2x16xi32>
    %759 = arith.cmpi eq, %712, %758 : vector<2x16xi32>
    %cst_247 = arith.constant 0.000000e+00 : f32
    %760 = vector.broadcast %cst_247 : f32 to vector<2x16xf32>
    %761 = arith.select %759, %720, %760 : vector<2x16xi1>, vector<2x16xf32>
    %cst_248 = arith.constant dense<0.000000e+00> : vector<2xf32>
    %762 = vector.multi_reduction <add>, %761, %cst_248 [1] : vector<2x16xf32> to vector<2xf32>
    %763 = vector.shape_cast %762 : vector<2xf32> to vector<2x1xf32>
    %764 = arith.index_cast %723 : i32 to index
    %765 = arith.index_cast %725 : i32 to index
    %766 = memref.load %arg16[%764, %765] : memref<16x16xf32, #tpu.memory_space<smem>>
    %767 = arith.index_cast %724 : i32 to index
    %768 = arith.index_cast %726 : i32 to index
    %769 = memref.load %arg16[%767, %768] : memref<16x16xf32, #tpu.memory_space<smem>>
    %770 = vector.broadcast %766 : f32 to vector<2x1xf32>
    %c1_i32_249 = arith.constant 1 : i32
    %771 = vector.broadcast %c1_i32_249 : i32 to vector<2x1xi32>
    %772 = arith.cmpi eq, %713, %771 : vector<2x1xi32>
    %773 = vector.broadcast %769 : f32 to vector<2x1xf32>
    %774 = arith.select %772, %773, %770 : vector<2x1xi1>, vector<2x1xf32>
    %775 = arith.addf %763, %774 : vector<2x1xf32>
    %776 = arith.mulf %775, %731 : vector<2x1xf32>
    %777 = arith.addf %719, %776 : vector<2x1xf32>
    %778 = arith.fptosi %721 : f32 to i32
    %c0_i32_250 = arith.constant 0 : i32
    %779 = arith.addi %c0_i32_250, %778 : i32
    %780 = arith.fptosi %722 : f32 to i32
    %c0_i32_251 = arith.constant 0 : i32
    %781 = arith.addi %c0_i32_251, %780 : i32
    %782 = vector.extract_strided_slice %179 {offsets = [2, 0], sizes = [2, 16], strides = [1, 1]} : vector<16x16xf32> to vector<2x16xf32>
    %c0_252 = arith.constant 0 : index
    %c1_253 = arith.constant 1 : index
    %783 = memref.load %arg20[%c0_252, %c1_253] : memref<2x8xf32, #tpu.memory_space<smem>>
    %c1_254 = arith.constant 1 : index
    %c1_255 = arith.constant 1 : index
    %784 = memref.load %arg20[%c1_254, %c1_255] : memref<2x8xf32, #tpu.memory_space<smem>>
    %c0_256 = arith.constant 0 : index
    %c2_257 = arith.constant 2 : index
    %785 = memref.load %arg18[%c0_256, %c2_257] : memref<2x9xi32, #tpu.memory_space<smem>>
    %c1_258 = arith.constant 1 : index
    %c2_259 = arith.constant 2 : index
    %786 = memref.load %arg18[%c1_258, %c2_259] : memref<2x9xi32, #tpu.memory_space<smem>>
    %c0_260 = arith.constant 0 : index
    %c1_261 = arith.constant 1 : index
    %787 = memref.load %arg18[%c0_260, %c1_261] : memref<2x9xi32, #tpu.memory_space<smem>>
    %c1_262 = arith.constant 1 : index
    %c1_263 = arith.constant 1 : index
    %788 = memref.load %arg18[%c1_262, %c1_263] : memref<2x9xi32, #tpu.memory_space<smem>>
    %789 = vector.broadcast %783 : f32 to vector<2x1xf32>
    %c1_i32_264 = arith.constant 1 : i32
    %790 = vector.broadcast %c1_i32_264 : i32 to vector<2x1xi32>
    %791 = arith.cmpi eq, %713, %790 : vector<2x1xi32>
    %792 = vector.broadcast %784 : f32 to vector<2x1xf32>
    %793 = arith.select %791, %792, %789 : vector<2x1xi1>, vector<2x1xf32>
    %794 = vector.broadcast %785 : i32 to vector<2x1xi32>
    %c1_i32_265 = arith.constant 1 : i32
    %795 = vector.broadcast %c1_i32_265 : i32 to vector<2x1xi32>
    %796 = arith.cmpi eq, %713, %795 : vector<2x1xi32>
    %797 = vector.broadcast %786 : i32 to vector<2x1xi32>
    %798 = arith.select %796, %797, %794 : vector<2x1xi1>, vector<2x1xi32>
    %799 = vector.shape_cast %757 : vector<2x16xf32> to vector<2x16x1xf32>
    %800 = vector.shape_cast %711 : vector<16x16xf32> to vector<1x16x16xf32>
    %801 = vector.broadcast %799 : vector<2x16x1xf32> to vector<2x16x16xf32>
    %802 = vector.broadcast %800 : vector<1x16x16xf32> to vector<2x16x16xf32>
    %803 = arith.addf %801, %802 : vector<2x16x16xf32>
    %cst_266 = arith.constant dense<0xFF800000> : vector<2x16xf32>
    %804 = vector.multi_reduction <maximumf>, %803, %cst_266 [1] : vector<2x16x16xf32> to vector<2x16xf32>
    %805 = vector.shape_cast %804 : vector<2x16xf32> to vector<2x1x16xf32>
    %806 = vector.broadcast %805 : vector<2x1x16xf32> to vector<2x16x16xf32>
    %807 = arith.subf %803, %806 : vector<2x16x16xf32>
    %808 = math.exp %807 : vector<2x16x16xf32>
    %cst_267 = arith.constant dense<0.000000e+00> : vector<2x16xf32>
    %809 = vector.multi_reduction <add>, %808, %cst_267 [1] : vector<2x16x16xf32> to vector<2x16xf32>
    %810 = math.log %809 : vector<2x16xf32>
    %811 = arith.addf %804, %810 : vector<2x16xf32>
    %812 = arith.addf %782, %811 : vector<2x16xf32>
    %813 = vector.broadcast %793 : vector<2x1xf32> to vector<2x16xf32>
    %814 = arith.mulf %813, %812 : vector<2x16xf32>
    %cst_268 = arith.constant 1.000000e+00 : f32
    %815 = vector.broadcast %cst_268 : f32 to vector<2x1xf32>
    %816 = arith.subf %815, %793 : vector<2x1xf32>
    %817 = vector.broadcast %816 : vector<2x1xf32> to vector<2x16xf32>
    %818 = arith.mulf %817, %757 : vector<2x16xf32>
    %819 = arith.addf %814, %818 : vector<2x16xf32>
    %820 = vector.broadcast %798 : vector<2x1xi32> to vector<2x16xi32>
    %821 = arith.cmpi eq, %712, %820 : vector<2x16xi32>
    %cst_269 = arith.constant 0.000000e+00 : f32
    %822 = vector.broadcast %cst_269 : f32 to vector<2x16xf32>
    %823 = arith.select %821, %782, %822 : vector<2x16xi1>, vector<2x16xf32>
    %cst_270 = arith.constant dense<0.000000e+00> : vector<2xf32>
    %824 = vector.multi_reduction <add>, %823, %cst_270 [1] : vector<2x16xf32> to vector<2xf32>
    %825 = vector.shape_cast %824 : vector<2xf32> to vector<2x1xf32>
    %826 = arith.index_cast %785 : i32 to index
    %827 = arith.index_cast %787 : i32 to index
    %828 = memref.load %arg16[%826, %827] : memref<16x16xf32, #tpu.memory_space<smem>>
    %829 = arith.index_cast %786 : i32 to index
    %830 = arith.index_cast %788 : i32 to index
    %831 = memref.load %arg16[%829, %830] : memref<16x16xf32, #tpu.memory_space<smem>>
    %832 = vector.broadcast %828 : f32 to vector<2x1xf32>
    %c1_i32_271 = arith.constant 1 : i32
    %833 = vector.broadcast %c1_i32_271 : i32 to vector<2x1xi32>
    %834 = arith.cmpi eq, %713, %833 : vector<2x1xi32>
    %835 = vector.broadcast %831 : f32 to vector<2x1xf32>
    %836 = arith.select %834, %835, %832 : vector<2x1xi1>, vector<2x1xf32>
    %837 = arith.addf %825, %836 : vector<2x1xf32>
    %838 = arith.mulf %837, %793 : vector<2x1xf32>
    %839 = arith.addf %777, %838 : vector<2x1xf32>
    %840 = arith.fptosi %783 : f32 to i32
    %841 = arith.addi %779, %840 : i32
    %842 = arith.fptosi %784 : f32 to i32
    %843 = arith.addi %781, %842 : i32
    %844 = vector.extract_strided_slice %179 {offsets = [4, 0], sizes = [2, 16], strides = [1, 1]} : vector<16x16xf32> to vector<2x16xf32>
    %c0_272 = arith.constant 0 : index
    %c2_273 = arith.constant 2 : index
    %845 = memref.load %arg20[%c0_272, %c2_273] : memref<2x8xf32, #tpu.memory_space<smem>>
    %c1_274 = arith.constant 1 : index
    %c2_275 = arith.constant 2 : index
    %846 = memref.load %arg20[%c1_274, %c2_275] : memref<2x8xf32, #tpu.memory_space<smem>>
    %c0_276 = arith.constant 0 : index
    %c3_277 = arith.constant 3 : index
    %847 = memref.load %arg18[%c0_276, %c3_277] : memref<2x9xi32, #tpu.memory_space<smem>>
    %c1_278 = arith.constant 1 : index
    %c3_279 = arith.constant 3 : index
    %848 = memref.load %arg18[%c1_278, %c3_279] : memref<2x9xi32, #tpu.memory_space<smem>>
    %c0_280 = arith.constant 0 : index
    %c2_281 = arith.constant 2 : index
    %849 = memref.load %arg18[%c0_280, %c2_281] : memref<2x9xi32, #tpu.memory_space<smem>>
    %c1_282 = arith.constant 1 : index
    %c2_283 = arith.constant 2 : index
    %850 = memref.load %arg18[%c1_282, %c2_283] : memref<2x9xi32, #tpu.memory_space<smem>>
    %851 = vector.broadcast %845 : f32 to vector<2x1xf32>
    %c1_i32_284 = arith.constant 1 : i32
    %852 = vector.broadcast %c1_i32_284 : i32 to vector<2x1xi32>
    %853 = arith.cmpi eq, %713, %852 : vector<2x1xi32>
    %854 = vector.broadcast %846 : f32 to vector<2x1xf32>
    %855 = arith.select %853, %854, %851 : vector<2x1xi1>, vector<2x1xf32>
    %856 = vector.broadcast %847 : i32 to vector<2x1xi32>
    %c1_i32_285 = arith.constant 1 : i32
    %857 = vector.broadcast %c1_i32_285 : i32 to vector<2x1xi32>
    %858 = arith.cmpi eq, %713, %857 : vector<2x1xi32>
    %859 = vector.broadcast %848 : i32 to vector<2x1xi32>
    %860 = arith.select %858, %859, %856 : vector<2x1xi1>, vector<2x1xi32>
    %861 = vector.shape_cast %819 : vector<2x16xf32> to vector<2x16x1xf32>
    %862 = vector.shape_cast %711 : vector<16x16xf32> to vector<1x16x16xf32>
    %863 = vector.broadcast %861 : vector<2x16x1xf32> to vector<2x16x16xf32>
    %864 = vector.broadcast %862 : vector<1x16x16xf32> to vector<2x16x16xf32>
    %865 = arith.addf %863, %864 : vector<2x16x16xf32>
    %cst_286 = arith.constant dense<0xFF800000> : vector<2x16xf32>
    %866 = vector.multi_reduction <maximumf>, %865, %cst_286 [1] : vector<2x16x16xf32> to vector<2x16xf32>
    %867 = vector.shape_cast %866 : vector<2x16xf32> to vector<2x1x16xf32>
    %868 = vector.broadcast %867 : vector<2x1x16xf32> to vector<2x16x16xf32>
    %869 = arith.subf %865, %868 : vector<2x16x16xf32>
    %870 = math.exp %869 : vector<2x16x16xf32>
    %cst_287 = arith.constant dense<0.000000e+00> : vector<2x16xf32>
    %871 = vector.multi_reduction <add>, %870, %cst_287 [1] : vector<2x16x16xf32> to vector<2x16xf32>
    %872 = math.log %871 : vector<2x16xf32>
    %873 = arith.addf %866, %872 : vector<2x16xf32>
    %874 = arith.addf %844, %873 : vector<2x16xf32>
    %875 = vector.broadcast %855 : vector<2x1xf32> to vector<2x16xf32>
    %876 = arith.mulf %875, %874 : vector<2x16xf32>
    %cst_288 = arith.constant 1.000000e+00 : f32
    %877 = vector.broadcast %cst_288 : f32 to vector<2x1xf32>
    %878 = arith.subf %877, %855 : vector<2x1xf32>
    %879 = vector.broadcast %878 : vector<2x1xf32> to vector<2x16xf32>
    %880 = arith.mulf %879, %819 : vector<2x16xf32>
    %881 = arith.addf %876, %880 : vector<2x16xf32>
    %882 = vector.broadcast %860 : vector<2x1xi32> to vector<2x16xi32>
    %883 = arith.cmpi eq, %712, %882 : vector<2x16xi32>
    %cst_289 = arith.constant 0.000000e+00 : f32
    %884 = vector.broadcast %cst_289 : f32 to vector<2x16xf32>
    %885 = arith.select %883, %844, %884 : vector<2x16xi1>, vector<2x16xf32>
    %cst_290 = arith.constant dense<0.000000e+00> : vector<2xf32>
    %886 = vector.multi_reduction <add>, %885, %cst_290 [1] : vector<2x16xf32> to vector<2xf32>
    %887 = vector.shape_cast %886 : vector<2xf32> to vector<2x1xf32>
    %888 = arith.index_cast %847 : i32 to index
    %889 = arith.index_cast %849 : i32 to index
    %890 = memref.load %arg16[%888, %889] : memref<16x16xf32, #tpu.memory_space<smem>>
    %891 = arith.index_cast %848 : i32 to index
    %892 = arith.index_cast %850 : i32 to index
    %893 = memref.load %arg16[%891, %892] : memref<16x16xf32, #tpu.memory_space<smem>>
    %894 = vector.broadcast %890 : f32 to vector<2x1xf32>
    %c1_i32_291 = arith.constant 1 : i32
    %895 = vector.broadcast %c1_i32_291 : i32 to vector<2x1xi32>
    %896 = arith.cmpi eq, %713, %895 : vector<2x1xi32>
    %897 = vector.broadcast %893 : f32 to vector<2x1xf32>
    %898 = arith.select %896, %897, %894 : vector<2x1xi1>, vector<2x1xf32>
    %899 = arith.addf %887, %898 : vector<2x1xf32>
    %900 = arith.mulf %899, %855 : vector<2x1xf32>
    %901 = arith.addf %839, %900 : vector<2x1xf32>
    %902 = arith.fptosi %845 : f32 to i32
    %903 = arith.addi %841, %902 : i32
    %904 = arith.fptosi %846 : f32 to i32
    %905 = arith.addi %843, %904 : i32
    %906 = vector.extract_strided_slice %179 {offsets = [6, 0], sizes = [2, 16], strides = [1, 1]} : vector<16x16xf32> to vector<2x16xf32>
    %c0_292 = arith.constant 0 : index
    %c3_293 = arith.constant 3 : index
    %907 = memref.load %arg20[%c0_292, %c3_293] : memref<2x8xf32, #tpu.memory_space<smem>>
    %c1_294 = arith.constant 1 : index
    %c3_295 = arith.constant 3 : index
    %908 = memref.load %arg20[%c1_294, %c3_295] : memref<2x8xf32, #tpu.memory_space<smem>>
    %c0_296 = arith.constant 0 : index
    %c4_297 = arith.constant 4 : index
    %909 = memref.load %arg18[%c0_296, %c4_297] : memref<2x9xi32, #tpu.memory_space<smem>>
    %c1_298 = arith.constant 1 : index
    %c4_299 = arith.constant 4 : index
    %910 = memref.load %arg18[%c1_298, %c4_299] : memref<2x9xi32, #tpu.memory_space<smem>>
    %c0_300 = arith.constant 0 : index
    %c3_301 = arith.constant 3 : index
    %911 = memref.load %arg18[%c0_300, %c3_301] : memref<2x9xi32, #tpu.memory_space<smem>>
    %c1_302 = arith.constant 1 : index
    %c3_303 = arith.constant 3 : index
    %912 = memref.load %arg18[%c1_302, %c3_303] : memref<2x9xi32, #tpu.memory_space<smem>>
    %913 = vector.broadcast %907 : f32 to vector<2x1xf32>
    %c1_i32_304 = arith.constant 1 : i32
    %914 = vector.broadcast %c1_i32_304 : i32 to vector<2x1xi32>
    %915 = arith.cmpi eq, %713, %914 : vector<2x1xi32>
    %916 = vector.broadcast %908 : f32 to vector<2x1xf32>
    %917 = arith.select %915, %916, %913 : vector<2x1xi1>, vector<2x1xf32>
    %918 = vector.broadcast %909 : i32 to vector<2x1xi32>
    %c1_i32_305 = arith.constant 1 : i32
    %919 = vector.broadcast %c1_i32_305 : i32 to vector<2x1xi32>
    %920 = arith.cmpi eq, %713, %919 : vector<2x1xi32>
    %921 = vector.broadcast %910 : i32 to vector<2x1xi32>
    %922 = arith.select %920, %921, %918 : vector<2x1xi1>, vector<2x1xi32>
    %923 = vector.shape_cast %881 : vector<2x16xf32> to vector<2x16x1xf32>
    %924 = vector.shape_cast %711 : vector<16x16xf32> to vector<1x16x16xf32>
    %925 = vector.broadcast %923 : vector<2x16x1xf32> to vector<2x16x16xf32>
    %926 = vector.broadcast %924 : vector<1x16x16xf32> to vector<2x16x16xf32>
    %927 = arith.addf %925, %926 : vector<2x16x16xf32>
    %cst_306 = arith.constant dense<0xFF800000> : vector<2x16xf32>
    %928 = vector.multi_reduction <maximumf>, %927, %cst_306 [1] : vector<2x16x16xf32> to vector<2x16xf32>
    %929 = vector.shape_cast %928 : vector<2x16xf32> to vector<2x1x16xf32>
    %930 = vector.broadcast %929 : vector<2x1x16xf32> to vector<2x16x16xf32>
    %931 = arith.subf %927, %930 : vector<2x16x16xf32>
    %932 = math.exp %931 : vector<2x16x16xf32>
    %cst_307 = arith.constant dense<0.000000e+00> : vector<2x16xf32>
    %933 = vector.multi_reduction <add>, %932, %cst_307 [1] : vector<2x16x16xf32> to vector<2x16xf32>
    %934 = math.log %933 : vector<2x16xf32>
    %935 = arith.addf %928, %934 : vector<2x16xf32>
    %936 = arith.addf %906, %935 : vector<2x16xf32>
    %937 = vector.broadcast %917 : vector<2x1xf32> to vector<2x16xf32>
    %938 = arith.mulf %937, %936 : vector<2x16xf32>
    %cst_308 = arith.constant 1.000000e+00 : f32
    %939 = vector.broadcast %cst_308 : f32 to vector<2x1xf32>
    %940 = arith.subf %939, %917 : vector<2x1xf32>
    %941 = vector.broadcast %940 : vector<2x1xf32> to vector<2x16xf32>
    %942 = arith.mulf %941, %881 : vector<2x16xf32>
    %943 = arith.addf %938, %942 : vector<2x16xf32>
    %944 = vector.broadcast %922 : vector<2x1xi32> to vector<2x16xi32>
    %945 = arith.cmpi eq, %712, %944 : vector<2x16xi32>
    %cst_309 = arith.constant 0.000000e+00 : f32
    %946 = vector.broadcast %cst_309 : f32 to vector<2x16xf32>
    %947 = arith.select %945, %906, %946 : vector<2x16xi1>, vector<2x16xf32>
    %cst_310 = arith.constant dense<0.000000e+00> : vector<2xf32>
    %948 = vector.multi_reduction <add>, %947, %cst_310 [1] : vector<2x16xf32> to vector<2xf32>
    %949 = vector.shape_cast %948 : vector<2xf32> to vector<2x1xf32>
    %950 = arith.index_cast %909 : i32 to index
    %951 = arith.index_cast %911 : i32 to index
    %952 = memref.load %arg16[%950, %951] : memref<16x16xf32, #tpu.memory_space<smem>>
    %953 = arith.index_cast %910 : i32 to index
    %954 = arith.index_cast %912 : i32 to index
    %955 = memref.load %arg16[%953, %954] : memref<16x16xf32, #tpu.memory_space<smem>>
    %956 = vector.broadcast %952 : f32 to vector<2x1xf32>
    %c1_i32_311 = arith.constant 1 : i32
    %957 = vector.broadcast %c1_i32_311 : i32 to vector<2x1xi32>
    %958 = arith.cmpi eq, %713, %957 : vector<2x1xi32>
    %959 = vector.broadcast %955 : f32 to vector<2x1xf32>
    %960 = arith.select %958, %959, %956 : vector<2x1xi1>, vector<2x1xf32>
    %961 = arith.addf %949, %960 : vector<2x1xf32>
    %962 = arith.mulf %961, %917 : vector<2x1xf32>
    %963 = arith.addf %901, %962 : vector<2x1xf32>
    %964 = arith.fptosi %907 : f32 to i32
    %965 = arith.addi %903, %964 : i32
    %966 = arith.fptosi %908 : f32 to i32
    %967 = arith.addi %905, %966 : i32
    %968 = vector.extract_strided_slice %179 {offsets = [8, 0], sizes = [2, 16], strides = [1, 1]} : vector<16x16xf32> to vector<2x16xf32>
    %c0_312 = arith.constant 0 : index
    %c4_313 = arith.constant 4 : index
    %969 = memref.load %arg20[%c0_312, %c4_313] : memref<2x8xf32, #tpu.memory_space<smem>>
    %c1_314 = arith.constant 1 : index
    %c4_315 = arith.constant 4 : index
    %970 = memref.load %arg20[%c1_314, %c4_315] : memref<2x8xf32, #tpu.memory_space<smem>>
    %c0_316 = arith.constant 0 : index
    %c5_317 = arith.constant 5 : index
    %971 = memref.load %arg18[%c0_316, %c5_317] : memref<2x9xi32, #tpu.memory_space<smem>>
    %c1_318 = arith.constant 1 : index
    %c5_319 = arith.constant 5 : index
    %972 = memref.load %arg18[%c1_318, %c5_319] : memref<2x9xi32, #tpu.memory_space<smem>>
    %c0_320 = arith.constant 0 : index
    %c4_321 = arith.constant 4 : index
    %973 = memref.load %arg18[%c0_320, %c4_321] : memref<2x9xi32, #tpu.memory_space<smem>>
    %c1_322 = arith.constant 1 : index
    %c4_323 = arith.constant 4 : index
    %974 = memref.load %arg18[%c1_322, %c4_323] : memref<2x9xi32, #tpu.memory_space<smem>>
    %975 = vector.broadcast %969 : f32 to vector<2x1xf32>
    %c1_i32_324 = arith.constant 1 : i32
    %976 = vector.broadcast %c1_i32_324 : i32 to vector<2x1xi32>
    %977 = arith.cmpi eq, %713, %976 : vector<2x1xi32>
    %978 = vector.broadcast %970 : f32 to vector<2x1xf32>
    %979 = arith.select %977, %978, %975 : vector<2x1xi1>, vector<2x1xf32>
    %980 = vector.broadcast %971 : i32 to vector<2x1xi32>
    %c1_i32_325 = arith.constant 1 : i32
    %981 = vector.broadcast %c1_i32_325 : i32 to vector<2x1xi32>
    %982 = arith.cmpi eq, %713, %981 : vector<2x1xi32>
    %983 = vector.broadcast %972 : i32 to vector<2x1xi32>
    %984 = arith.select %982, %983, %980 : vector<2x1xi1>, vector<2x1xi32>
    %985 = vector.shape_cast %943 : vector<2x16xf32> to vector<2x16x1xf32>
    %986 = vector.shape_cast %711 : vector<16x16xf32> to vector<1x16x16xf32>
    %987 = vector.broadcast %985 : vector<2x16x1xf32> to vector<2x16x16xf32>
    %988 = vector.broadcast %986 : vector<1x16x16xf32> to vector<2x16x16xf32>
    %989 = arith.addf %987, %988 : vector<2x16x16xf32>
    %cst_326 = arith.constant dense<0xFF800000> : vector<2x16xf32>
    %990 = vector.multi_reduction <maximumf>, %989, %cst_326 [1] : vector<2x16x16xf32> to vector<2x16xf32>
    %991 = vector.shape_cast %990 : vector<2x16xf32> to vector<2x1x16xf32>
    %992 = vector.broadcast %991 : vector<2x1x16xf32> to vector<2x16x16xf32>
    %993 = arith.subf %989, %992 : vector<2x16x16xf32>
    %994 = math.exp %993 : vector<2x16x16xf32>
    %cst_327 = arith.constant dense<0.000000e+00> : vector<2x16xf32>
    %995 = vector.multi_reduction <add>, %994, %cst_327 [1] : vector<2x16x16xf32> to vector<2x16xf32>
    %996 = math.log %995 : vector<2x16xf32>
    %997 = arith.addf %990, %996 : vector<2x16xf32>
    %998 = arith.addf %968, %997 : vector<2x16xf32>
    %999 = vector.broadcast %979 : vector<2x1xf32> to vector<2x16xf32>
    %1000 = arith.mulf %999, %998 : vector<2x16xf32>
    %cst_328 = arith.constant 1.000000e+00 : f32
    %1001 = vector.broadcast %cst_328 : f32 to vector<2x1xf32>
    %1002 = arith.subf %1001, %979 : vector<2x1xf32>
    %1003 = vector.broadcast %1002 : vector<2x1xf32> to vector<2x16xf32>
    %1004 = arith.mulf %1003, %943 : vector<2x16xf32>
    %1005 = arith.addf %1000, %1004 : vector<2x16xf32>
    %1006 = vector.broadcast %984 : vector<2x1xi32> to vector<2x16xi32>
    %1007 = arith.cmpi eq, %712, %1006 : vector<2x16xi32>
    %cst_329 = arith.constant 0.000000e+00 : f32
    %1008 = vector.broadcast %cst_329 : f32 to vector<2x16xf32>
    %1009 = arith.select %1007, %968, %1008 : vector<2x16xi1>, vector<2x16xf32>
    %cst_330 = arith.constant dense<0.000000e+00> : vector<2xf32>
    %1010 = vector.multi_reduction <add>, %1009, %cst_330 [1] : vector<2x16xf32> to vector<2xf32>
    %1011 = vector.shape_cast %1010 : vector<2xf32> to vector<2x1xf32>
    %1012 = arith.index_cast %971 : i32 to index
    %1013 = arith.index_cast %973 : i32 to index
    %1014 = memref.load %arg16[%1012, %1013] : memref<16x16xf32, #tpu.memory_space<smem>>
    %1015 = arith.index_cast %972 : i32 to index
    %1016 = arith.index_cast %974 : i32 to index
    %1017 = memref.load %arg16[%1015, %1016] : memref<16x16xf32, #tpu.memory_space<smem>>
    %1018 = vector.broadcast %1014 : f32 to vector<2x1xf32>
    %c1_i32_331 = arith.constant 1 : i32
    %1019 = vector.broadcast %c1_i32_331 : i32 to vector<2x1xi32>
    %1020 = arith.cmpi eq, %713, %1019 : vector<2x1xi32>
    %1021 = vector.broadcast %1017 : f32 to vector<2x1xf32>
    %1022 = arith.select %1020, %1021, %1018 : vector<2x1xi1>, vector<2x1xf32>
    %1023 = arith.addf %1011, %1022 : vector<2x1xf32>
    %1024 = arith.mulf %1023, %979 : vector<2x1xf32>
    %1025 = arith.addf %963, %1024 : vector<2x1xf32>
    %1026 = arith.fptosi %969 : f32 to i32
    %1027 = arith.addi %965, %1026 : i32
    %1028 = arith.fptosi %970 : f32 to i32
    %1029 = arith.addi %967, %1028 : i32
    %1030 = vector.extract_strided_slice %179 {offsets = [10, 0], sizes = [2, 16], strides = [1, 1]} : vector<16x16xf32> to vector<2x16xf32>
    %c0_332 = arith.constant 0 : index
    %c5_333 = arith.constant 5 : index
    %1031 = memref.load %arg20[%c0_332, %c5_333] : memref<2x8xf32, #tpu.memory_space<smem>>
    %c1_334 = arith.constant 1 : index
    %c5_335 = arith.constant 5 : index
    %1032 = memref.load %arg20[%c1_334, %c5_335] : memref<2x8xf32, #tpu.memory_space<smem>>
    %c0_336 = arith.constant 0 : index
    %c6_337 = arith.constant 6 : index
    %1033 = memref.load %arg18[%c0_336, %c6_337] : memref<2x9xi32, #tpu.memory_space<smem>>
    %c1_338 = arith.constant 1 : index
    %c6_339 = arith.constant 6 : index
    %1034 = memref.load %arg18[%c1_338, %c6_339] : memref<2x9xi32, #tpu.memory_space<smem>>
    %c0_340 = arith.constant 0 : index
    %c5_341 = arith.constant 5 : index
    %1035 = memref.load %arg18[%c0_340, %c5_341] : memref<2x9xi32, #tpu.memory_space<smem>>
    %c1_342 = arith.constant 1 : index
    %c5_343 = arith.constant 5 : index
    %1036 = memref.load %arg18[%c1_342, %c5_343] : memref<2x9xi32, #tpu.memory_space<smem>>
    %1037 = vector.broadcast %1031 : f32 to vector<2x1xf32>
    %c1_i32_344 = arith.constant 1 : i32
    %1038 = vector.broadcast %c1_i32_344 : i32 to vector<2x1xi32>
    %1039 = arith.cmpi eq, %713, %1038 : vector<2x1xi32>
    %1040 = vector.broadcast %1032 : f32 to vector<2x1xf32>
    %1041 = arith.select %1039, %1040, %1037 : vector<2x1xi1>, vector<2x1xf32>
    %1042 = vector.broadcast %1033 : i32 to vector<2x1xi32>
    %c1_i32_345 = arith.constant 1 : i32
    %1043 = vector.broadcast %c1_i32_345 : i32 to vector<2x1xi32>
    %1044 = arith.cmpi eq, %713, %1043 : vector<2x1xi32>
    %1045 = vector.broadcast %1034 : i32 to vector<2x1xi32>
    %1046 = arith.select %1044, %1045, %1042 : vector<2x1xi1>, vector<2x1xi32>
    %1047 = vector.shape_cast %1005 : vector<2x16xf32> to vector<2x16x1xf32>
    %1048 = vector.shape_cast %711 : vector<16x16xf32> to vector<1x16x16xf32>
    %1049 = vector.broadcast %1047 : vector<2x16x1xf32> to vector<2x16x16xf32>
    %1050 = vector.broadcast %1048 : vector<1x16x16xf32> to vector<2x16x16xf32>
    %1051 = arith.addf %1049, %1050 : vector<2x16x16xf32>
    %cst_346 = arith.constant dense<0xFF800000> : vector<2x16xf32>
    %1052 = vector.multi_reduction <maximumf>, %1051, %cst_346 [1] : vector<2x16x16xf32> to vector<2x16xf32>
    %1053 = vector.shape_cast %1052 : vector<2x16xf32> to vector<2x1x16xf32>
    %1054 = vector.broadcast %1053 : vector<2x1x16xf32> to vector<2x16x16xf32>
    %1055 = arith.subf %1051, %1054 : vector<2x16x16xf32>
    %1056 = math.exp %1055 : vector<2x16x16xf32>
    %cst_347 = arith.constant dense<0.000000e+00> : vector<2x16xf32>
    %1057 = vector.multi_reduction <add>, %1056, %cst_347 [1] : vector<2x16x16xf32> to vector<2x16xf32>
    %1058 = math.log %1057 : vector<2x16xf32>
    %1059 = arith.addf %1052, %1058 : vector<2x16xf32>
    %1060 = arith.addf %1030, %1059 : vector<2x16xf32>
    %1061 = vector.broadcast %1041 : vector<2x1xf32> to vector<2x16xf32>
    %1062 = arith.mulf %1061, %1060 : vector<2x16xf32>
    %cst_348 = arith.constant 1.000000e+00 : f32
    %1063 = vector.broadcast %cst_348 : f32 to vector<2x1xf32>
    %1064 = arith.subf %1063, %1041 : vector<2x1xf32>
    %1065 = vector.broadcast %1064 : vector<2x1xf32> to vector<2x16xf32>
    %1066 = arith.mulf %1065, %1005 : vector<2x16xf32>
    %1067 = arith.addf %1062, %1066 : vector<2x16xf32>
    %1068 = vector.broadcast %1046 : vector<2x1xi32> to vector<2x16xi32>
    %1069 = arith.cmpi eq, %712, %1068 : vector<2x16xi32>
    %cst_349 = arith.constant 0.000000e+00 : f32
    %1070 = vector.broadcast %cst_349 : f32 to vector<2x16xf32>
    %1071 = arith.select %1069, %1030, %1070 : vector<2x16xi1>, vector<2x16xf32>
    %cst_350 = arith.constant dense<0.000000e+00> : vector<2xf32>
    %1072 = vector.multi_reduction <add>, %1071, %cst_350 [1] : vector<2x16xf32> to vector<2xf32>
    %1073 = vector.shape_cast %1072 : vector<2xf32> to vector<2x1xf32>
    %1074 = arith.index_cast %1033 : i32 to index
    %1075 = arith.index_cast %1035 : i32 to index
    %1076 = memref.load %arg16[%1074, %1075] : memref<16x16xf32, #tpu.memory_space<smem>>
    %1077 = arith.index_cast %1034 : i32 to index
    %1078 = arith.index_cast %1036 : i32 to index
    %1079 = memref.load %arg16[%1077, %1078] : memref<16x16xf32, #tpu.memory_space<smem>>
    %1080 = vector.broadcast %1076 : f32 to vector<2x1xf32>
    %c1_i32_351 = arith.constant 1 : i32
    %1081 = vector.broadcast %c1_i32_351 : i32 to vector<2x1xi32>
    %1082 = arith.cmpi eq, %713, %1081 : vector<2x1xi32>
    %1083 = vector.broadcast %1079 : f32 to vector<2x1xf32>
    %1084 = arith.select %1082, %1083, %1080 : vector<2x1xi1>, vector<2x1xf32>
    %1085 = arith.addf %1073, %1084 : vector<2x1xf32>
    %1086 = arith.mulf %1085, %1041 : vector<2x1xf32>
    %1087 = arith.addf %1025, %1086 : vector<2x1xf32>
    %1088 = arith.fptosi %1031 : f32 to i32
    %1089 = arith.addi %1027, %1088 : i32
    %1090 = arith.fptosi %1032 : f32 to i32
    %1091 = arith.addi %1029, %1090 : i32
    %1092 = vector.extract_strided_slice %179 {offsets = [12, 0], sizes = [2, 16], strides = [1, 1]} : vector<16x16xf32> to vector<2x16xf32>
    %c0_352 = arith.constant 0 : index
    %c6_353 = arith.constant 6 : index
    %1093 = memref.load %arg20[%c0_352, %c6_353] : memref<2x8xf32, #tpu.memory_space<smem>>
    %c1_354 = arith.constant 1 : index
    %c6_355 = arith.constant 6 : index
    %1094 = memref.load %arg20[%c1_354, %c6_355] : memref<2x8xf32, #tpu.memory_space<smem>>
    %c0_356 = arith.constant 0 : index
    %c7_357 = arith.constant 7 : index
    %1095 = memref.load %arg18[%c0_356, %c7_357] : memref<2x9xi32, #tpu.memory_space<smem>>
    %c1_358 = arith.constant 1 : index
    %c7_359 = arith.constant 7 : index
    %1096 = memref.load %arg18[%c1_358, %c7_359] : memref<2x9xi32, #tpu.memory_space<smem>>
    %c0_360 = arith.constant 0 : index
    %c6_361 = arith.constant 6 : index
    %1097 = memref.load %arg18[%c0_360, %c6_361] : memref<2x9xi32, #tpu.memory_space<smem>>
    %c1_362 = arith.constant 1 : index
    %c6_363 = arith.constant 6 : index
    %1098 = memref.load %arg18[%c1_362, %c6_363] : memref<2x9xi32, #tpu.memory_space<smem>>
    %1099 = vector.broadcast %1093 : f32 to vector<2x1xf32>
    %c1_i32_364 = arith.constant 1 : i32
    %1100 = vector.broadcast %c1_i32_364 : i32 to vector<2x1xi32>
    %1101 = arith.cmpi eq, %713, %1100 : vector<2x1xi32>
    %1102 = vector.broadcast %1094 : f32 to vector<2x1xf32>
    %1103 = arith.select %1101, %1102, %1099 : vector<2x1xi1>, vector<2x1xf32>
    %1104 = vector.broadcast %1095 : i32 to vector<2x1xi32>
    %c1_i32_365 = arith.constant 1 : i32
    %1105 = vector.broadcast %c1_i32_365 : i32 to vector<2x1xi32>
    %1106 = arith.cmpi eq, %713, %1105 : vector<2x1xi32>
    %1107 = vector.broadcast %1096 : i32 to vector<2x1xi32>
    %1108 = arith.select %1106, %1107, %1104 : vector<2x1xi1>, vector<2x1xi32>
    %1109 = vector.shape_cast %1067 : vector<2x16xf32> to vector<2x16x1xf32>
    %1110 = vector.shape_cast %711 : vector<16x16xf32> to vector<1x16x16xf32>
    %1111 = vector.broadcast %1109 : vector<2x16x1xf32> to vector<2x16x16xf32>
    %1112 = vector.broadcast %1110 : vector<1x16x16xf32> to vector<2x16x16xf32>
    %1113 = arith.addf %1111, %1112 : vector<2x16x16xf32>
    %cst_366 = arith.constant dense<0xFF800000> : vector<2x16xf32>
    %1114 = vector.multi_reduction <maximumf>, %1113, %cst_366 [1] : vector<2x16x16xf32> to vector<2x16xf32>
    %1115 = vector.shape_cast %1114 : vector<2x16xf32> to vector<2x1x16xf32>
    %1116 = vector.broadcast %1115 : vector<2x1x16xf32> to vector<2x16x16xf32>
    %1117 = arith.subf %1113, %1116 : vector<2x16x16xf32>
    %1118 = math.exp %1117 : vector<2x16x16xf32>
    %cst_367 = arith.constant dense<0.000000e+00> : vector<2x16xf32>
    %1119 = vector.multi_reduction <add>, %1118, %cst_367 [1] : vector<2x16x16xf32> to vector<2x16xf32>
    %1120 = math.log %1119 : vector<2x16xf32>
    %1121 = arith.addf %1114, %1120 : vector<2x16xf32>
    %1122 = arith.addf %1092, %1121 : vector<2x16xf32>
    %1123 = vector.broadcast %1103 : vector<2x1xf32> to vector<2x16xf32>
    %1124 = arith.mulf %1123, %1122 : vector<2x16xf32>
    %cst_368 = arith.constant 1.000000e+00 : f32
    %1125 = vector.broadcast %cst_368 : f32 to vector<2x1xf32>
    %1126 = arith.subf %1125, %1103 : vector<2x1xf32>
    %1127 = vector.broadcast %1126 : vector<2x1xf32> to vector<2x16xf32>
    %1128 = arith.mulf %1127, %1067 : vector<2x16xf32>
    %1129 = arith.addf %1124, %1128 : vector<2x16xf32>
    %1130 = vector.broadcast %1108 : vector<2x1xi32> to vector<2x16xi32>
    %1131 = arith.cmpi eq, %712, %1130 : vector<2x16xi32>
    %cst_369 = arith.constant 0.000000e+00 : f32
    %1132 = vector.broadcast %cst_369 : f32 to vector<2x16xf32>
    %1133 = arith.select %1131, %1092, %1132 : vector<2x16xi1>, vector<2x16xf32>
    %cst_370 = arith.constant dense<0.000000e+00> : vector<2xf32>
    %1134 = vector.multi_reduction <add>, %1133, %cst_370 [1] : vector<2x16xf32> to vector<2xf32>
    %1135 = vector.shape_cast %1134 : vector<2xf32> to vector<2x1xf32>
    %1136 = arith.index_cast %1095 : i32 to index
    %1137 = arith.index_cast %1097 : i32 to index
    %1138 = memref.load %arg16[%1136, %1137] : memref<16x16xf32, #tpu.memory_space<smem>>
    %1139 = arith.index_cast %1096 : i32 to index
    %1140 = arith.index_cast %1098 : i32 to index
    %1141 = memref.load %arg16[%1139, %1140] : memref<16x16xf32, #tpu.memory_space<smem>>
    %1142 = vector.broadcast %1138 : f32 to vector<2x1xf32>
    %c1_i32_371 = arith.constant 1 : i32
    %1143 = vector.broadcast %c1_i32_371 : i32 to vector<2x1xi32>
    %1144 = arith.cmpi eq, %713, %1143 : vector<2x1xi32>
    %1145 = vector.broadcast %1141 : f32 to vector<2x1xf32>
    %1146 = arith.select %1144, %1145, %1142 : vector<2x1xi1>, vector<2x1xf32>
    %1147 = arith.addf %1135, %1146 : vector<2x1xf32>
    %1148 = arith.mulf %1147, %1103 : vector<2x1xf32>
    %1149 = arith.addf %1087, %1148 : vector<2x1xf32>
    %1150 = arith.fptosi %1093 : f32 to i32
    %1151 = arith.addi %1089, %1150 : i32
    %1152 = arith.fptosi %1094 : f32 to i32
    %1153 = arith.addi %1091, %1152 : i32
    %1154 = vector.extract_strided_slice %179 {offsets = [14, 0], sizes = [2, 16], strides = [1, 1]} : vector<16x16xf32> to vector<2x16xf32>
    %c0_372 = arith.constant 0 : index
    %c7_373 = arith.constant 7 : index
    %1155 = memref.load %arg20[%c0_372, %c7_373] : memref<2x8xf32, #tpu.memory_space<smem>>
    %c1_374 = arith.constant 1 : index
    %c7_375 = arith.constant 7 : index
    %1156 = memref.load %arg20[%c1_374, %c7_375] : memref<2x8xf32, #tpu.memory_space<smem>>
    %c0_376 = arith.constant 0 : index
    %c8_377 = arith.constant 8 : index
    %1157 = memref.load %arg18[%c0_376, %c8_377] : memref<2x9xi32, #tpu.memory_space<smem>>
    %c1_378 = arith.constant 1 : index
    %c8_379 = arith.constant 8 : index
    %1158 = memref.load %arg18[%c1_378, %c8_379] : memref<2x9xi32, #tpu.memory_space<smem>>
    %c0_380 = arith.constant 0 : index
    %c7_381 = arith.constant 7 : index
    %1159 = memref.load %arg18[%c0_380, %c7_381] : memref<2x9xi32, #tpu.memory_space<smem>>
    %c1_382 = arith.constant 1 : index
    %c7_383 = arith.constant 7 : index
    %1160 = memref.load %arg18[%c1_382, %c7_383] : memref<2x9xi32, #tpu.memory_space<smem>>
    %1161 = vector.broadcast %1155 : f32 to vector<2x1xf32>
    %c1_i32_384 = arith.constant 1 : i32
    %1162 = vector.broadcast %c1_i32_384 : i32 to vector<2x1xi32>
    %1163 = arith.cmpi eq, %713, %1162 : vector<2x1xi32>
    %1164 = vector.broadcast %1156 : f32 to vector<2x1xf32>
    %1165 = arith.select %1163, %1164, %1161 : vector<2x1xi1>, vector<2x1xf32>
    %1166 = vector.broadcast %1157 : i32 to vector<2x1xi32>
    %c1_i32_385 = arith.constant 1 : i32
    %1167 = vector.broadcast %c1_i32_385 : i32 to vector<2x1xi32>
    %1168 = arith.cmpi eq, %713, %1167 : vector<2x1xi32>
    %1169 = vector.broadcast %1158 : i32 to vector<2x1xi32>
    %1170 = arith.select %1168, %1169, %1166 : vector<2x1xi1>, vector<2x1xi32>
    %1171 = vector.shape_cast %1129 : vector<2x16xf32> to vector<2x16x1xf32>
    %1172 = vector.shape_cast %711 : vector<16x16xf32> to vector<1x16x16xf32>
    %1173 = vector.broadcast %1171 : vector<2x16x1xf32> to vector<2x16x16xf32>
    %1174 = vector.broadcast %1172 : vector<1x16x16xf32> to vector<2x16x16xf32>
    %1175 = arith.addf %1173, %1174 : vector<2x16x16xf32>
    %cst_386 = arith.constant dense<0xFF800000> : vector<2x16xf32>
    %1176 = vector.multi_reduction <maximumf>, %1175, %cst_386 [1] : vector<2x16x16xf32> to vector<2x16xf32>
    %1177 = vector.shape_cast %1176 : vector<2x16xf32> to vector<2x1x16xf32>
    %1178 = vector.broadcast %1177 : vector<2x1x16xf32> to vector<2x16x16xf32>
    %1179 = arith.subf %1175, %1178 : vector<2x16x16xf32>
    %1180 = math.exp %1179 : vector<2x16x16xf32>
    %cst_387 = arith.constant dense<0.000000e+00> : vector<2x16xf32>
    %1181 = vector.multi_reduction <add>, %1180, %cst_387 [1] : vector<2x16x16xf32> to vector<2x16xf32>
    %1182 = math.log %1181 : vector<2x16xf32>
    %1183 = arith.addf %1176, %1182 : vector<2x16xf32>
    %1184 = arith.addf %1154, %1183 : vector<2x16xf32>
    %1185 = vector.broadcast %1165 : vector<2x1xf32> to vector<2x16xf32>
    %1186 = arith.mulf %1185, %1184 : vector<2x16xf32>
    %cst_388 = arith.constant 1.000000e+00 : f32
    %1187 = vector.broadcast %cst_388 : f32 to vector<2x1xf32>
    %1188 = arith.subf %1187, %1165 : vector<2x1xf32>
    %1189 = vector.broadcast %1188 : vector<2x1xf32> to vector<2x16xf32>
    %1190 = arith.mulf %1189, %1129 : vector<2x16xf32>
    %1191 = arith.addf %1186, %1190 : vector<2x16xf32>
    %1192 = vector.broadcast %1170 : vector<2x1xi32> to vector<2x16xi32>
    %1193 = arith.cmpi eq, %712, %1192 : vector<2x16xi32>
    %cst_389 = arith.constant 0.000000e+00 : f32
    %1194 = vector.broadcast %cst_389 : f32 to vector<2x16xf32>
    %1195 = arith.select %1193, %1154, %1194 : vector<2x16xi1>, vector<2x16xf32>
    %cst_390 = arith.constant dense<0.000000e+00> : vector<2xf32>
    %1196 = vector.multi_reduction <add>, %1195, %cst_390 [1] : vector<2x16xf32> to vector<2xf32>
    %1197 = vector.shape_cast %1196 : vector<2xf32> to vector<2x1xf32>
    %1198 = arith.index_cast %1157 : i32 to index
    %1199 = arith.index_cast %1159 : i32 to index
    %1200 = memref.load %arg16[%1198, %1199] : memref<16x16xf32, #tpu.memory_space<smem>>
    %1201 = arith.index_cast %1158 : i32 to index
    %1202 = arith.index_cast %1160 : i32 to index
    %1203 = memref.load %arg16[%1201, %1202] : memref<16x16xf32, #tpu.memory_space<smem>>
    %1204 = vector.broadcast %1200 : f32 to vector<2x1xf32>
    %c1_i32_391 = arith.constant 1 : i32
    %1205 = vector.broadcast %c1_i32_391 : i32 to vector<2x1xi32>
    %1206 = arith.cmpi eq, %713, %1205 : vector<2x1xi32>
    %1207 = vector.broadcast %1203 : f32 to vector<2x1xf32>
    %1208 = arith.select %1206, %1207, %1204 : vector<2x1xi1>, vector<2x1xf32>
    %1209 = arith.addf %1197, %1208 : vector<2x1xf32>
    %1210 = arith.mulf %1209, %1165 : vector<2x1xf32>
    %1211 = arith.addf %1149, %1210 : vector<2x1xf32>
    %1212 = arith.fptosi %1155 : f32 to i32
    %1213 = arith.addi %1151, %1212 : i32
    %1214 = arith.fptosi %1156 : f32 to i32
    %1215 = arith.addi %1153, %1214 : i32
    %c0_392 = arith.constant 0 : index
    %c0_393 = arith.constant 0 : index
    %1216 = vector.load %arg14[%c0_392, %c0_393] : memref<1x16xf32, #tpu.memory_space<vmem>>, vector<1x16xf32>
    %1217 = vector.broadcast %1216 : vector<1x16xf32> to vector<2x16xf32>
    %1218 = arith.addf %1191, %1217 : vector<2x16xf32>
    %cst_394 = arith.constant dense<0xFF800000> : vector<2xf32>
    %1219 = vector.multi_reduction <maximumf>, %1218, %cst_394 [1] : vector<2x16xf32> to vector<2xf32>
    %1220 = vector.shape_cast %1219 : vector<2xf32> to vector<2x1xf32>
    %1221 = vector.broadcast %1220 : vector<2x1xf32> to vector<2x16xf32>
    %1222 = arith.subf %1218, %1221 : vector<2x16xf32>
    %1223 = math.exp %1222 : vector<2x16xf32>
    %cst_395 = arith.constant dense<0.000000e+00> : vector<2xf32>
    %1224 = vector.multi_reduction <add>, %1223, %cst_395 [1] : vector<2x16xf32> to vector<2xf32>
    %1225 = vector.shape_cast %1224 : vector<2xf32> to vector<2x1xf32>
    %1226 = math.log %1225 : vector<2x1xf32>
    %1227 = arith.addf %1220, %1226 : vector<2x1xf32>
    %c0_396 = arith.constant 0 : index
    %1228 = arith.index_cast %1213 : i32 to index
    %1229 = memref.load %arg18[%c0_396, %1228] : memref<2x9xi32, #tpu.memory_space<smem>>
    %c2_397 = arith.constant 2 : index
    %1230 = arith.index_cast %1229 : i32 to index
    %1231 = memref.load %arg16[%c2_397, %1230] : memref<16x16xf32, #tpu.memory_space<smem>>
    %c1_398 = arith.constant 1 : index
    %1232 = arith.index_cast %1215 : i32 to index
    %1233 = memref.load %arg18[%c1_398, %1232] : memref<2x9xi32, #tpu.memory_space<smem>>
    %c2_399 = arith.constant 2 : index
    %1234 = arith.index_cast %1233 : i32 to index
    %1235 = memref.load %arg16[%c2_399, %1234] : memref<16x16xf32, #tpu.memory_space<smem>>
    %1236 = vector.broadcast %1231 : f32 to vector<2x1xf32>
    %c1_i32_400 = arith.constant 1 : i32
    %1237 = vector.broadcast %c1_i32_400 : i32 to vector<2x1xi32>
    %1238 = arith.cmpi eq, %713, %1237 : vector<2x1xi32>
    %1239 = vector.broadcast %1235 : f32 to vector<2x1xf32>
    %1240 = arith.select %1238, %1239, %1236 : vector<2x1xi1>, vector<2x1xf32>
    %1241 = arith.addf %1211, %1240 : vector<2x1xf32>
    %1242 = arith.addf %696, %1227 : vector<2x1xf32>
    %1243 = arith.addf %710, %1241 : vector<2x1xf32>
    %1244 = arith.subf %1242, %1243 : vector<2x1xf32>
    %1245 = arith.mulf %1244, %1244 : vector<2x1xf32>
    %cst_401 = arith.constant dense<0.000000e+00> : vector<1xf32>
    %1246 = vector.multi_reduction <add>, %1245, %cst_401 [0] : vector<2x1xf32> to vector<1xf32>
    %1247 = vector.shape_cast %1246 : vector<1xf32> to vector<1x1xf32>
    %cst_402 = arith.constant 5.000000e-01 : f32
    %1248 = vector.broadcast %cst_402 : f32 to vector<1x1xf32>
    %1249 = arith.mulf %1247, %1248 : vector<1x1xf32>
    %c0_403 = arith.constant 0 : index
    %c0_404 = arith.constant 0 : index
    %1250 = vector.load %arg21[%c0_403, %c0_404] : memref<1x1xf32, #tpu.memory_space<vmem>>, vector<1x1xf32>
    tpu.vector_store %arg21[%c0_403, %c0_404], %1249 {strides = array<i32>} : memref<1x1xf32, #tpu.memory_space<vmem>>, vector<1x1xf32>,
    return
  }
}

</mosaic_0001>

<llo_original>
// kernel: rnn_two_crf_forward.1
$region0: #{rnn_two_crf_forward.1}
  #allocation0 [shape = 'u32[]', space=smem, size = 0x4, offset = 0x4, fixed_abs, tag = 'smem constant byte address 0x4 - core index']
  #allocation1 [shape = 'u32[144,128]{1,0:T(1,128)}', space=vmem, size = 0x12000, scoped, tag = 'internal scratch']
  #allocation2 [shape = 'f32[16,32]{1,0:T(8,128)}', space=vmem, size = 0x2000, scoped, tag = 'scratch operand']
  %s0 = inlined_call_operand.vmem [shape: f32[16,32], index: 0, kind: input, shape index: {}]
  %s1 = inlined_call_operand.vmem [shape: f32[16,1], index: 1, kind: input, shape index: {}]
  %s2 = inlined_call_operand.vmem [shape: f32[32,128], index: 2, kind: input, shape index: {}]
  %s3 = inlined_call_operand.vmem [shape: f32[32,128], index: 3, kind: input, shape index: {}]
  %s4 = inlined_call_operand.vmem [shape: f32[1,128], index: 4, kind: input, shape index: {}]
  %s5 = inlined_call_operand.vmem [shape: f32[32,16], index: 5, kind: input, shape index: {}]
  %s6 = inlined_call_operand.vmem [shape: f32[1,16], index: 6, kind: input, shape index: {}]
  %s7 = inlined_call_operand.vmem [shape: f32[16,8], index: 7, kind: input, shape index: {}]
  %s8 = inlined_call_operand.vmem [shape: f32[1,8], index: 8, kind: input, shape index: {}]
  %s9 = inlined_call_operand.vmem [shape: f32[16,16], index: 9, kind: input, shape index: {}]
  %s10 = inlined_call_operand.vmem [shape: f32[1,16], index: 10, kind: input, shape index: {}]
  %s11 = inlined_call_operand.vmem [shape: f32[8,8], index: 11, kind: input, shape index: {}]
  %s12 = inlined_call_operand.vmem [shape: f32[1,8], index: 12, kind: input, shape index: {}]
  %s13 = inlined_call_operand.vmem [shape: f32[16,16], index: 13, kind: input, shape index: {}]
  %s14 = inlined_call_operand.vmem [shape: f32[1,16], index: 14, kind: input, shape index: {}]
  %s15 = inlined_call_operand.vmem [shape: f32[8,8], index: 15, kind: input, shape index: {}]
  %s16 = inlined_call_operand.vmem [shape: f32[16,16], index: 16, kind: input, shape index: {}]
  %s17 = inlined_call_operand.vmem [shape: s32[2,9], index: 17, kind: input, shape index: {}]
  %s18 = inlined_call_operand.vmem [shape: s32[2,9], index: 18, kind: input, shape index: {}]
  %s19 = inlined_call_operand.vmem [shape: f32[2,8], index: 19, kind: input, shape index: {}]
  %s20 = inlined_call_operand.vmem [shape: f32[2,8], index: 20, kind: input, shape index: {}]
  %s21 = inlined_call_operand.hbm [shape: f32[1,1], index: 21, kind: output, shape index: {}]
  %s22 = sld [smem:[#allocation0]]
  $region118: #{rnn_two_crf_forward.1} parent=0
    _
  %s24 = ssub.s32 1, %s22
  %s25 = scalar_select 0, %s24, %s22
  $region1: #{rnn_two_crf_forward.1} parent=0
    #allocation3 [shape = 'u8[4096]{0}', space=smem, size = 0x1000, scoped, tag = 'input window, operand 15, single buffered']
    #allocation4 [shape = 's32[1]{0}', space=sflag, size = 0x4, scoped, tag = 'scoped memory for rnn_two_crf_forward.1']
    #allocation5 [shape = 's32[1]{0}', space=sflag, size = 0x4, scoped, tag = 'scoped memory for rnn_two_crf_forward.1']
    #allocation6 [shape = 'u8[8192]{0}', space=smem, size = 0x2000, scoped, tag = 'input window, operand 16, single buffered']
    #allocation7 [shape = 's32[1]{0}', space=sflag, size = 0x4, scoped, tag = 'scoped memory for rnn_two_crf_forward.1']
    #allocation8 [shape = 'u8[1024]{0}', space=smem, size = 0x400, scoped, tag = 'input window, operand 17, single buffered']
    #allocation9 [shape = 'u8[1024]{0}', space=smem, size = 0x400, scoped, tag = 'input window, operand 18, single buffered']
    #allocation10 [shape = 's32[1]{0}', space=sflag, size = 0x4, scoped, tag = 'scoped memory for rnn_two_crf_forward.1']
    #allocation11 [shape = 'u8[1024]{0}', space=smem, size = 0x400, scoped, tag = 'input window, operand 19, single buffered']
    #allocation12 [shape = 'u8[1024]{0}', space=smem, size = 0x400, scoped, tag = 'input window, operand 20, single buffered']
    #allocation13 [shape = 's32[1]{0}', space=sflag, size = 0x4, scoped, tag = 'scoped memory for rnn_two_crf_forward.1']
    #allocation14 [shape = 'u8[512]{0}', space=vmem, size = 0x400, scoped, tag = 'output window, operand 0, single buffered']
    %26 = vsyncpa [#allocation5], 0
    %27 = vsyncpa [#allocation7], 0
    %28 = vsyncpa [#allocation10], 0
    %29 = vsyncpa [#allocation13], 0
    %30 = vsyncpa [#allocation4], 0
    // Predicated region
    $region2: #{rnn_two_crf_forward.1} parent=1 // pred_check
      _
    $region3: #{rnn_two_crf_forward.1} parent=1 // pred_check_branch
      %32 = sbr.rel (0) target = $region5
    $region4: #{rnn_two_crf_forward.1} parent=1 // pred_region
      _
    $region5: #{rnn_two_crf_forward.1} parent=1 // pred_fallthru
      _
    // Predicated region
    $region6: #{rnn_two_crf_forward.1} parent=1 // pred_check
      _
    $region7: #{rnn_two_crf_forward.1} parent=1 // pred_check_branch
      %34 = sbr.rel (0) target = $region9
    $region8: #{rnn_two_crf_forward.1} parent=1 // pred_region
      _
    $region9: #{rnn_two_crf_forward.1} parent=1 // pred_fallthru
      _
    // Predicated region
    $region10: #{rnn_two_crf_forward.1} parent=1 // pred_check
      _
    $region11: #{rnn_two_crf_forward.1} parent=1 // pred_check_branch
      %36 = sbr.rel (0) target = $region13
    $region12: #{rnn_two_crf_forward.1} parent=1 // pred_region
      _
    $region13: #{rnn_two_crf_forward.1} parent=1 // pred_fallthru
      _
    // Predicated region
    $region14: #{rnn_two_crf_forward.1} parent=1 // pred_check
      _
    $region15: #{rnn_two_crf_forward.1} parent=1 // pred_check_branch
      %38 = sbr.rel (0) target = $region17
    $region16: #{rnn_two_crf_forward.1} parent=1 // pred_region
      _
    $region17: #{rnn_two_crf_forward.1} parent=1 // pred_fallthru
      _
    // Predicated region
    $region18: #{rnn_two_crf_forward.1} parent=1 // pred_check
      _
    $region19: #{rnn_two_crf_forward.1} parent=1 // pred_check_branch
      %40 = sbr.rel (0) target = $region21
    $region20: #{rnn_two_crf_forward.1} parent=1 // pred_region
      _
    $region21: #{rnn_two_crf_forward.1} parent=1 // pred_fallthru
      _
    // Predicated region
    $region22: #{rnn_two_crf_forward.1} parent=1 // pred_check
      _
    $region23: #{rnn_two_crf_forward.1} parent=1 // pred_check_branch
      %42 = sbr.rel (0) target = $region25
    $region24: #{rnn_two_crf_forward.1} parent=1 // pred_region
      _
    $region25: #{rnn_two_crf_forward.1} parent=1 // pred_fallthru
      _
    // Predicated region
    $region26: #{rnn_two_crf_forward.1} parent=1 // pred_check
      _
    $region27: #{rnn_two_crf_forward.1} parent=1 // pred_check_branch
      %44 = sbr.rel (0) target = $region29
    $region28: #{rnn_two_crf_forward.1} parent=1 // pred_region
      _
    $region29: #{rnn_two_crf_forward.1} parent=1 // pred_fallthru
      _
    // Predicated region
    $region30: #{rnn_two_crf_forward.1} parent=1 // pred_check
      _
    $region31: #{rnn_two_crf_forward.1} parent=1 // pred_check_branch
      %46 = sbr.rel (0) target = $region33
    $region32: #{rnn_two_crf_forward.1} parent=1 // pred_region
      _
    $region33: #{rnn_two_crf_forward.1} parent=1 // pred_fallthru
      _
    // Predicated region
    $region34: #{rnn_two_crf_forward.1} parent=1 // pred_check
      _
    $region35: #{rnn_two_crf_forward.1} parent=1 // pred_check_branch
      %48 = sbr.rel (0) target = $region37
    $region36: #{rnn_two_crf_forward.1} parent=1 // pred_region
      _
    $region37: #{rnn_two_crf_forward.1} parent=1 // pred_fallthru
      _
    // Predicated region
    $region38: #{rnn_two_crf_forward.1} parent=1 // pred_check
      _
    $region39: #{rnn_two_crf_forward.1} parent=1 // pred_check_branch
      %50 = sbr.rel (0) target = $region41
    $region40: #{rnn_two_crf_forward.1} parent=1 // pred_region
      _
    $region41: #{rnn_two_crf_forward.1} parent=1 // pred_fallthru
      _
    // Predicated region
    $region42: #{rnn_two_crf_forward.1} parent=1 // pred_check
      _
    $region43: #{rnn_two_crf_forward.1} parent=1 // pred_check_branch
      %52 = sbr.rel (0) target = $region45
    $region44: #{rnn_two_crf_forward.1} parent=1 // pred_region
      _
    $region45: #{rnn_two_crf_forward.1} parent=1 // pred_fallthru
      _
    // Predicated region
    $region46: #{rnn_two_crf_forward.1} parent=1 // pred_check
      _
    $region47: #{rnn_two_crf_forward.1} parent=1 // pred_check_branch
      %54 = sbr.rel (0) target = $region49
    $region48: #{rnn_two_crf_forward.1} parent=1 // pred_region
      _
    $region49: #{rnn_two_crf_forward.1} parent=1 // pred_fallthru
      _
    // Predicated region
    $region50: #{rnn_two_crf_forward.1} parent=1 // pred_check
      _
    $region51: #{rnn_two_crf_forward.1} parent=1 // pred_check_branch
      %56 = sbr.rel (0) target = $region53
    $region52: #{rnn_two_crf_forward.1} parent=1 // pred_region
      _
    $region53: #{rnn_two_crf_forward.1} parent=1 // pred_fallthru
      _
    // Predicated region
    $region54: #{rnn_two_crf_forward.1} parent=1 // pred_check
      _
    $region55: #{rnn_two_crf_forward.1} parent=1 // pred_check_branch
      %58 = sbr.rel (0) target = $region57
    $region56: #{rnn_two_crf_forward.1} parent=1 // pred_region
      _
    $region57: #{rnn_two_crf_forward.1} parent=1 // pred_fallthru
      _
    // Predicated region
    $region58: #{rnn_two_crf_forward.1} parent=1 // pred_check
      _
    $region59: #{rnn_two_crf_forward.1} parent=1 // pred_check_branch
      %60 = sbr.rel (0) target = $region61
    $region60: #{rnn_two_crf_forward.1} parent=1 // pred_region
      _
    $region61: #{rnn_two_crf_forward.1} parent=1 // pred_fallthru
      _
    // Predicated region
    $region62: #{rnn_two_crf_forward.1} parent=1 // pred_check
      _
    $region63: #{rnn_two_crf_forward.1} parent=1 // pred_check_branch
      %62 = sbr.rel (0) target = $region65
    $region64: #{rnn_two_crf_forward.1} parent=1 // pred_region
      %s64 = ssub.s32 128, 128
      %65 = vsyncadd [#allocation5], %s64
      %s67 = sshll.u32 %s15, 4
      %s68 = int_to_ptr.vmem [resolvable:$true] %s67
      %70 = dma.vmem_to_smem %s68, 128, [#allocation3], [#allocation5]
    $region65: #{rnn_two_crf_forward.1} parent=1 // pred_fallthru
      _
    // Predicated region
    $region66: #{rnn_two_crf_forward.1} parent=1 // pred_check
      _
    $region67: #{rnn_two_crf_forward.1} parent=1 // pred_check_branch
      %72 = sbr.rel (0) target = $region69
    $region68: #{rnn_two_crf_forward.1} parent=1 // pred_region
      %s74 = ssub.s32 256, 256
      %75 = vsyncadd [#allocation7], %s74
      %s76 = sshll.u32 %s16, 4
      %s77 = int_to_ptr.vmem [resolvable:$true] %s76
      %82 = dma.vmem_to_smem %s77, 256, [#allocation6], [#allocation7], 128, 128, 8
    $region69: #{rnn_two_crf_forward.1} parent=1 // pred_fallthru
      _
    // Predicated region
    $region70: #{rnn_two_crf_forward.1} parent=1 // pred_check
      _
    $region71: #{rnn_two_crf_forward.1} parent=1 // pred_check_branch
      %84 = sbr.rel (0) target = $region73
    $region72: #{rnn_two_crf_forward.1} parent=1 // pred_region
      %s86 = ssub.s32 32, 32
      %87 = vsyncadd [#allocation7], %s86
      %s89 = sshll.u32 %s17, 4
      %s90 = int_to_ptr.vmem [resolvable:$true] %s89
      %92 = dma.vmem_to_smem %s90, 32, [#allocation8], [#allocation7]
    $region73: #{rnn_two_crf_forward.1} parent=1 // pred_fallthru
      _
    // Predicated region
    $region74: #{rnn_two_crf_forward.1} parent=1 // pred_check
      _
    $region75: #{rnn_two_crf_forward.1} parent=1 // pred_check_branch
      %94 = sbr.rel (0) target = $region77
    $region76: #{rnn_two_crf_forward.1} parent=1 // pred_region
      %s96 = ssub.s32 32, 32
      %97 = vsyncadd [#allocation10], %s96
      %s99 = sshll.u32 %s18, 4
      %s100 = int_to_ptr.vmem [resolvable:$true] %s99
      %102 = dma.vmem_to_smem %s100, 32, [#allocation9], [#allocation10]
    $region77: #{rnn_two_crf_forward.1} parent=1 // pred_fallthru
      _
    // Predicated region
    $region78: #{rnn_two_crf_forward.1} parent=1 // pred_check
      _
    $region79: #{rnn_two_crf_forward.1} parent=1 // pred_check_branch
      %104 = sbr.rel (0) target = $region81
    $region80: #{rnn_two_crf_forward.1} parent=1 // pred_region
      %s106 = ssub.s32 32, 32
      %107 = vsyncadd [#allocation10], %s106
      %s109 = sshll.u32 %s19, 4
      %s110 = int_to_ptr.vmem [resolvable:$true] %s109
      %112 = dma.vmem_to_smem %s110, 32, [#allocation11], [#allocation10]
    $region81: #{rnn_two_crf_forward.1} parent=1 // pred_fallthru
      _
    // Predicated region
    $region82: #{rnn_two_crf_forward.1} parent=1 // pred_check
      _
    $region83: #{rnn_two_crf_forward.1} parent=1 // pred_check_branch
      %114 = sbr.rel (0) target = $region85
    $region84: #{rnn_two_crf_forward.1} parent=1 // pred_region
      %s116 = ssub.s32 32, 32
      %117 = vsyncadd [#allocation13], %s116
      %s119 = sshll.u32 %s20, 4
      %s120 = int_to_ptr.vmem [resolvable:$true] %s119
      %122 = dma.vmem_to_smem %s120, 32, [#allocation12], [#allocation13]
    $region85: #{rnn_two_crf_forward.1} parent=1 // pred_fallthru
      _
    // Predicated region
    $region86: #{rnn_two_crf_forward.1} parent=1 // pred_check
      _
    $region87: #{rnn_two_crf_forward.1} parent=1 // pred_check_branch
      %124 = sbr.rel (0) target = $region89
    $region88: #{rnn_two_crf_forward.1} parent=1 // pred_region
      %125 = dma.done [#allocation5], 128
    $region89: #{rnn_two_crf_forward.1} parent=1 // pred_fallthru
      _
    // Predicated region
    $region90: #{rnn_two_crf_forward.1} parent=1 // pred_check
      _
    $region91: #{rnn_two_crf_forward.1} parent=1 // pred_check_branch
      %127 = sbr.rel (0) target = $region93
    $region92: #{rnn_two_crf_forward.1} parent=1 // pred_region
      %128 = dma.done [#allocation7], 256
    $region93: #{rnn_two_crf_forward.1} parent=1 // pred_fallthru
      _
    // Predicated region
    $region94: #{rnn_two_crf_forward.1} parent=1 // pred_check
      _
    $region95: #{rnn_two_crf_forward.1} parent=1 // pred_check_branch
      %130 = sbr.rel (0) target = $region97
    $region96: #{rnn_two_crf_forward.1} parent=1 // pred_region
      %131 = dma.done [#allocation7], 32
    $region97: #{rnn_two_crf_forward.1} parent=1 // pred_fallthru
      _
    // Predicated region
    $region98: #{rnn_two_crf_forward.1} parent=1 // pred_check
      _
    $region99: #{rnn_two_crf_forward.1} parent=1 // pred_check_branch
      %133 = sbr.rel (0) target = $region101
    $region100: #{rnn_two_crf_forward.1} parent=1 // pred_region
      %134 = dma.done [#allocation10], 32
    $region101: #{rnn_two_crf_forward.1} parent=1 // pred_fallthru
      _
    // Predicated region
    $region102: #{rnn_two_crf_forward.1} parent=1 // pred_check
      _
    $region103: #{rnn_two_crf_forward.1} parent=1 // pred_check_branch
      %136 = sbr.rel (0) target = $region105
    $region104: #{rnn_two_crf_forward.1} parent=1 // pred_region
      %137 = dma.done [#allocation10], 32
    $region105: #{rnn_two_crf_forward.1} parent=1 // pred_fallthru
      _
    // Predicated region
    $region106: #{rnn_two_crf_forward.1} parent=1 // pred_check
      _
    $region107: #{rnn_two_crf_forward.1} parent=1 // pred_check_branch
      %139 = sbr.rel (0) target = $region109
    $region108: #{rnn_two_crf_forward.1} parent=1 // pred_region
      %140 = dma.done [#allocation13], 32
    $region109: #{rnn_two_crf_forward.1} parent=1 // pred_fallthru
      _
    %141 = sfence
    %v142 = vld [vmem:[%s0] sm:$0xff]
    %v143 = vld [vmem:[%s0 + $0x8] sm:$0xff]
    %v144 = vld [vmem:[%s2] sm:$0xff]
    %v145 = vld [vmem:[%s2 + $0x8] sm:$0xff]
    %v146 = vld [vmem:[%s2 + $0x10] sm:$0xff]
    %v147 = vld [vmem:[%s2 + $0x18] sm:$0xff]
    %v148 = vld [vmem:[%s4] sm:$0x1]
    %v150 = vlaneseq
    %v151 = vshrl.u32 %v150, 7
    %v152 = vsub.s32 0, %v151
    %v153 = vrot.slane %v148, %v152
    %vm155 = vcmask 261120
    %v157 = vsel %vm155, %v142, 0
    %v160 = vsel %vm155, %v143, 0
    %162 = vmatprep.subr.mxu0 0.0
    %163 = vmatpush1.msra.mxu0 0.0
    %164 = vmatprep.subr.mxu0 0.0
    %165 = vmatpush1.msra.mxu0 0.0
    %166 = vmatprep.subr.mxu0 0.0
    %167 = vmatpush1.msra.mxu0 0.0
    %168 = vmatprep.subr.mxu0 0.0
    %169 = vmatpush1.msra.mxu0 0.0
    %170 = vmatprep.subr.mxu0 0.0
    %171 = vmatpush1.msra.mxu0 0.0
    %172 = vmatprep.subr.mxu0 0.0
    %173 = vmatpush1.msra.mxu0 0.0
    %174 = vmatprep.subr.mxu0 0.0
    %175 = vmatpush1.msra.mxu0 0.0
    %176 = vmatprep.subr.mxu0 0.0
    %177 = vmatpush1.msra.mxu0 0.0
    %178 = vmatprep.subr.mxu0 0.0
    %179 = vmatpush1.msra.mxu0 0.0
    %180 = vmatprep.subr.mxu0 0.0
    %181 = vmatpush1.msra.mxu0 0.0
    %182 = vmatprep.subr.mxu0 0.0
    %183 = vmatpush1.msra.mxu0 0.0
    %184 = vmatprep.subr.mxu0 0.0
    %185 = vmatpush1.msra.mxu0 0.0
    %186 = vmatprep.subr.mxu0 0.0
    %187 = vmatpush1.msra.mxu0 %v147
    %188 = vmatprep.subr.mxu0 0.0
    %189 = vmatpush1.msra.mxu0 %v146
    %190 = vmatprep.subr.mxu0 0.0
    %191 = vmatpush1.msra.mxu0 %v145
    %192 = vmatprep.subr.mxu0 0.0
    %193 = vmatpush1.msra.mxu0 %v144
    %194 = vmatprep.subr.mxu0 0.0
    %195 = vmatpush2.msra.mxu0 0.0
    %196 = vmatprep.subr.mxu0 0.0
    %197 = vmatpush2.msra.mxu0 0.0
    %198 = vmatprep.subr.mxu0 0.0
    %199 = vmatpush2.msra.mxu0 0.0
    %200 = vmatprep.subr.mxu0 0.0
    %201 = vmatpush2.msra.mxu0 0.0
    %202 = vmatprep.subr.mxu0 0.0
    %203 = vmatpush2.msra.mxu0 0.0
    %204 = vmatprep.subr.mxu0 0.0
    %205 = vmatpush2.msra.mxu0 0.0
    %206 = vmatprep.subr.mxu0 0.0
    %207 = vmatpush2.msra.mxu0 0.0
    %208 = vmatprep.subr.mxu0 0.0
    %209 = vmatpush2.msra.mxu0 0.0
    %210 = vmatprep.subr.mxu0 0.0
    %211 = vmatpush2.msra.mxu0 0.0
    %212 = vmatprep.subr.mxu0 0.0
    %213 = vmatpush2.msra.mxu0 0.0
    %214 = vmatprep.subr.mxu0 0.0
    %215 = vmatpush2.msra.mxu0 0.0
    %216 = vmatprep.subr.mxu0 0.0
    %217 = vmatpush2.msra.mxu0 0.0
    %218 = vmatprep.subr.mxu0 0.0
    %219 = vmatpush2.msra.mxu0 0.0
    %220 = vmatprep.subr.mxu0 0.0
    %221 = vmatpush2.msra.mxu0 0.0
    %222 = vmatprep.subr.mxu0 0.0
    %223 = vmatpush2.msra.mxu0 0.0
    %224 = vmatprep.subr.mxu0 0.0
    %225 = vmatpush2.msra.mxu0 0.0
    %226 = vmatprep.mubr.f32.mxu0 0.0
    %227 = vmatmul.mubr.f32.gmra.mxu0 %v157
    %v228 = vpop.f32.mrf.mxu0
    %v229 = vadd.f32 %v153, %v228
    %v230 = vpop.f32.mrf.mxu0
    %231 = vmatprep.mubr.f32.mxu0 0.0
    %232 = vmatmul.mubr.f32.gmra.mxu0 %v160
    %v233 = vpop.f32.mrf.mxu0
    %v234 = vadd.f32 %v153, %v233
    %v235 = vpop.f32.mrf.mxu0
    %236 = vdwg.mxu0
    %v237 = vld [vmem:[%s3] sm:$0xff]
    %v238 = vld [vmem:[%s3 + $0x8] sm:$0xff]
    %v239 = vld [vmem:[%s3 + $0x10] sm:$0xff]
    %v240 = vld [vmem:[%s3 + $0x18] sm:$0xff]
    %v242 = vsel %vm155, 0.0, 0
    %244 = vmatprep.subr.mxu0 0.0
    %245 = vmatpush1.msra.mxu0 0.0
    %246 = vmatprep.subr.mxu0 0.0
    %247 = vmatpush1.msra.mxu0 0.0
    %248 = vmatprep.subr.mxu0 0.0
    %249 = vmatpush1.msra.mxu0 0.0
    %250 = vmatprep.subr.mxu0 0.0
    %251 = vmatpush1.msra.mxu0 0.0
    %252 = vmatprep.subr.mxu0 0.0
    %253 = vmatpush1.msra.mxu0 0.0
    %254 = vmatprep.subr.mxu0 0.0
    %255 = vmatpush1.msra.mxu0 0.0
    %256 = vmatprep.subr.mxu0 0.0
    %257 = vmatpush1.msra.mxu0 0.0
    %258 = vmatprep.subr.mxu0 0.0
    %259 = vmatpush1.msra.mxu0 0.0
    %260 = vmatprep.subr.mxu0 0.0
    %261 = vmatpush1.msra.mxu0 0.0
    %262 = vmatprep.subr.mxu0 0.0
    %263 = vmatpush1.msra.mxu0 0.0
    %264 = vmatprep.subr.mxu0 0.0
    %265 = vmatpush1.msra.mxu0 0.0
    %266 = vmatprep.subr.mxu0 0.0
    %267 = vmatpush1.msra.mxu0 0.0
    %268 = vmatprep.subr.mxu0 0.0
    %269 = vmatpush1.msra.mxu0 %v240
    %270 = vmatprep.subr.mxu0 0.0
    %271 = vmatpush1.msra.mxu0 %v239
    %272 = vmatprep.subr.mxu0 0.0
    %273 = vmatpush1.msra.mxu0 %v238
    %274 = vmatprep.subr.mxu0 0.0
    %275 = vmatpush1.msra.mxu0 %v237
    %276 = vmatprep.subr.mxu0 0.0
    %277 = vmatpush2.msra.mxu0 0.0
    %278 = vmatprep.subr.mxu0 0.0
    %279 = vmatpush2.msra.mxu0 0.0
    %280 = vmatprep.subr.mxu0 0.0
    %281 = vmatpush2.msra.mxu0 0.0
    %282 = vmatprep.subr.mxu0 0.0
    %283 = vmatpush2.msra.mxu0 0.0
    %284 = vmatprep.subr.mxu0 0.0
    %285 = vmatpush2.msra.mxu0 0.0
    %286 = vmatprep.subr.mxu0 0.0
    %287 = vmatpush2.msra.mxu0 0.0
    %288 = vmatprep.subr.mxu0 0.0
    %289 = vmatpush2.msra.mxu0 0.0
    %290 = vmatprep.subr.mxu0 0.0
    %291 = vmatpush2.msra.mxu0 0.0
    %292 = vmatprep.subr.mxu0 0.0
    %293 = vmatpush2.msra.mxu0 0.0
    %294 = vmatprep.subr.mxu0 0.0
    %295 = vmatpush2.msra.mxu0 0.0
    %296 = vmatprep.subr.mxu0 0.0
    %297 = vmatpush2.msra.mxu0 0.0
    %298 = vmatprep.subr.mxu0 0.0
    %299 = vmatpush2.msra.mxu0 0.0
    %300 = vmatprep.subr.mxu0 0.0
    %301 = vmatpush2.msra.mxu0 0.0
    %302 = vmatprep.subr.mxu0 0.0
    %303 = vmatpush2.msra.mxu0 0.0
    %304 = vmatprep.subr.mxu0 0.0
    %305 = vmatpush2.msra.mxu0 0.0
    %306 = vmatprep.subr.mxu0 0.0
    %307 = vmatpush2.msra.mxu0 0.0
    %308 = vmatprep.mubr.f32.mxu0 0.0
    %309 = vmatmul.mubr.f32.gmra.mxu0 %v242
    %v310 = vpop.f32.mrf.mxu0
    %v311 = vadd.f32 0.0, %v310
    %v312 = vpop.f32.mrf.mxu0
    %313 = vdwg.mxu0
    %v314 = vadd.f32 %v229, %v311
    %v315 = vxor.u32 %v314, 2147483648
    %v316 = vmul.f32 %v315, 1.442695
    %v317 = vpow.pop %v316
    %v318 = vadd.f32 %v317, 1.0
    %v319 = vrcp.pop %v318
    %v320 = vmul.f32 1.0, %v319
    %v321 = vtanh.pop %v314
    %v322 = vmul.f32 %v320, 0.0
    %324 = vrot.lane.b32.xlu0 %v321, 64
    %v325 = vpop.permute.xlu0 %324
    %v327 = vmul.f32 %v320, %v325
    %329 = vrot.lane.b32.xlu0 %v327, 32
    %v330 = vpop.permute.xlu0 %329
    %v332 = vadd.f32 %v322, %v330
    %v333 = vtanh.pop %v332
    %335 = vrot.lane.b32.xlu0 %v333, 64
    %v336 = vpop.permute.xlu0 %335
    %v338 = vmul.f32 %v320, %v336
    %340 = vrot.lane.b32.xlu0 %v338, 32
    %v341 = vpop.permute.xlu0 %340
    %vm343 = vcmask 254976
    %344 = vst.msk [vmem:[#allocation2] sm:$0x3] %vm343, %v341
    %v345 = vsel %vm155, %v341, 0
    %347 = vmatprep.subr.mxu0 0.0
    %348 = vmatpush1.msra.mxu0 0.0
    %349 = vmatprep.subr.mxu0 0.0
    %350 = vmatpush1.msra.mxu0 0.0
    %351 = vmatprep.subr.mxu0 0.0
    %352 = vmatpush1.msra.mxu0 0.0
    %353 = vmatprep.subr.mxu0 0.0
    %354 = vmatpush1.msra.mxu0 0.0
    %355 = vmatprep.subr.mxu0 0.0
    %356 = vmatpush1.msra.mxu0 0.0
    %357 = vmatprep.subr.mxu0 0.0
    %358 = vmatpush1.msra.mxu0 0.0
    %359 = vmatprep.subr.mxu0 0.0
    %360 = vmatpush1.msra.mxu0 0.0
    %361 = vmatprep.subr.mxu0 0.0
    %362 = vmatpush1.msra.mxu0 0.0
    %363 = vmatprep.subr.mxu0 0.0
    %364 = vmatpush1.msra.mxu0 0.0
    %365 = vmatprep.subr.mxu0 0.0
    %366 = vmatpush1.msra.mxu0 0.0
    %367 = vmatprep.subr.mxu0 0.0
    %368 = vmatpush1.msra.mxu0 0.0
    %369 = vmatprep.subr.mxu0 0.0
    %370 = vmatpush1.msra.mxu0 0.0
    %371 = vmatprep.subr.mxu0 0.0
    %372 = vmatpush1.msra.mxu0 %v240
    %373 = vmatprep.subr.mxu0 0.0
    %374 = vmatpush1.msra.mxu0 %v239
    %375 = vmatprep.subr.mxu0 0.0
    %376 = vmatpush1.msra.mxu0 %v238
    %377 = vmatprep.subr.mxu0 0.0
    %378 = vmatpush1.msra.mxu0 %v237
    %379 = vmatprep.subr.mxu0 0.0
    %380 = vmatpush2.msra.mxu0 0.0
    %381 = vmatprep.subr.mxu0 0.0
    %382 = vmatpush2.msra.mxu0 0.0
    %383 = vmatprep.subr.mxu0 0.0
    %384 = vmatpush2.msra.mxu0 0.0
    %385 = vmatprep.subr.mxu0 0.0
    %386 = vmatpush2.msra.mxu0 0.0
    %387 = vmatprep.subr.mxu0 0.0
    %388 = vmatpush2.msra.mxu0 0.0
    %389 = vmatprep.subr.mxu0 0.0
    %390 = vmatpush2.msra.mxu0 0.0
    %391 = vmatprep.subr.mxu0 0.0
    %392 = vmatpush2.msra.mxu0 0.0
    %393 = vmatprep.subr.mxu0 0.0
    %394 = vmatpush2.msra.mxu0 0.0
    %395 = vmatprep.subr.mxu0 0.0
    %396 = vmatpush2.msra.mxu0 0.0
    %397 = vmatprep.subr.mxu0 0.0
    %398 = vmatpush2.msra.mxu0 0.0
    %399 = vmatprep.subr.mxu0 0.0
    %400 = vmatpush2.msra.mxu0 0.0
    %401 = vmatprep.subr.mxu0 0.0
    %402 = vmatpush2.msra.mxu0 0.0
    %403 = vmatprep.subr.mxu0 0.0
    %404 = vmatpush2.msra.mxu0 0.0
    %405 = vmatprep.subr.mxu0 0.0
    %406 = vmatpush2.msra.mxu0 0.0
    %407 = vmatprep.subr.mxu0 0.0
    %408 = vmatpush2.msra.mxu0 0.0
    %409 = vmatprep.subr.mxu0 0.0
    %410 = vmatpush2.msra.mxu0 0.0
    %411 = vmatprep.mubr.f32.mxu0 0.0
    %412 = vmatmul.mubr.f32.gmra.mxu0 %v345
    %v413 = vpop.f32.mrf.mxu0
    %v414 = vadd.f32 0.0, %v413
    %v415 = vpop.f32.mrf.mxu0
    %416 = vdwg.mxu0
    %v418 = vrot.slane %v414, 6
    %v420 = vadd.f32 %v229, %v418
    %v421 = vxor.u32 %v420, 2147483648
    %v422 = vmul.f32 %v421, 1.442695
    %v423 = vpow.pop %v422
    %v424 = vadd.f32 %v423, 1.0
    %v425 = vrcp.pop %v424
    %v426 = vmul.f32 1.0, %v425
    %v427 = vtanh.pop %v420
    %v429 = vrot.slane %v332, 6
    %v431 = vmul.f32 %v426, %v429
    %433 = vrot.lane.b32.xlu0 %v427, 64
    %v434 = vpop.permute.xlu0 %433
    %v436 = vmul.f32 %v426, %v434
    %438 = vrot.lane.b32.xlu0 %v436, 32
    %v439 = vpop.permute.xlu0 %438
    %v441 = vadd.f32 %v431, %v439
    %v442 = vtanh.pop %v441
    %444 = vrot.lane.b32.xlu0 %v442, 64
    %v445 = vpop.permute.xlu0 %444
    %v447 = vmul.f32 %v426, %v445
    %449 = vrot.lane.b32.xlu0 %v447, 32
    %v450 = vpop.permute.xlu0 %449
    %vm452 = vcmask 257026
    %453 = vst.msk [vmem:[#allocation2] sm:$0xc] %vm452, %v450
    %v454 = vrot.slane %v447, 2
    %455 = vrot.lane.b32.xlu0 %v454, 32
    %v456 = vpop.permute.xlu0 %455
    %v457 = vsel %vm155, %v456, 0
    %459 = vmatprep.subr.mxu0 0.0
    %460 = vmatpush1.msra.mxu0 0.0
    %461 = vmatprep.subr.mxu0 0.0
    %462 = vmatpush1.msra.mxu0 0.0
    %463 = vmatprep.subr.mxu0 0.0
    %464 = vmatpush1.msra.mxu0 0.0
    %465 = vmatprep.subr.mxu0 0.0
    %466 = vmatpush1.msra.mxu0 0.0
    %467 = vmatprep.subr.mxu0 0.0
    %468 = vmatpush1.msra.mxu0 0.0
    %469 = vmatprep.subr.mxu0 0.0
    %470 = vmatpush1.msra.mxu0 0.0
    %471 = vmatprep.subr.mxu0 0.0
    %472 = vmatpush1.msra.mxu0 0.0
    %473 = vmatprep.subr.mxu0 0.0
    %474 = vmatpush1.msra.mxu0 0.0
    %475 = vmatprep.subr.mxu0 0.0
    %476 = vmatpush1.msra.mxu0 0.0
    %477 = vmatprep.subr.mxu0 0.0
    %478 = vmatpush1.msra.mxu0 0.0
    %479 = vmatprep.subr.mxu0 0.0
    %480 = vmatpush1.msra.mxu0 0.0
    %481 = vmatprep.subr.mxu0 0.0
    %482 = vmatpush1.msra.mxu0 0.0
    %483 = vmatprep.subr.mxu0 0.0
    %484 = vmatpush1.msra.mxu0 %v240
    %485 = vmatprep.subr.mxu0 0.0
    %486 = vmatpush1.msra.mxu0 %v239
    %487 = vmatprep.subr.mxu0 0.0
    %488 = vmatpush1.msra.mxu0 %v238
    %489 = vmatprep.subr.mxu0 0.0
    %490 = vmatpush1.msra.mxu0 %v237
    %491 = vmatprep.subr.mxu0 0.0
    %492 = vmatpush2.msra.mxu0 0.0
    %493 = vmatprep.subr.mxu0 0.0
    %494 = vmatpush2.msra.mxu0 0.0
    %495 = vmatprep.subr.mxu0 0.0
    %496 = vmatpush2.msra.mxu0 0.0
    %497 = vmatprep.subr.mxu0 0.0
    %498 = vmatpush2.msra.mxu0 0.0
    %499 = vmatprep.subr.mxu0 0.0
    %500 = vmatpush2.msra.mxu0 0.0
    %501 = vmatprep.subr.mxu0 0.0
    %502 = vmatpush2.msra.mxu0 0.0
    %503 = vmatprep.subr.mxu0 0.0
    %504 = vmatpush2.msra.mxu0 0.0
    %505 = vmatprep.subr.mxu0 0.0
    %506 = vmatpush2.msra.mxu0 0.0
    %507 = vmatprep.subr.mxu0 0.0
    %508 = vmatpush2.msra.mxu0 0.0
    %509 = vmatprep.subr.mxu0 0.0
    %510 = vmatpush2.msra.mxu0 0.0
    %511 = vmatprep.subr.mxu0 0.0
    %512 = vmatpush2.msra.mxu0 0.0
    %513 = vmatprep.subr.mxu0 0.0
    %514 = vmatpush2.msra.mxu0 0.0
    %515 = vmatprep.subr.mxu0 0.0
    %516 = vmatpush2.msra.mxu0 0.0
    %517 = vmatprep.subr.mxu0 0.0
    %518 = vmatpush2.msra.mxu0 0.0
    %519 = vmatprep.subr.mxu0 0.0
    %520 = vmatpush2.msra.mxu0 0.0
    %521 = vmatprep.subr.mxu0 0.0
    %522 = vmatpush2.msra.mxu0 0.0
    %523 = vmatprep.mubr.f32.mxu0 0.0
    %524 = vmatmul.mubr.f32.gmra.mxu0 %v457
    %v525 = vpop.f32.mrf.mxu0
    %v526 = vadd.f32 0.0, %v525
    %v527 = vpop.f32.mrf.mxu0
    %528 = vdwg.mxu0
    %v530 = vrot.slane %v526, 4
    %v532 = vadd.f32 %v229, %v530
    %v533 = vxor.u32 %v532, 2147483648
    %v534 = vmul.f32 %v533, 1.442695
    %v535 = vpow.pop %v534
    %v536 = vadd.f32 %v535, 1.0
    %v537 = vrcp.pop %v536
    %v538 = vmul.f32 1.0, %v537
    %v539 = vtanh.pop %v532
    %v541 = vrot.slane %v441, 6
    %v543 = vmul.f32 %v538, %v541
    %545 = vrot.lane.b32.xlu0 %v539, 64
    %v546 = vpop.permute.xlu0 %545
    %v548 = vmul.f32 %v538, %v546
    %550 = vrot.lane.b32.xlu0 %v548, 32
    %v551 = vpop.permute.xlu0 %550
    %v553 = vadd.f32 %v543, %v551
    %v554 = vtanh.pop %v553
    %556 = vrot.lane.b32.xlu0 %v554, 64
    %v557 = vpop.permute.xlu0 %556
    %v559 = vmul.f32 %v538, %v557
    %561 = vrot.lane.b32.xlu0 %v559, 32
    %v562 = vpop.permute.xlu0 %561
    %vm564 = vcmask 259076
    %565 = vst.msk [vmem:[#allocation2] sm:$0x30] %vm564, %v562
    %v566 = vrot.slane %v559, 4
    %567 = vrot.lane.b32.xlu0 %v566, 32
    %v568 = vpop.permute.xlu0 %567
    %v569 = vsel %vm155, %v568, 0
    %571 = vmatprep.subr.mxu0 0.0
    %572 = vmatpush1.msra.mxu0 0.0
    %573 = vmatprep.subr.mxu0 0.0
    %574 = vmatpush1.msra.mxu0 0.0
    %575 = vmatprep.subr.mxu0 0.0
    %576 = vmatpush1.msra.mxu0 0.0
    %577 = vmatprep.subr.mxu0 0.0
    %578 = vmatpush1.msra.mxu0 0.0
    %579 = vmatprep.subr.mxu0 0.0
    %580 = vmatpush1.msra.mxu0 0.0
    %581 = vmatprep.subr.mxu0 0.0
    %582 = vmatpush1.msra.mxu0 0.0
    %583 = vmatprep.subr.mxu0 0.0
    %584 = vmatpush1.msra.mxu0 0.0
    %585 = vmatprep.subr.mxu0 0.0
    %586 = vmatpush1.msra.mxu0 0.0
    %587 = vmatprep.subr.mxu0 0.0
    %588 = vmatpush1.msra.mxu0 0.0
    %589 = vmatprep.subr.mxu0 0.0
    %590 = vmatpush1.msra.mxu0 0.0
    %591 = vmatprep.subr.mxu0 0.0
    %592 = vmatpush1.msra.mxu0 0.0
    %593 = vmatprep.subr.mxu0 0.0
    %594 = vmatpush1.msra.mxu0 0.0
    %595 = vmatprep.subr.mxu0 0.0
    %596 = vmatpush1.msra.mxu0 %v240
    %597 = vmatprep.subr.mxu0 0.0
    %598 = vmatpush1.msra.mxu0 %v239
    %599 = vmatprep.subr.mxu0 0.0
    %600 = vmatpush1.msra.mxu0 %v238
    %601 = vmatprep.subr.mxu0 0.0
    %602 = vmatpush1.msra.mxu0 %v237
    %603 = vmatprep.subr.mxu0 0.0
    %604 = vmatpush2.msra.mxu0 0.0
    %605 = vmatprep.subr.mxu0 0.0
    %606 = vmatpush2.msra.mxu0 0.0
    %607 = vmatprep.subr.mxu0 0.0
    %608 = vmatpush2.msra.mxu0 0.0
    %609 = vmatprep.subr.mxu0 0.0
    %610 = vmatpush2.msra.mxu0 0.0
    %611 = vmatprep.subr.mxu0 0.0
    %612 = vmatpush2.msra.mxu0 0.0
    %613 = vmatprep.subr.mxu0 0.0
    %614 = vmatpush2.msra.mxu0 0.0
    %615 = vmatprep.subr.mxu0 0.0
    %616 = vmatpush2.msra.mxu0 0.0
    %617 = vmatprep.subr.mxu0 0.0
    %618 = vmatpush2.msra.mxu0 0.0
    %619 = vmatprep.subr.mxu0 0.0
    %620 = vmatpush2.msra.mxu0 0.0
    %621 = vmatprep.subr.mxu0 0.0
    %622 = vmatpush2.msra.mxu0 0.0
    %623 = vmatprep.subr.mxu0 0.0
    %624 = vmatpush2.msra.mxu0 0.0
    %625 = vmatprep.subr.mxu0 0.0
    %626 = vmatpush2.msra.mxu0 0.0
    %627 = vmatprep.subr.mxu0 0.0
    %628 = vmatpush2.msra.mxu0 0.0
    %629 = vmatprep.subr.mxu0 0.0
    %630 = vmatpush2.msra.mxu0 0.0
    %631 = vmatprep.subr.mxu0 0.0
    %632 = vmatpush2.msra.mxu0 0.0
    %633 = vmatprep.subr.mxu0 0.0
    %634 = vmatpush2.msra.mxu0 0.0
    %635 = vmatprep.mubr.f32.mxu0 0.0
    %636 = vmatmul.mubr.f32.gmra.mxu0 %v569
    %v637 = vpop.f32.mrf.mxu0
    %v638 = vadd.f32 0.0, %v637
    %v639 = vpop.f32.mrf.mxu0
    %640 = vdwg.mxu0
    %v642 = vrot.slane %v638, 2
    %v644 = vadd.f32 %v229, %v642
    %v645 = vxor.u32 %v644, 2147483648
    %v646 = vmul.f32 %v645, 1.442695
    %v647 = vpow.pop %v646
    %v648 = vadd.f32 %v647, 1.0
    %v649 = vrcp.pop %v648
    %v650 = vmul.f32 1.0, %v649
    %v651 = vtanh.pop %v644
    %v653 = vrot.slane %v553, 6
    %v655 = vmul.f32 %v650, %v653
    %657 = vrot.lane.b32.xlu0 %v651, 64
    %v658 = vpop.permute.xlu0 %657
    %v660 = vmul.f32 %v650, %v658
    %662 = vrot.lane.b32.xlu0 %v660, 32
    %v663 = vpop.permute.xlu0 %662
    %v665 = vadd.f32 %v655, %v663
    %v666 = vtanh.pop %v665
    %668 = vrot.lane.b32.xlu0 %v666, 64
    %v669 = vpop.permute.xlu0 %668
    %v671 = vmul.f32 %v650, %v669
    %673 = vrot.lane.b32.xlu0 %v671, 32
    %v674 = vpop.permute.xlu0 %673
    %vm676 = vcmask 261126
    %677 = vst.msk [vmem:[#allocation2] sm:$0xc0] %vm676, %v674
    %v678 = vrot.slane %v671, 6
    %679 = vrot.lane.b32.xlu0 %v678, 32
    %v680 = vpop.permute.xlu0 %679
    %v681 = vsel %vm155, %v680, 0
    %683 = vmatprep.subr.mxu0 0.0
    %684 = vmatpush1.msra.mxu0 0.0
    %685 = vmatprep.subr.mxu0 0.0
    %686 = vmatpush1.msra.mxu0 0.0
    %687 = vmatprep.subr.mxu0 0.0
    %688 = vmatpush1.msra.mxu0 0.0
    %689 = vmatprep.subr.mxu0 0.0
    %690 = vmatpush1.msra.mxu0 0.0
    %691 = vmatprep.subr.mxu0 0.0
    %692 = vmatpush1.msra.mxu0 0.0
    %693 = vmatprep.subr.mxu0 0.0
    %694 = vmatpush1.msra.mxu0 0.0
    %695 = vmatprep.subr.mxu0 0.0
    %696 = vmatpush1.msra.mxu0 0.0
    %697 = vmatprep.subr.mxu0 0.0
    %698 = vmatpush1.msra.mxu0 0.0
    %699 = vmatprep.subr.mxu0 0.0
    %700 = vmatpush1.msra.mxu0 0.0
    %701 = vmatprep.subr.mxu0 0.0
    %702 = vmatpush1.msra.mxu0 0.0
    %703 = vmatprep.subr.mxu0 0.0
    %704 = vmatpush1.msra.mxu0 0.0
    %705 = vmatprep.subr.mxu0 0.0
    %706 = vmatpush1.msra.mxu0 0.0
    %707 = vmatprep.subr.mxu0 0.0
    %708 = vmatpush1.msra.mxu0 %v240
    %709 = vmatprep.subr.mxu0 0.0
    %710 = vmatpush1.msra.mxu0 %v239
    %711 = vmatprep.subr.mxu0 0.0
    %712 = vmatpush1.msra.mxu0 %v238
    %713 = vmatprep.subr.mxu0 0.0
    %714 = vmatpush1.msra.mxu0 %v237
    %715 = vmatprep.subr.mxu0 0.0
    %716 = vmatpush2.msra.mxu0 0.0
    %717 = vmatprep.subr.mxu0 0.0
    %718 = vmatpush2.msra.mxu0 0.0
    %719 = vmatprep.subr.mxu0 0.0
    %720 = vmatpush2.msra.mxu0 0.0
    %721 = vmatprep.subr.mxu0 0.0
    %722 = vmatpush2.msra.mxu0 0.0
    %723 = vmatprep.subr.mxu0 0.0
    %724 = vmatpush2.msra.mxu0 0.0
    %725 = vmatprep.subr.mxu0 0.0
    %726 = vmatpush2.msra.mxu0 0.0
    %727 = vmatprep.subr.mxu0 0.0
    %728 = vmatpush2.msra.mxu0 0.0
    %729 = vmatprep.subr.mxu0 0.0
    %730 = vmatpush2.msra.mxu0 0.0
    %731 = vmatprep.subr.mxu0 0.0
    %732 = vmatpush2.msra.mxu0 0.0
    %733 = vmatprep.subr.mxu0 0.0
    %734 = vmatpush2.msra.mxu0 0.0
    %735 = vmatprep.subr.mxu0 0.0
    %736 = vmatpush2.msra.mxu0 0.0
    %737 = vmatprep.subr.mxu0 0.0
    %738 = vmatpush2.msra.mxu0 0.0
    %739 = vmatprep.subr.mxu0 0.0
    %740 = vmatpush2.msra.mxu0 0.0
    %741 = vmatprep.subr.mxu0 0.0
    %742 = vmatpush2.msra.mxu0 0.0
    %743 = vmatprep.subr.mxu0 0.0
    %744 = vmatpush2.msra.mxu0 0.0
    %745 = vmatprep.subr.mxu0 0.0
    %746 = vmatpush2.msra.mxu0 0.0
    %747 = vmatprep.mubr.f32.mxu0 0.0
    %748 = vmatmul.mubr.f32.gmra.mxu0 %v681
    %v749 = vpop.f32.mrf.mxu0
    %v750 = vadd.f32 0.0, %v749
    %v751 = vpop.f32.mrf.mxu0
    %752 = vdwg.mxu0
    %v753 = vadd.f32 %v234, %v750
    %v754 = vxor.u32 %v753, 2147483648
    %v755 = vmul.f32 %v754, 1.442695
    %v756 = vpow.pop %v755
    %v757 = vadd.f32 %v756, 1.0
    %v758 = vrcp.pop %v757
    %v759 = vmul.f32 1.0, %v758
    %v760 = vtanh.pop %v753
    %v762 = vrot.slane %v665, 6
    %v764 = vmul.f32 %v759, %v762
    %766 = vrot.lane.b32.xlu0 %v760, 64
    %v767 = vpop.permute.xlu0 %766
    %v769 = vmul.f32 %v759, %v767
    %771 = vrot.lane.b32.xlu0 %v769, 32
    %v772 = vpop.permute.xlu0 %771
    %v774 = vadd.f32 %v764, %v772
    %v775 = vtanh.pop %v774
    %777 = vrot.lane.b32.xlu0 %v775, 64
    %v778 = vpop.permute.xlu0 %777
    %v780 = vmul.f32 %v759, %v778
    %782 = vrot.lane.b32.xlu0 %v780, 32
    %v783 = vpop.permute.xlu0 %782
    %785 = vst.msk [vmem:[#allocation2 + $0x8] sm:$0x3] %vm343, %v783
    %v786 = vsel %vm155, %v783, 0
    %788 = vmatprep.subr.mxu0 0.0
    %789 = vmatpush1.msra.mxu0 0.0
    %790 = vmatprep.subr.mxu0 0.0
    %791 = vmatpush1.msra.mxu0 0.0
    %792 = vmatprep.subr.mxu0 0.0
    %793 = vmatpush1.msra.mxu0 0.0
    %794 = vmatprep.subr.mxu0 0.0
    %795 = vmatpush1.msra.mxu0 0.0
    %796 = vmatprep.subr.mxu0 0.0
    %797 = vmatpush1.msra.mxu0 0.0
    %798 = vmatprep.subr.mxu0 0.0
    %799 = vmatpush1.msra.mxu0 0.0
    %800 = vmatprep.subr.mxu0 0.0
    %801 = vmatpush1.msra.mxu0 0.0
    %802 = vmatprep.subr.mxu0 0.0
    %803 = vmatpush1.msra.mxu0 0.0
    %804 = vmatprep.subr.mxu0 0.0
    %805 = vmatpush1.msra.mxu0 0.0
    %806 = vmatprep.subr.mxu0 0.0
    %807 = vmatpush1.msra.mxu0 0.0
    %808 = vmatprep.subr.mxu0 0.0
    %809 = vmatpush1.msra.mxu0 0.0
    %810 = vmatprep.subr.mxu0 0.0
    %811 = vmatpush1.msra.mxu0 0.0
    %812 = vmatprep.subr.mxu0 0.0
    %813 = vmatpush1.msra.mxu0 %v240
    %814 = vmatprep.subr.mxu0 0.0
    %815 = vmatpush1.msra.mxu0 %v239
    %816 = vmatprep.subr.mxu0 0.0
    %817 = vmatpush1.msra.mxu0 %v238
    %818 = vmatprep.subr.mxu0 0.0
    %819 = vmatpush1.msra.mxu0 %v237
    %820 = vmatprep.subr.mxu0 0.0
    %821 = vmatpush2.msra.mxu0 0.0
    %822 = vmatprep.subr.mxu0 0.0
    %823 = vmatpush2.msra.mxu0 0.0
    %824 = vmatprep.subr.mxu0 0.0
    %825 = vmatpush2.msra.mxu0 0.0
    %826 = vmatprep.subr.mxu0 0.0
    %827 = vmatpush2.msra.mxu0 0.0
    %828 = vmatprep.subr.mxu0 0.0
    %829 = vmatpush2.msra.mxu0 0.0
    %830 = vmatprep.subr.mxu0 0.0
    %831 = vmatpush2.msra.mxu0 0.0
    %832 = vmatprep.subr.mxu0 0.0
    %833 = vmatpush2.msra.mxu0 0.0
    %834 = vmatprep.subr.mxu0 0.0
    %835 = vmatpush2.msra.mxu0 0.0
    %836 = vmatprep.subr.mxu0 0.0
    %837 = vmatpush2.msra.mxu0 0.0
    %838 = vmatprep.subr.mxu0 0.0
    %839 = vmatpush2.msra.mxu0 0.0
    %840 = vmatprep.subr.mxu0 0.0
    %841 = vmatpush2.msra.mxu0 0.0
    %842 = vmatprep.subr.mxu0 0.0
    %843 = vmatpush2.msra.mxu0 0.0
    %844 = vmatprep.subr.mxu0 0.0
    %845 = vmatpush2.msra.mxu0 0.0
    %846 = vmatprep.subr.mxu0 0.0
    %847 = vmatpush2.msra.mxu0 0.0
    %848 = vmatprep.subr.mxu0 0.0
    %849 = vmatpush2.msra.mxu0 0.0
    %850 = vmatprep.subr.mxu0 0.0
    %851 = vmatpush2.msra.mxu0 0.0
    %852 = vmatprep.mubr.f32.mxu0 0.0
    %853 = vmatmul.mubr.f32.gmra.mxu0 %v786
    %v854 = vpop.f32.mrf.mxu0
    %v855 = vadd.f32 0.0, %v854
    %v856 = vpop.f32.mrf.mxu0
    %857 = vdwg.mxu0
    %v859 = vrot.slane %v855, 6
    %v861 = vadd.f32 %v234, %v859
    %v862 = vxor.u32 %v861, 2147483648
    %v863 = vmul.f32 %v862, 1.442695
    %v864 = vpow.pop %v863
    %v865 = vadd.f32 %v864, 1.0
    %v866 = vrcp.pop %v865
    %v867 = vmul.f32 1.0, %v866
    %v868 = vtanh.pop %v861
    %v870 = vrot.slane %v774, 6
    %v872 = vmul.f32 %v867, %v870
    %874 = vrot.lane.b32.xlu0 %v868, 64
    %v875 = vpop.permute.xlu0 %874
    %v877 = vmul.f32 %v867, %v875
    %879 = vrot.lane.b32.xlu0 %v877, 32
    %v880 = vpop.permute.xlu0 %879
    %v882 = vadd.f32 %v872, %v880
    %v883 = vtanh.pop %v882
    %885 = vrot.lane.b32.xlu0 %v883, 64
    %v886 = vpop.permute.xlu0 %885
    %v888 = vmul.f32 %v867, %v886
    %890 = vrot.lane.b32.xlu0 %v888, 32
    %v891 = vpop.permute.xlu0 %890
    %893 = vst.msk [vmem:[#allocation2 + $0x8] sm:$0xc] %vm452, %v891
    %v894 = vrot.slane %v888, 2
    %895 = vrot.lane.b32.xlu0 %v894, 32
    %v896 = vpop.permute.xlu0 %895
    %v897 = vsel %vm155, %v896, 0
    %899 = vmatprep.subr.mxu0 0.0
    %900 = vmatpush1.msra.mxu0 0.0
    %901 = vmatprep.subr.mxu0 0.0
    %902 = vmatpush1.msra.mxu0 0.0
    %903 = vmatprep.subr.mxu0 0.0
    %904 = vmatpush1.msra.mxu0 0.0
    %905 = vmatprep.subr.mxu0 0.0
    %906 = vmatpush1.msra.mxu0 0.0
    %907 = vmatprep.subr.mxu0 0.0
    %908 = vmatpush1.msra.mxu0 0.0
    %909 = vmatprep.subr.mxu0 0.0
    %910 = vmatpush1.msra.mxu0 0.0
    %911 = vmatprep.subr.mxu0 0.0
    %912 = vmatpush1.msra.mxu0 0.0
    %913 = vmatprep.subr.mxu0 0.0
    %914 = vmatpush1.msra.mxu0 0.0
    %915 = vmatprep.subr.mxu0 0.0
    %916 = vmatpush1.msra.mxu0 0.0
    %917 = vmatprep.subr.mxu0 0.0
    %918 = vmatpush1.msra.mxu0 0.0
    %919 = vmatprep.subr.mxu0 0.0
    %920 = vmatpush1.msra.mxu0 0.0
    %921 = vmatprep.subr.mxu0 0.0
    %922 = vmatpush1.msra.mxu0 0.0
    %923 = vmatprep.subr.mxu0 0.0
    %924 = vmatpush1.msra.mxu0 %v240
    %925 = vmatprep.subr.mxu0 0.0
    %926 = vmatpush1.msra.mxu0 %v239
    %927 = vmatprep.subr.mxu0 0.0
    %928 = vmatpush1.msra.mxu0 %v238
    %929 = vmatprep.subr.mxu0 0.0
    %930 = vmatpush1.msra.mxu0 %v237
    %931 = vmatprep.subr.mxu0 0.0
    %932 = vmatpush2.msra.mxu0 0.0
    %933 = vmatprep.subr.mxu0 0.0
    %934 = vmatpush2.msra.mxu0 0.0
    %935 = vmatprep.subr.mxu0 0.0
    %936 = vmatpush2.msra.mxu0 0.0
    %937 = vmatprep.subr.mxu0 0.0
    %938 = vmatpush2.msra.mxu0 0.0
    %939 = vmatprep.subr.mxu0 0.0
    %940 = vmatpush2.msra.mxu0 0.0
    %941 = vmatprep.subr.mxu0 0.0
    %942 = vmatpush2.msra.mxu0 0.0
    %943 = vmatprep.subr.mxu0 0.0
    %944 = vmatpush2.msra.mxu0 0.0
    %945 = vmatprep.subr.mxu0 0.0
    %946 = vmatpush2.msra.mxu0 0.0
    %947 = vmatprep.subr.mxu0 0.0
    %948 = vmatpush2.msra.mxu0 0.0
    %949 = vmatprep.subr.mxu0 0.0
    %950 = vmatpush2.msra.mxu0 0.0
    %951 = vmatprep.subr.mxu0 0.0
    %952 = vmatpush2.msra.mxu0 0.0
    %953 = vmatprep.subr.mxu0 0.0
    %954 = vmatpush2.msra.mxu0 0.0
    %955 = vmatprep.subr.mxu0 0.0
    %956 = vmatpush2.msra.mxu0 0.0
    %957 = vmatprep.subr.mxu0 0.0
    %958 = vmatpush2.msra.mxu0 0.0
    %959 = vmatprep.subr.mxu0 0.0
    %960 = vmatpush2.msra.mxu0 0.0
    %961 = vmatprep.subr.mxu0 0.0
    %962 = vmatpush2.msra.mxu0 0.0
    %963 = vmatprep.mubr.f32.mxu0 0.0
    %964 = vmatmul.mubr.f32.gmra.mxu0 %v897
    %v965 = vpop.f32.mrf.mxu0
    %v966 = vadd.f32 0.0, %v965
    %v967 = vpop.f32.mrf.mxu0
    %968 = vdwg.mxu0
    %v970 = vrot.slane %v966, 4
    %v972 = vadd.f32 %v234, %v970
    %v973 = vxor.u32 %v972, 2147483648
    %v974 = vmul.f32 %v973, 1.442695
    %v975 = vpow.pop %v974
    %v976 = vadd.f32 %v975, 1.0
    %v977 = vrcp.pop %v976
    %v978 = vmul.f32 1.0, %v977
    %v979 = vtanh.pop %v972
    %v981 = vrot.slane %v882, 6
    %v983 = vmul.f32 %v978, %v981
    %985 = vrot.lane.b32.xlu0 %v979, 64
    %v986 = vpop.permute.xlu0 %985
    %v988 = vmul.f32 %v978, %v986
    %990 = vrot.lane.b32.xlu0 %v988, 32
    %v991 = vpop.permute.xlu0 %990
    %v993 = vadd.f32 %v983, %v991
    %v994 = vtanh.pop %v993
    %996 = vrot.lane.b32.xlu0 %v994, 64
    %v997 = vpop.permute.xlu0 %996
    %v999 = vmul.f32 %v978, %v997
    %1001 = vrot.lane.b32.xlu0 %v999, 32
    %v1002 = vpop.permute.xlu0 %1001
    %1004 = vst.msk [vmem:[#allocation2 + $0x8] sm:$0x30] %vm564, %v1002
    %v1005 = vrot.slane %v999, 4
    %1006 = vrot.lane.b32.xlu0 %v1005, 32
    %v1007 = vpop.permute.xlu0 %1006
    %v1008 = vsel %vm155, %v1007, 0
    %1010 = vmatprep.subr.mxu0 0.0
    %1011 = vmatpush1.msra.mxu0 0.0
    %1012 = vmatprep.subr.mxu0 0.0
    %1013 = vmatpush1.msra.mxu0 0.0
    %1014 = vmatprep.subr.mxu0 0.0
    %1015 = vmatpush1.msra.mxu0 0.0
    %1016 = vmatprep.subr.mxu0 0.0
    %1017 = vmatpush1.msra.mxu0 0.0
    %1018 = vmatprep.subr.mxu0 0.0
    %1019 = vmatpush1.msra.mxu0 0.0
    %1020 = vmatprep.subr.mxu0 0.0
    %1021 = vmatpush1.msra.mxu0 0.0
    %1022 = vmatprep.subr.mxu0 0.0
    %1023 = vmatpush1.msra.mxu0 0.0
    %1024 = vmatprep.subr.mxu0 0.0
    %1025 = vmatpush1.msra.mxu0 0.0
    %1026 = vmatprep.subr.mxu0 0.0
    %1027 = vmatpush1.msra.mxu0 0.0
    %1028 = vmatprep.subr.mxu0 0.0
    %1029 = vmatpush1.msra.mxu0 0.0
    %1030 = vmatprep.subr.mxu0 0.0
    %1031 = vmatpush1.msra.mxu0 0.0
    %1032 = vmatprep.subr.mxu0 0.0
    %1033 = vmatpush1.msra.mxu0 0.0
    %1034 = vmatprep.subr.mxu0 0.0
    %1035 = vmatpush1.msra.mxu0 %v240
    %1036 = vmatprep.subr.mxu0 0.0
    %1037 = vmatpush1.msra.mxu0 %v239
    %1038 = vmatprep.subr.mxu0 0.0
    %1039 = vmatpush1.msra.mxu0 %v238
    %1040 = vmatprep.subr.mxu0 0.0
    %1041 = vmatpush1.msra.mxu0 %v237
    %1042 = vmatprep.subr.mxu0 0.0
    %1043 = vmatpush2.msra.mxu0 0.0
    %1044 = vmatprep.subr.mxu0 0.0
    %1045 = vmatpush2.msra.mxu0 0.0
    %1046 = vmatprep.subr.mxu0 0.0
    %1047 = vmatpush2.msra.mxu0 0.0
    %1048 = vmatprep.subr.mxu0 0.0
    %1049 = vmatpush2.msra.mxu0 0.0
    %1050 = vmatprep.subr.mxu0 0.0
    %1051 = vmatpush2.msra.mxu0 0.0
    %1052 = vmatprep.subr.mxu0 0.0
    %1053 = vmatpush2.msra.mxu0 0.0
    %1054 = vmatprep.subr.mxu0 0.0
    %1055 = vmatpush2.msra.mxu0 0.0
    %1056 = vmatprep.subr.mxu0 0.0
    %1057 = vmatpush2.msra.mxu0 0.0
    %1058 = vmatprep.subr.mxu0 0.0
    %1059 = vmatpush2.msra.mxu0 0.0
    %1060 = vmatprep.subr.mxu0 0.0
    %1061 = vmatpush2.msra.mxu0 0.0
    %1062 = vmatprep.subr.mxu0 0.0
    %1063 = vmatpush2.msra.mxu0 0.0
    %1064 = vmatprep.subr.mxu0 0.0
    %1065 = vmatpush2.msra.mxu0 0.0
    %1066 = vmatprep.subr.mxu0 0.0
    %1067 = vmatpush2.msra.mxu0 0.0
    %1068 = vmatprep.subr.mxu0 0.0
    %1069 = vmatpush2.msra.mxu0 0.0
    %1070 = vmatprep.subr.mxu0 0.0
    %1071 = vmatpush2.msra.mxu0 0.0
    %1072 = vmatprep.subr.mxu0 0.0
    %1073 = vmatpush2.msra.mxu0 0.0
    %1074 = vmatprep.mubr.f32.mxu0 0.0
    %1075 = vmatmul.mubr.f32.gmra.mxu0 %v1008
    %v1076 = vpop.f32.mrf.mxu0
    %v1077 = vadd.f32 0.0, %v1076
    %v1078 = vpop.f32.mrf.mxu0
    %1079 = vdwg.mxu0
    %v1081 = vrot.slane %v1077, 2
    %v1083 = vadd.f32 %v234, %v1081
    %v1084 = vxor.u32 %v1083, 2147483648
    %v1085 = vmul.f32 %v1084, 1.442695
    %v1086 = vpow.pop %v1085
    %v1087 = vadd.f32 %v1086, 1.0
    %v1088 = vrcp.pop %v1087
    %v1089 = vmul.f32 1.0, %v1088
    %v1090 = vtanh.pop %v1083
    %v1092 = vrot.slane %v993, 6
    %v1094 = vmul.f32 %v1089, %v1092
    %1096 = vrot.lane.b32.xlu0 %v1090, 64
    %v1097 = vpop.permute.xlu0 %1096
    %v1099 = vmul.f32 %v1089, %v1097
    %1101 = vrot.lane.b32.xlu0 %v1099, 32
    %v1102 = vpop.permute.xlu0 %1101
    %v1104 = vadd.f32 %v1094, %v1102
    %v1105 = vtanh.pop %v1104
    %1107 = vrot.lane.b32.xlu0 %v1105, 64
    %v1108 = vpop.permute.xlu0 %1107
    %v1110 = vmul.f32 %v1089, %v1108
    %1112 = vrot.lane.b32.xlu0 %v1110, 32
    %v1113 = vpop.permute.xlu0 %1112
    %1115 = vst.msk [vmem:[#allocation2 + $0x8] sm:$0xc0] %vm676, %v1113
    %v1116 = vld [vmem:[#allocation2] sm:$0xff]
    %v1117 = vld [vmem:[#allocation2 + $0x8] sm:$0xff]
    %v1118 = vld [vmem:[%s5] sm:$0xff]
    %v1119 = vld [vmem:[%s5 + $0x8] sm:$0xff]
    %v1120 = vld [vmem:[%s5 + $0x10] sm:$0xff]
    %v1121 = vld [vmem:[%s5 + $0x18] sm:$0xff]
    %v1122 = vld [vmem:[%s6] sm:$0x1]
    %v1124 = vlaneseq
    %v1125 = vshrl.u32 %v1124, 7
    %v1126 = vsub.s32 0, %v1125
    %v1127 = vrot.slane %v1122, %v1126
    %v1130 = vsel %vm155, %v1116, 0
    %v1133 = vsel %vm155, %v1117, 0
    %1135 = vmatprep.subr.mxu0 0.0
    %1136 = vmatpush1.msra.mxu0 0.0
    %1137 = vmatprep.subr.mxu0 0.0
    %1138 = vmatpush1.msra.mxu0 0.0
    %1139 = vmatprep.subr.mxu0 0.0
    %1140 = vmatpush1.msra.mxu0 0.0
    %1141 = vmatprep.subr.mxu0 0.0
    %1142 = vmatpush1.msra.mxu0 0.0
    %1143 = vmatprep.subr.mxu0 0.0
    %1144 = vmatpush1.msra.mxu0 0.0
    %1145 = vmatprep.subr.mxu0 0.0
    %1146 = vmatpush1.msra.mxu0 0.0
    %1147 = vmatprep.subr.mxu0 0.0
    %1148 = vmatpush1.msra.mxu0 0.0
    %1149 = vmatprep.subr.mxu0 0.0
    %1150 = vmatpush1.msra.mxu0 0.0
    %1151 = vmatprep.subr.mxu0 0.0
    %1152 = vmatpush1.msra.mxu0 0.0
    %1153 = vmatprep.subr.mxu0 0.0
    %1154 = vmatpush1.msra.mxu0 0.0
    %1155 = vmatprep.subr.mxu0 0.0
    %1156 = vmatpush1.msra.mxu0 0.0
    %1157 = vmatprep.subr.mxu0 0.0
    %1158 = vmatpush1.msra.mxu0 0.0
    %1159 = vmatprep.subr.mxu0 0.0
    %1160 = vmatpush1.msra.mxu0 %v1121
    %1161 = vmatprep.subr.mxu0 0.0
    %1162 = vmatpush1.msra.mxu0 %v1120
    %1163 = vmatprep.subr.mxu0 0.0
    %1164 = vmatpush1.msra.mxu0 %v1119
    %1165 = vmatprep.subr.mxu0 0.0
    %1166 = vmatpush1.msra.mxu0 %v1118
    %1167 = vmatprep.subr.mxu0 0.0
    %1168 = vmatpush2.msra.mxu0 0.0
    %1169 = vmatprep.subr.mxu0 0.0
    %1170 = vmatpush2.msra.mxu0 0.0
    %1171 = vmatprep.subr.mxu0 0.0
    %1172 = vmatpush2.msra.mxu0 0.0
    %1173 = vmatprep.subr.mxu0 0.0
    %1174 = vmatpush2.msra.mxu0 0.0
    %1175 = vmatprep.subr.mxu0 0.0
    %1176 = vmatpush2.msra.mxu0 0.0
    %1177 = vmatprep.subr.mxu0 0.0
    %1178 = vmatpush2.msra.mxu0 0.0
    %1179 = vmatprep.subr.mxu0 0.0
    %1180 = vmatpush2.msra.mxu0 0.0
    %1181 = vmatprep.subr.mxu0 0.0
    %1182 = vmatpush2.msra.mxu0 0.0
    %1183 = vmatprep.subr.mxu0 0.0
    %1184 = vmatpush2.msra.mxu0 0.0
    %1185 = vmatprep.subr.mxu0 0.0
    %1186 = vmatpush2.msra.mxu0 0.0
    %1187 = vmatprep.subr.mxu0 0.0
    %1188 = vmatpush2.msra.mxu0 0.0
    %1189 = vmatprep.subr.mxu0 0.0
    %1190 = vmatpush2.msra.mxu0 0.0
    %1191 = vmatprep.subr.mxu0 0.0
    %1192 = vmatpush2.msra.mxu0 0.0
    %1193 = vmatprep.subr.mxu0 0.0
    %1194 = vmatpush2.msra.mxu0 0.0
    %1195 = vmatprep.subr.mxu0 0.0
    %1196 = vmatpush2.msra.mxu0 0.0
    %1197 = vmatprep.subr.mxu0 0.0
    %1198 = vmatpush2.msra.mxu0 0.0
    %1199 = vmatprep.mubr.f32.mxu0 0.0
    %1200 = vmatmul.mubr.f32.gmra.mxu0 %v1130
    %v1201 = vpop.f32.mrf.mxu0
    %v1202 = vadd.f32 %v1127, %v1201
    %v1203 = vpop.f32.mrf.mxu0
    %1204 = vmatprep.mubr.f32.mxu0 0.0
    %1205 = vmatmul.mubr.f32.gmra.mxu0 %v1133
    %v1206 = vpop.f32.mrf.mxu0
    %v1207 = vadd.f32 %v1127, %v1206
    %v1208 = vpop.f32.mrf.mxu0
    %1209 = vdwg.mxu0
    %v1210 = vld [vmem:[%s1] sm:$0xff]
    %v1211 = vld [vmem:[%s1 + $0x8] sm:$0xff]
    %1213 = vset.pattern.permute.xlu0 0
    %1214 = vperm.xlu0 %1213, %v1210
    %v1215 = vpop.permute.xlu0 %1214
    %1218 = vset.pattern.permute.xlu0 0
    %1219 = vperm.xlu0 %1218, %v1211
    %v1220 = vpop.permute.xlu0 %1219
    %v1222 = vmul.f32 %v1202, %v1215
    %v1223 = vmul.f32 %v1207, %v1220
    %v1224 = vld [vmem:[%s7] sm:$0xff]
    %v1225 = vld [vmem:[%s7 + $0x8] sm:$0xff]
    %v1226 = vld [vmem:[%s8] sm:$0x1]
    %v1228 = vlaneseq
    %v1229 = vshrl.u32 %v1228, 7
    %v1230 = vsub.s32 0, %v1229
    %v1231 = vrot.slane %v1226, %v1230
    %vm1233 = vcmask 130048
    %v1235 = vsel %vm1233, %v1222, 0
    %v1238 = vsel %vm1233, %v1223, 0
    %1240 = vmatprep.subr.mxu0 0.0
    %1241 = vmatpush1.msra.mxu0 0.0
    %1242 = vmatprep.subr.mxu0 0.0
    %1243 = vmatpush1.msra.mxu0 0.0
    %1244 = vmatprep.subr.mxu0 0.0
    %1245 = vmatpush1.msra.mxu0 0.0
    %1246 = vmatprep.subr.mxu0 0.0
    %1247 = vmatpush1.msra.mxu0 0.0
    %1248 = vmatprep.subr.mxu0 0.0
    %1249 = vmatpush1.msra.mxu0 0.0
    %1250 = vmatprep.subr.mxu0 0.0
    %1251 = vmatpush1.msra.mxu0 0.0
    %1252 = vmatprep.subr.mxu0 0.0
    %1253 = vmatpush1.msra.mxu0 0.0
    %1254 = vmatprep.subr.mxu0 0.0
    %1255 = vmatpush1.msra.mxu0 0.0
    %1256 = vmatprep.subr.mxu0 0.0
    %1257 = vmatpush1.msra.mxu0 0.0
    %1258 = vmatprep.subr.mxu0 0.0
    %1259 = vmatpush1.msra.mxu0 0.0
    %1260 = vmatprep.subr.mxu0 0.0
    %1261 = vmatpush1.msra.mxu0 0.0
    %1262 = vmatprep.subr.mxu0 0.0
    %1263 = vmatpush1.msra.mxu0 0.0
    %1264 = vmatprep.subr.mxu0 0.0
    %1265 = vmatpush1.msra.mxu0 0.0
    %1266 = vmatprep.subr.mxu0 0.0
    %1267 = vmatpush1.msra.mxu0 0.0
    %1268 = vmatprep.subr.mxu0 0.0
    %1269 = vmatpush1.msra.mxu0 %v1225
    %1270 = vmatprep.subr.mxu0 0.0
    %1271 = vmatpush1.msra.mxu0 %v1224
    %1272 = vmatprep.subr.mxu0 0.0
    %1273 = vmatpush2.msra.mxu0 0.0
    %1274 = vmatprep.subr.mxu0 0.0
    %1275 = vmatpush2.msra.mxu0 0.0
    %1276 = vmatprep.subr.mxu0 0.0
    %1277 = vmatpush2.msra.mxu0 0.0
    %1278 = vmatprep.subr.mxu0 0.0
    %1279 = vmatpush2.msra.mxu0 0.0
    %1280 = vmatprep.subr.mxu0 0.0
    %1281 = vmatpush2.msra.mxu0 0.0
    %1282 = vmatprep.subr.mxu0 0.0
    %1283 = vmatpush2.msra.mxu0 0.0
    %1284 = vmatprep.subr.mxu0 0.0
    %1285 = vmatpush2.msra.mxu0 0.0
    %1286 = vmatprep.subr.mxu0 0.0
    %1287 = vmatpush2.msra.mxu0 0.0
    %1288 = vmatprep.subr.mxu0 0.0
    %1289 = vmatpush2.msra.mxu0 0.0
    %1290 = vmatprep.subr.mxu0 0.0
    %1291 = vmatpush2.msra.mxu0 0.0
    %1292 = vmatprep.subr.mxu0 0.0
    %1293 = vmatpush2.msra.mxu0 0.0
    %1294 = vmatprep.subr.mxu0 0.0
    %1295 = vmatpush2.msra.mxu0 0.0
    %1296 = vmatprep.subr.mxu0 0.0
    %1297 = vmatpush2.msra.mxu0 0.0
    %1298 = vmatprep.subr.mxu0 0.0
    %1299 = vmatpush2.msra.mxu0 0.0
    %1300 = vmatprep.subr.mxu0 0.0
    %1301 = vmatpush2.msra.mxu0 0.0
    %1302 = vmatprep.subr.mxu0 0.0
    %1303 = vmatpush2.msra.mxu0 0.0
    %1304 = vmatprep.mubr.f32.mxu0 0.0
    %1305 = vmatmul.mubr.f32.gmra.mxu0 %v1235
    %v1306 = vpop.f32.mrf.mxu0
    %v1307 = vadd.f32 %v1231, %v1306
    %v1308 = vpop.f32.mrf.mxu0
    %1309 = vmatprep.mubr.f32.mxu0 0.0
    %1310 = vmatmul.mubr.f32.gmra.mxu0 %v1238
    %v1311 = vpop.f32.mrf.mxu0
    %v1312 = vadd.f32 %v1231, %v1311
    %v1313 = vpop.f32.mrf.mxu0
    %1314 = vdwg.mxu0
    %v1315 = vld [vmem:[%s9] sm:$0xff]
    %v1316 = vld [vmem:[%s9 + $0x8] sm:$0xff]
    %v1317 = vld [vmem:[%s10] sm:$0x1]
    %v1319 = vlaneseq
    %v1320 = vshrl.u32 %v1319, 7
    %v1321 = vsub.s32 0, %v1320
    %v1322 = vrot.slane %v1317, %v1321
    %1324 = vmatprep.subr.mxu0 0.0
    %1325 = vmatpush1.msra.mxu0 0.0
    %1326 = vmatprep.subr.mxu0 0.0
    %1327 = vmatpush1.msra.mxu0 0.0
    %1328 = vmatprep.subr.mxu0 0.0
    %1329 = vmatpush1.msra.mxu0 0.0
    %1330 = vmatprep.subr.mxu0 0.0
    %1331 = vmatpush1.msra.mxu0 0.0
    %1332 = vmatprep.subr.mxu0 0.0
    %1333 = vmatpush1.msra.mxu0 0.0
    %1334 = vmatprep.subr.mxu0 0.0
    %1335 = vmatpush1.msra.mxu0 0.0
    %1336 = vmatprep.subr.mxu0 0.0
    %1337 = vmatpush1.msra.mxu0 0.0
    %1338 = vmatprep.subr.mxu0 0.0
    %1339 = vmatpush1.msra.mxu0 0.0
    %1340 = vmatprep.subr.mxu0 0.0
    %1341 = vmatpush1.msra.mxu0 0.0
    %1342 = vmatprep.subr.mxu0 0.0
    %1343 = vmatpush1.msra.mxu0 0.0
    %1344 = vmatprep.subr.mxu0 0.0
    %1345 = vmatpush1.msra.mxu0 0.0
    %1346 = vmatprep.subr.mxu0 0.0
    %1347 = vmatpush1.msra.mxu0 0.0
    %1348 = vmatprep.subr.mxu0 0.0
    %1349 = vmatpush1.msra.mxu0 0.0
    %1350 = vmatprep.subr.mxu0 0.0
    %1351 = vmatpush1.msra.mxu0 0.0
    %1352 = vmatprep.subr.mxu0 0.0
    %1353 = vmatpush1.msra.mxu0 %v1316
    %1354 = vmatprep.subr.mxu0 0.0
    %1355 = vmatpush1.msra.mxu0 %v1315
    %1356 = vmatprep.subr.mxu0 0.0
    %1357 = vmatpush2.msra.mxu0 0.0
    %1358 = vmatprep.subr.mxu0 0.0
    %1359 = vmatpush2.msra.mxu0 0.0
    %1360 = vmatprep.subr.mxu0 0.0
    %1361 = vmatpush2.msra.mxu0 0.0
    %1362 = vmatprep.subr.mxu0 0.0
    %1363 = vmatpush2.msra.mxu0 0.0
    %1364 = vmatprep.subr.mxu0 0.0
    %1365 = vmatpush2.msra.mxu0 0.0
    %1366 = vmatprep.subr.mxu0 0.0
    %1367 = vmatpush2.msra.mxu0 0.0
    %1368 = vmatprep.subr.mxu0 0.0
    %1369 = vmatpush2.msra.mxu0 0.0
    %1370 = vmatprep.subr.mxu0 0.0
    %1371 = vmatpush2.msra.mxu0 0.0
    %1372 = vmatprep.subr.mxu0 0.0
    %1373 = vmatpush2.msra.mxu0 0.0
    %1374 = vmatprep.subr.mxu0 0.0
    %1375 = vmatpush2.msra.mxu0 0.0
    %1376 = vmatprep.subr.mxu0 0.0
    %1377 = vmatpush2.msra.mxu0 0.0
    %1378 = vmatprep.subr.mxu0 0.0
    %1379 = vmatpush2.msra.mxu0 0.0
    %1380 = vmatprep.subr.mxu0 0.0
    %1381 = vmatpush2.msra.mxu0 0.0
    %1382 = vmatprep.subr.mxu0 0.0
    %1383 = vmatpush2.msra.mxu0 0.0
    %1384 = vmatprep.subr.mxu0 0.0
    %1385 = vmatpush2.msra.mxu0 0.0
    %1386 = vmatprep.subr.mxu0 0.0
    %1387 = vmatpush2.msra.mxu0 0.0
    %1388 = vmatprep.mubr.f32.mxu0 0.0
    %1389 = vmatmul.mubr.f32.gmra.mxu0 %v1235
    %v1390 = vpop.f32.mrf.mxu0
    %v1391 = vadd.f32 %v1322, %v1390
    %v1392 = vpop.f32.mrf.mxu0
    %1393 = vmatprep.mubr.f32.mxu0 0.0
    %1394 = vmatmul.mubr.f32.gmra.mxu0 %v1238
    %v1395 = vpop.f32.mrf.mxu0
    %v1396 = vadd.f32 %v1322, %v1395
    %v1397 = vpop.f32.mrf.mxu0
    %1398 = vdwg.mxu0
    %v1399 = vld [vmem:[%s11] sm:$0xff]
    %v1400 = vlaneseq
    %v1401 = vand.u32 %v1400, 127
    %v1402 = vlaneseq
    %v1403 = vshrl.u32 %v1402, 7
    %vm1404 = vcmp.eq.s32.totalorder %v1401, 1
    %v1405 = vsel %vm1404, 0.0, -10000.0
    %s1406 = sld [smem:[#allocation11]]
    %s1407 = sld [smem:[#allocation11 + $0x80]]
    %s1408 = sld [smem:[#allocation8 + $0x1]]
    %s1409 = sld [smem:[#allocation8 + $0x81]]
    %s1410 = sld [smem:[#allocation8]]
    %s1411 = sld [smem:[#allocation8 + $0x80]]
    %v1412 = vstv %s1406
    %vm1413 = vcmp.eq.s32.totalorder %v1403, 1
    %v1414 = vstv %s1407
    %v1415 = vsel %vm1413, %v1414, %v1412
    %v1416 = vstv %s1408
    %v1417 = vstv %s1409
    %v1418 = vsel %vm1413, %v1417, %v1416
    %1420 = vbcast.lane.b32.xlu0 %v1405, 256
    %v1421 = vpop.permute.xlu0 %1420
    %v1422 = vadd.f32 %v1421, %v1399
    %vm1423 = vcmask 64512
    %v1424 = vsel %vm1423, %v1422, -inf
    %v1425 = vrot.slane %v1424, 4
    %v1426 = vmax.f32 %v1424, %v1425
    %v1427 = vrot.slane %v1426, 2
    %v1428 = vmax.f32 %v1426, %v1427
    %v1429 = vrot.slane %v1428, 1
    %v1430 = vmax.f32 %v1428, %v1429
    %v1431 = vsub.f32 %v1422, %v1430
    %v1432 = vmul.f32 %v1431, 1.442695
    %v1433 = vpow.pop %v1432
    %v1434 = vsel %vm1423, %v1433, 0.0
    %v1435 = vrot.slane %v1434, 4
    %v1436 = vadd.f32 %v1434, %v1435
    %v1437 = vrot.slane %v1436, 2
    %v1438 = vadd.f32 %v1436, %v1437
    %v1439 = vrot.slane %v1438, 1
    %v1440 = vadd.f32 %v1438, %v1439
    %v1441 = vlog2.pop %v1440
    %v1442 = vmul.f32 %v1441, 0.6931472
    %v1443 = vadd.f32 %v1430, %v1442
    %vm1445 = vcmask 1041409
    %v1447 = vadd.f32 %v1307, %v1443
    %v1448 = vmul.f32 %v1415, %v1447
    %v1449 = vsub.f32 1.0, %v1415
    %v1450 = vmul.f32 %v1449, %v1405
    %v1451 = vadd.f32 %v1448, %v1450
    %vm1452 = vcmp.eq.s32.totalorder %v1401, %v1418
    %v1453 = vsel %vm1452, %v1307, 0.0
    %vm1454 = vcmask 58368
    %v1455 = vsel %vm1454, %v1453, 0.0
    %1456 = vadd.xlane.f32.xlu0 %v1455
    %v1457 = vpop.xlane.xlu0 %1456
    %s1458 = sshra.s32 %s1410, 7
    %s1459 = sand.u32 %s1410, 127
    %s1460 = sadd.s32 %s1458, %s1408
    %s1461 = smul.u32 %s1460, 128
    %s1462 = sshra.s32 %s1410, 7
    %s1463 = sand.u32 %s1410, 127
    %s1464 = sadd.s32 %s1461, %s1463
    %s1465 = sld [smem:[#allocation3 + %s1464]]
    %s1466 = sshra.s32 %s1411, 7
    %s1467 = sand.u32 %s1411, 127
    %s1468 = sadd.s32 %s1466, %s1409
    %s1469 = smul.u32 %s1468, 128
    %s1470 = sshra.s32 %s1411, 7
    %s1471 = sand.u32 %s1411, 127
    %s1472 = sadd.s32 %s1469, %s1471
    %s1473 = sld [smem:[#allocation3 + %s1472]]
    %v1474 = vstv %s1465
    %v1475 = vstv %s1473
    %v1476 = vsel %vm1413, %v1475, %v1474
    %v1477 = vadd.f32 %v1457, %v1476
    %v1478 = vmul.f32 %v1477, %v1415
    %v1479 = vadd.f32 %v1478, 0.0
    %s1480 = scvt.f32.s32.to.zero.pseudo %s1406
    %s1481 = scvt.f32.s32.to.zero.pseudo %s1407
    %s1482 = sld [smem:[#allocation11 + $0x1]]
    %s1483 = sld [smem:[#allocation11 + $0x81]]
    %s1484 = sld [smem:[#allocation8 + $0x2]]
    %s1485 = sld [smem:[#allocation8 + $0x82]]
    %v1486 = vstv %s1482
    %v1487 = vstv %s1483
    %v1488 = vsel %vm1413, %v1487, %v1486
    %v1489 = vstv %s1484
    %v1490 = vstv %s1485
    %v1491 = vsel %vm1413, %v1490, %v1489
    %v1492 = vlaneseq
    %v1493 = vshrl.u32 %v1492, 7
    %v1494 = vsub.s32 0, %v1493
    %v1495 = vrot.slane %v1451, %v1494
    %1497 = vbcast.lane.b32.xlu0 %v1495, 256
    %v1498 = vpop.permute.xlu0 %1497
    %v1499 = vlaneseq
    %v1500 = vshrl.u32 %v1499, 7
    %v1501 = vsub.s32 1, %v1500
    %v1502 = vrot.slane %v1451, %v1501
    %1504 = vbcast.lane.b32.xlu0 %v1502, 256
    %v1505 = vpop.permute.xlu0 %1504
    %v1506 = vadd.f32 %v1498, %v1399
    %v1507 = vadd.f32 %v1505, %v1399
    %v1508 = vsel %vm1423, %v1506, -inf
    %v1509 = vrot.slane %v1508, 4
    %v1510 = vmax.f32 %v1508, %v1509
    %v1511 = vrot.slane %v1510, 2
    %v1512 = vmax.f32 %v1510, %v1511
    %v1513 = vrot.slane %v1512, 1
    %v1514 = vmax.f32 %v1512, %v1513
    %v1515 = vsel %vm1423, %v1507, -inf
    %v1516 = vrot.slane %v1515, 4
    %v1517 = vmax.f32 %v1515, %v1516
    %v1518 = vrot.slane %v1517, 2
    %v1519 = vmax.f32 %v1517, %v1518
    %v1520 = vrot.slane %v1519, 1
    %v1521 = vmax.f32 %v1519, %v1520
    %v1522 = vsub.f32 %v1506, %v1514
    %v1523 = vsub.f32 %v1507, %v1521
    %v1524 = vmul.f32 %v1522, 1.442695
    %v1525 = vpow.pop %v1524
    %v1526 = vmul.f32 %v1523, 1.442695
    %v1527 = vpow.pop %v1526
    %v1528 = vsel %vm1423, %v1525, 0.0
    %v1529 = vrot.slane %v1528, 4
    %v1530 = vadd.f32 %v1528, %v1529
    %v1531 = vrot.slane %v1530, 2
    %v1532 = vadd.f32 %v1530, %v1531
    %v1533 = vrot.slane %v1532, 1
    %v1534 = vadd.f32 %v1532, %v1533
    %v1535 = vsel %vm1423, %v1527, 0.0
    %v1536 = vrot.slane %v1535, 4
    %v1537 = vadd.f32 %v1535, %v1536
    %v1538 = vrot.slane %v1537, 2
    %v1539 = vadd.f32 %v1537, %v1538
    %v1540 = vrot.slane %v1539, 1
    %v1541 = vadd.f32 %v1539, %v1540
    %v1542 = vlog2.pop %v1534
    %v1543 = vmul.f32 %v1542, 0.6931472
    %v1544 = vlog2.pop %v1541
    %v1545 = vmul.f32 %v1544, 0.6931472
    %v1546 = vadd.f32 %v1514, %v1543
    %v1547 = vadd.f32 %v1521, %v1545
    %vm1550 = vcmask 1043459
    %v1551 = vsel %vm1550, %v1547, %v1546
    %v1553 = vadd.f32 %v1307, %v1551
    %v1555 = vrot.slane %v1553, 2
    %v1557 = vmul.f32 %v1488, %v1555
    %v1558 = vsub.f32 1.0, %v1488
    %v1559 = vmul.f32 %v1558, %v1451
    %v1560 = vadd.f32 %v1557, %v1559
    %vm1561 = vcmp.eq.s32.totalorder %v1401, %v1491
    %v1563 = vrot.slane %v1307, 2
    %v1565 = vsel %vm1561, %v1563, 0.0
    %v1566 = vsel %vm1454, %v1565, 0.0
    %1567 = vadd.xlane.f32.xlu0 %v1566
    %v1568 = vpop.xlane.xlu0 %1567
    %s1569 = sshra.s32 %s1408, 7
    %s1570 = sand.u32 %s1408, 127
    %s1571 = sadd.s32 %s1569, %s1484
    %s1572 = smul.u32 %s1571, 128
    %s1573 = sshra.s32 %s1408, 7
    %s1574 = sand.u32 %s1408, 127
    %s1575 = sadd.s32 %s1572, %s1574
    %s1576 = sld [smem:[#allocation3 + %s1575]]
    %s1577 = sshra.s32 %s1409, 7
    %s1578 = sand.u32 %s1409, 127
    %s1579 = sadd.s32 %s1577, %s1485
    %s1580 = smul.u32 %s1579, 128
    %s1581 = sshra.s32 %s1409, 7
    %s1582 = sand.u32 %s1409, 127
    %s1583 = sadd.s32 %s1580, %s1582
    %s1584 = sld [smem:[#allocation3 + %s1583]]
    %v1585 = vstv %s1576
    %v1586 = vstv %s1584
    %v1587 = vsel %vm1413, %v1586, %v1585
    %v1588 = vadd.f32 %v1568, %v1587
    %v1589 = vmul.f32 %v1588, %v1488
    %v1590 = vadd.f32 %v1479, %v1589
    %s1591 = scvt.f32.s32.to.zero.pseudo %s1482
    %s1592 = sadd.s32 %s1480, %s1591
    %s1593 = scvt.f32.s32.to.zero.pseudo %s1483
    %s1594 = sadd.s32 %s1481, %s1593
    %s1595 = sld [smem:[#allocation11 + $0x2]]
    %s1596 = sld [smem:[#allocation11 + $0x82]]
    %s1597 = sld [smem:[#allocation8 + $0x3]]
    %s1598 = sld [smem:[#allocation8 + $0x83]]
    %v1599 = vstv %s1595
    %v1600 = vstv %s1596
    %v1601 = vsel %vm1413, %v1600, %v1599
    %v1602 = vstv %s1597
    %v1603 = vstv %s1598
    %v1604 = vsel %vm1413, %v1603, %v1602
    %v1605 = vlaneseq
    %v1606 = vshrl.u32 %v1605, 7
    %v1607 = vsub.s32 0, %v1606
    %v1608 = vrot.slane %v1560, %v1607
    %1610 = vbcast.lane.b32.xlu0 %v1608, 256
    %v1611 = vpop.permute.xlu0 %1610
    %v1612 = vlaneseq
    %v1613 = vshrl.u32 %v1612, 7
    %v1614 = vsub.s32 1, %v1613
    %v1615 = vrot.slane %v1560, %v1614
    %1617 = vbcast.lane.b32.xlu0 %v1615, 256
    %v1618 = vpop.permute.xlu0 %1617
    %v1619 = vadd.f32 %v1611, %v1399
    %v1620 = vadd.f32 %v1618, %v1399
    %v1621 = vsel %vm1423, %v1619, -inf
    %v1622 = vrot.slane %v1621, 4
    %v1623 = vmax.f32 %v1621, %v1622
    %v1624 = vrot.slane %v1623, 2
    %v1625 = vmax.f32 %v1623, %v1624
    %v1626 = vrot.slane %v1625, 1
    %v1627 = vmax.f32 %v1625, %v1626
    %v1628 = vsel %vm1423, %v1620, -inf
    %v1629 = vrot.slane %v1628, 4
    %v1630 = vmax.f32 %v1628, %v1629
    %v1631 = vrot.slane %v1630, 2
    %v1632 = vmax.f32 %v1630, %v1631
    %v1633 = vrot.slane %v1632, 1
    %v1634 = vmax.f32 %v1632, %v1633
    %v1635 = vsub.f32 %v1619, %v1627
    %v1636 = vsub.f32 %v1620, %v1634
    %v1637 = vmul.f32 %v1635, 1.442695
    %v1638 = vpow.pop %v1637
    %v1639 = vmul.f32 %v1636, 1.442695
    %v1640 = vpow.pop %v1639
    %v1641 = vsel %vm1423, %v1638, 0.0
    %v1642 = vrot.slane %v1641, 4
    %v1643 = vadd.f32 %v1641, %v1642
    %v1644 = vrot.slane %v1643, 2
    %v1645 = vadd.f32 %v1643, %v1644
    %v1646 = vrot.slane %v1645, 1
    %v1647 = vadd.f32 %v1645, %v1646
    %v1648 = vsel %vm1423, %v1640, 0.0
    %v1649 = vrot.slane %v1648, 4
    %v1650 = vadd.f32 %v1648, %v1649
    %v1651 = vrot.slane %v1650, 2
    %v1652 = vadd.f32 %v1650, %v1651
    %v1653 = vrot.slane %v1652, 1
    %v1654 = vadd.f32 %v1652, %v1653
    %v1655 = vlog2.pop %v1647
    %v1656 = vmul.f32 %v1655, 0.6931472
    %v1657 = vlog2.pop %v1654
    %v1658 = vmul.f32 %v1657, 0.6931472
    %v1659 = vadd.f32 %v1627, %v1656
    %v1660 = vadd.f32 %v1634, %v1658
    %vm1663 = vcmask 1045509
    %v1664 = vsel %vm1663, %v1660, %v1659
    %v1666 = vadd.f32 %v1307, %v1664
    %v1668 = vrot.slane %v1666, 4
    %v1670 = vmul.f32 %v1601, %v1668
    %v1671 = vsub.f32 1.0, %v1601
    %v1672 = vmul.f32 %v1671, %v1560
    %v1673 = vadd.f32 %v1670, %v1672
    %vm1674 = vcmp.eq.s32.totalorder %v1401, %v1604
    %v1675 = vrot.slane %v1307, 4
    %v1677 = vsel %vm1674, %v1675, 0.0
    %v1678 = vsel %vm1454, %v1677, 0.0
    %1679 = vadd.xlane.f32.xlu0 %v1678
    %v1680 = vpop.xlane.xlu0 %1679
    %s1681 = sshra.s32 %s1484, 7
    %s1682 = sand.u32 %s1484, 127
    %s1683 = sadd.s32 %s1681, %s1597
    %s1684 = smul.u32 %s1683, 128
    %s1685 = sshra.s32 %s1484, 7
    %s1686 = sand.u32 %s1484, 127
    %s1687 = sadd.s32 %s1684, %s1686
    %s1688 = sld [smem:[#allocation3 + %s1687]]
    %s1689 = sshra.s32 %s1485, 7
    %s1690 = sand.u32 %s1485, 127
    %s1691 = sadd.s32 %s1689, %s1598
    %s1692 = smul.u32 %s1691, 128
    %s1693 = sshra.s32 %s1485, 7
    %s1694 = sand.u32 %s1485, 127
    %s1695 = sadd.s32 %s1692, %s1694
    %s1696 = sld [smem:[#allocation3 + %s1695]]
    %v1697 = vstv %s1688
    %v1698 = vstv %s1696
    %v1699 = vsel %vm1413, %v1698, %v1697
    %v1700 = vadd.f32 %v1680, %v1699
    %v1701 = vmul.f32 %v1700, %v1601
    %v1702 = vadd.f32 %v1590, %v1701
    %s1703 = scvt.f32.s32.to.zero.pseudo %s1595
    %s1704 = sadd.s32 %s1592, %s1703
    %s1705 = scvt.f32.s32.to.zero.pseudo %s1596
    %s1706 = sadd.s32 %s1594, %s1705
    %s1707 = sld [smem:[#allocation11 + $0x3]]
    %s1708 = sld [smem:[#allocation11 + $0x83]]
    %s1709 = sld [smem:[#allocation8 + $0x4]]
    %s1710 = sld [smem:[#allocation8 + $0x84]]
    %v1711 = vstv %s1707
    %v1712 = vstv %s1708
    %v1713 = vsel %vm1413, %v1712, %v1711
    %v1714 = vstv %s1709
    %v1715 = vstv %s1710
    %v1716 = vsel %vm1413, %v1715, %v1714
    %v1717 = vlaneseq
    %v1718 = vshrl.u32 %v1717, 7
    %v1719 = vsub.s32 0, %v1718
    %v1720 = vrot.slane %v1673, %v1719
    %1722 = vbcast.lane.b32.xlu0 %v1720, 256
    %v1723 = vpop.permute.xlu0 %1722
    %v1724 = vlaneseq
    %v1725 = vshrl.u32 %v1724, 7
    %v1726 = vsub.s32 1, %v1725
    %v1727 = vrot.slane %v1673, %v1726
    %1729 = vbcast.lane.b32.xlu0 %v1727, 256
    %v1730 = vpop.permute.xlu0 %1729
    %v1731 = vadd.f32 %v1723, %v1399
    %v1732 = vadd.f32 %v1730, %v1399
    %v1733 = vsel %vm1423, %v1731, -inf
    %v1734 = vrot.slane %v1733, 4
    %v1735 = vmax.f32 %v1733, %v1734
    %v1736 = vrot.slane %v1735, 2
    %v1737 = vmax.f32 %v1735, %v1736
    %v1738 = vrot.slane %v1737, 1
    %v1739 = vmax.f32 %v1737, %v1738
    %v1740 = vsel %vm1423, %v1732, -inf
    %v1741 = vrot.slane %v1740, 4
    %v1742 = vmax.f32 %v1740, %v1741
    %v1743 = vrot.slane %v1742, 2
    %v1744 = vmax.f32 %v1742, %v1743
    %v1745 = vrot.slane %v1744, 1
    %v1746 = vmax.f32 %v1744, %v1745
    %v1747 = vsub.f32 %v1731, %v1739
    %v1748 = vsub.f32 %v1732, %v1746
    %v1749 = vmul.f32 %v1747, 1.442695
    %v1750 = vpow.pop %v1749
    %v1751 = vmul.f32 %v1748, 1.442695
    %v1752 = vpow.pop %v1751
    %v1753 = vsel %vm1423, %v1750, 0.0
    %v1754 = vrot.slane %v1753, 4
    %v1755 = vadd.f32 %v1753, %v1754
    %v1756 = vrot.slane %v1755, 2
    %v1757 = vadd.f32 %v1755, %v1756
    %v1758 = vrot.slane %v1757, 1
    %v1759 = vadd.f32 %v1757, %v1758
    %v1760 = vsel %vm1423, %v1752, 0.0
    %v1761 = vrot.slane %v1760, 4
    %v1762 = vadd.f32 %v1760, %v1761
    %v1763 = vrot.slane %v1762, 2
    %v1764 = vadd.f32 %v1762, %v1763
    %v1765 = vrot.slane %v1764, 1
    %v1766 = vadd.f32 %v1764, %v1765
    %v1767 = vlog2.pop %v1759
    %v1768 = vmul.f32 %v1767, 0.6931472
    %v1769 = vlog2.pop %v1766
    %v1770 = vmul.f32 %v1769, 0.6931472
    %v1771 = vadd.f32 %v1739, %v1768
    %v1772 = vadd.f32 %v1746, %v1770
    %vm1775 = vcmask 1047559
    %v1776 = vsel %vm1775, %v1772, %v1771
    %v1778 = vadd.f32 %v1307, %v1776
    %v1780 = vrot.slane %v1778, 6
    %v1782 = vmul.f32 %v1713, %v1780
    %v1783 = vsub.f32 1.0, %v1713
    %v1784 = vmul.f32 %v1783, %v1673
    %v1785 = vadd.f32 %v1782, %v1784
    %vm1786 = vcmp.eq.s32.totalorder %v1401, %v1716
    %v1787 = vrot.slane %v1307, 6
    %v1789 = vsel %vm1786, %v1787, 0.0
    %v1790 = vsel %vm1454, %v1789, 0.0
    %1791 = vadd.xlane.f32.xlu0 %v1790
    %v1792 = vpop.xlane.xlu0 %1791
    %s1793 = sshra.s32 %s1597, 7
    %s1794 = sand.u32 %s1597, 127
    %s1795 = sadd.s32 %s1793, %s1709
    %s1796 = smul.u32 %s1795, 128
    %s1797 = sshra.s32 %s1597, 7
    %s1798 = sand.u32 %s1597, 127
    %s1799 = sadd.s32 %s1796, %s1798
    %s1800 = sld [smem:[#allocation3 + %s1799]]
    %s1801 = sshra.s32 %s1598, 7
    %s1802 = sand.u32 %s1598, 127
    %s1803 = sadd.s32 %s1801, %s1710
    %s1804 = smul.u32 %s1803, 128
    %s1805 = sshra.s32 %s1598, 7
    %s1806 = sand.u32 %s1598, 127
    %s1807 = sadd.s32 %s1804, %s1806
    %s1808 = sld [smem:[#allocation3 + %s1807]]
    %v1809 = vstv %s1800
    %v1810 = vstv %s1808
    %v1811 = vsel %vm1413, %v1810, %v1809
    %v1812 = vadd.f32 %v1792, %v1811
    %v1813 = vmul.f32 %v1812, %v1713
    %v1814 = vadd.f32 %v1702, %v1813
    %s1815 = scvt.f32.s32.to.zero.pseudo %s1707
    %s1816 = sadd.s32 %s1704, %s1815
    %s1817 = scvt.f32.s32.to.zero.pseudo %s1708
    %s1818 = sadd.s32 %s1706, %s1817
    %s1819 = sld [smem:[#allocation11 + $0x4]]
    %s1820 = sld [smem:[#allocation11 + $0x84]]
    %s1821 = sld [smem:[#allocation8 + $0x5]]
    %s1822 = sld [smem:[#allocation8 + $0x85]]
    %v1823 = vstv %s1819
    %v1824 = vstv %s1820
    %v1825 = vsel %vm1413, %v1824, %v1823
    %v1826 = vstv %s1821
    %v1827 = vstv %s1822
    %v1828 = vsel %vm1413, %v1827, %v1826
    %v1829 = vlaneseq
    %v1830 = vshrl.u32 %v1829, 7
    %v1831 = vsub.s32 0, %v1830
    %v1832 = vrot.slane %v1785, %v1831
    %1834 = vbcast.lane.b32.xlu0 %v1832, 256
    %v1835 = vpop.permute.xlu0 %1834
    %v1836 = vlaneseq
    %v1837 = vshrl.u32 %v1836, 7
    %v1838 = vsub.s32 1, %v1837
    %v1839 = vrot.slane %v1785, %v1838
    %1841 = vbcast.lane.b32.xlu0 %v1839, 256
    %v1842 = vpop.permute.xlu0 %1841
    %v1843 = vadd.f32 %v1835, %v1399
    %v1844 = vadd.f32 %v1842, %v1399
    %v1845 = vsel %vm1423, %v1843, -inf
    %v1846 = vrot.slane %v1845, 4
    %v1847 = vmax.f32 %v1845, %v1846
    %v1848 = vrot.slane %v1847, 2
    %v1849 = vmax.f32 %v1847, %v1848
    %v1850 = vrot.slane %v1849, 1
    %v1851 = vmax.f32 %v1849, %v1850
    %v1852 = vsel %vm1423, %v1844, -inf
    %v1853 = vrot.slane %v1852, 4
    %v1854 = vmax.f32 %v1852, %v1853
    %v1855 = vrot.slane %v1854, 2
    %v1856 = vmax.f32 %v1854, %v1855
    %v1857 = vrot.slane %v1856, 1
    %v1858 = vmax.f32 %v1856, %v1857
    %v1859 = vsub.f32 %v1843, %v1851
    %v1860 = vsub.f32 %v1844, %v1858
    %v1861 = vmul.f32 %v1859, 1.442695
    %v1862 = vpow.pop %v1861
    %v1863 = vmul.f32 %v1860, 1.442695
    %v1864 = vpow.pop %v1863
    %v1865 = vsel %vm1423, %v1862, 0.0
    %v1866 = vrot.slane %v1865, 4
    %v1867 = vadd.f32 %v1865, %v1866
    %v1868 = vrot.slane %v1867, 2
    %v1869 = vadd.f32 %v1867, %v1868
    %v1870 = vrot.slane %v1869, 1
    %v1871 = vadd.f32 %v1869, %v1870
    %v1872 = vsel %vm1423, %v1864, 0.0
    %v1873 = vrot.slane %v1872, 4
    %v1874 = vadd.f32 %v1872, %v1873
    %v1875 = vrot.slane %v1874, 2
    %v1876 = vadd.f32 %v1874, %v1875
    %v1877 = vrot.slane %v1876, 1
    %v1878 = vadd.f32 %v1876, %v1877
    %v1879 = vlog2.pop %v1871
    %v1880 = vmul.f32 %v1879, 0.6931472
    %v1881 = vlog2.pop %v1878
    %v1882 = vmul.f32 %v1881, 0.6931472
    %v1883 = vadd.f32 %v1851, %v1880
    %v1884 = vadd.f32 %v1858, %v1882
    %v1887 = vsel %vm1445, %v1884, %v1883
    %v1889 = vadd.f32 %v1312, %v1887
    %v1890 = vmul.f32 %v1825, %v1889
    %v1891 = vsub.f32 1.0, %v1825
    %v1892 = vmul.f32 %v1891, %v1785
    %v1893 = vadd.f32 %v1890, %v1892
    %vm1894 = vcmp.eq.s32.totalorder %v1401, %v1828
    %v1895 = vsel %vm1894, %v1312, 0.0
    %v1896 = vsel %vm1454, %v1895, 0.0
    %1897 = vadd.xlane.f32.xlu0 %v1896
    %v1898 = vpop.xlane.xlu0 %1897
    %s1899 = sshra.s32 %s1709, 7
    %s1900 = sand.u32 %s1709, 127
    %s1901 = sadd.s32 %s1899, %s1821
    %s1902 = smul.u32 %s1901, 128
    %s1903 = sshra.s32 %s1709, 7
    %s1904 = sand.u32 %s1709, 127
    %s1905 = sadd.s32 %s1902, %s1904
    %s1906 = sld [smem:[#allocation3 + %s1905]]
    %s1907 = sshra.s32 %s1710, 7
    %s1908 = sand.u32 %s1710, 127
    %s1909 = sadd.s32 %s1907, %s1822
    %s1910 = smul.u32 %s1909, 128
    %s1911 = sshra.s32 %s1710, 7
    %s1912 = sand.u32 %s1710, 127
    %s1913 = sadd.s32 %s1910, %s1912
    %s1914 = sld [smem:[#allocation3 + %s1913]]
    %v1915 = vstv %s1906
    %v1916 = vstv %s1914
    %v1917 = vsel %vm1413, %v1916, %v1915
    %v1918 = vadd.f32 %v1898, %v1917
    %v1919 = vmul.f32 %v1918, %v1825
    %v1920 = vadd.f32 %v1814, %v1919
    %s1921 = scvt.f32.s32.to.zero.pseudo %s1819
    %s1922 = sadd.s32 %s1816, %s1921
    %s1923 = scvt.f32.s32.to.zero.pseudo %s1820
    %s1924 = sadd.s32 %s1818, %s1923
    %s1925 = sld [smem:[#allocation11 + $0x5]]
    %s1926 = sld [smem:[#allocation11 + $0x85]]
    %s1927 = sld [smem:[#allocation8 + $0x6]]
    %s1928 = sld [smem:[#allocation8 + $0x86]]
    %v1929 = vstv %s1925
    %v1930 = vstv %s1926
    %v1931 = vsel %vm1413, %v1930, %v1929
    %v1932 = vstv %s1927
    %v1933 = vstv %s1928
    %v1934 = vsel %vm1413, %v1933, %v1932
    %v1935 = vlaneseq
    %v1936 = vshrl.u32 %v1935, 7
    %v1937 = vsub.s32 0, %v1936
    %v1938 = vrot.slane %v1893, %v1937
    %1940 = vbcast.lane.b32.xlu0 %v1938, 256
    %v1941 = vpop.permute.xlu0 %1940
    %v1942 = vlaneseq
    %v1943 = vshrl.u32 %v1942, 7
    %v1944 = vsub.s32 1, %v1943
    %v1945 = vrot.slane %v1893, %v1944
    %1947 = vbcast.lane.b32.xlu0 %v1945, 256
    %v1948 = vpop.permute.xlu0 %1947
    %v1949 = vadd.f32 %v1941, %v1399
    %v1950 = vadd.f32 %v1948, %v1399
    %v1951 = vsel %vm1423, %v1949, -inf
    %v1952 = vrot.slane %v1951, 4
    %v1953 = vmax.f32 %v1951, %v1952
    %v1954 = vrot.slane %v1953, 2
    %v1955 = vmax.f32 %v1953, %v1954
    %v1956 = vrot.slane %v1955, 1
    %v1957 = vmax.f32 %v1955, %v1956
    %v1958 = vsel %vm1423, %v1950, -inf
    %v1959 = vrot.slane %v1958, 4
    %v1960 = vmax.f32 %v1958, %v1959
    %v1961 = vrot.slane %v1960, 2
    %v1962 = vmax.f32 %v1960, %v1961
    %v1963 = vrot.slane %v1962, 1
    %v1964 = vmax.f32 %v1962, %v1963
    %v1965 = vsub.f32 %v1949, %v1957
    %v1966 = vsub.f32 %v1950, %v1964
    %v1967 = vmul.f32 %v1965, 1.442695
    %v1968 = vpow.pop %v1967
    %v1969 = vmul.f32 %v1966, 1.442695
    %v1970 = vpow.pop %v1969
    %v1971 = vsel %vm1423, %v1968, 0.0
    %v1972 = vrot.slane %v1971, 4
    %v1973 = vadd.f32 %v1971, %v1972
    %v1974 = vrot.slane %v1973, 2
    %v1975 = vadd.f32 %v1973, %v1974
    %v1976 = vrot.slane %v1975, 1
    %v1977 = vadd.f32 %v1975, %v1976
    %v1978 = vsel %vm1423, %v1970, 0.0
    %v1979 = vrot.slane %v1978, 4
    %v1980 = vadd.f32 %v1978, %v1979
    %v1981 = vrot.slane %v1980, 2
    %v1982 = vadd.f32 %v1980, %v1981
    %v1983 = vrot.slane %v1982, 1
    %v1984 = vadd.f32 %v1982, %v1983
    %v1985 = vlog2.pop %v1977
    %v1986 = vmul.f32 %v1985, 0.6931472
    %v1987 = vlog2.pop %v1984
    %v1988 = vmul.f32 %v1987, 0.6931472
    %v1989 = vadd.f32 %v1957, %v1986
    %v1990 = vadd.f32 %v1964, %v1988
    %v1993 = vsel %vm1550, %v1990, %v1989
    %v1995 = vadd.f32 %v1312, %v1993
    %v1997 = vrot.slane %v1995, 2
    %v1999 = vmul.f32 %v1931, %v1997
    %v2000 = vsub.f32 1.0, %v1931
    %v2001 = vmul.f32 %v2000, %v1893
    %v2002 = vadd.f32 %v1999, %v2001
    %vm2003 = vcmp.eq.s32.totalorder %v1401, %v1934
    %v2005 = vrot.slane %v1312, 2
    %v2007 = vsel %vm2003, %v2005, 0.0
    %v2008 = vsel %vm1454, %v2007, 0.0
    %2009 = vadd.xlane.f32.xlu0 %v2008
    %v2010 = vpop.xlane.xlu0 %2009
    %s2011 = sshra.s32 %s1821, 7
    %s2012 = sand.u32 %s1821, 127
    %s2013 = sadd.s32 %s2011, %s1927
    %s2014 = smul.u32 %s2013, 128
    %s2015 = sshra.s32 %s1821, 7
    %s2016 = sand.u32 %s1821, 127
    %s2017 = sadd.s32 %s2014, %s2016
    %s2018 = sld [smem:[#allocation3 + %s2017]]
    %s2019 = sshra.s32 %s1822, 7
    %s2020 = sand.u32 %s1822, 127
    %s2021 = sadd.s32 %s2019, %s1928
    %s2022 = smul.u32 %s2021, 128
    %s2023 = sshra.s32 %s1822, 7
    %s2024 = sand.u32 %s1822, 127
    %s2025 = sadd.s32 %s2022, %s2024
    %s2026 = sld [smem:[#allocation3 + %s2025]]
    %v2027 = vstv %s2018
    %v2028 = vstv %s2026
    %v2029 = vsel %vm1413, %v2028, %v2027
    %v2030 = vadd.f32 %v2010, %v2029
    %v2031 = vmul.f32 %v2030, %v1931
    %v2032 = vadd.f32 %v1920, %v2031
    %s2033 = scvt.f32.s32.to.zero.pseudo %s1925
    %s2034 = sadd.s32 %s1922, %s2033
    %s2035 = scvt.f32.s32.to.zero.pseudo %s1926
    %s2036 = sadd.s32 %s1924, %s2035
    %s2037 = sld [smem:[#allocation11 + $0x6]]
    %s2038 = sld [smem:[#allocation11 + $0x86]]
    %s2039 = sld [smem:[#allocation8 + $0x7]]
    %s2040 = sld [smem:[#allocation8 + $0x87]]
    %v2041 = vstv %s2037
    %v2042 = vstv %s2038
    %v2043 = vsel %vm1413, %v2042, %v2041
    %v2044 = vstv %s2039
    %v2045 = vstv %s2040
    %v2046 = vsel %vm1413, %v2045, %v2044
    %v2047 = vlaneseq
    %v2048 = vshrl.u32 %v2047, 7
    %v2049 = vsub.s32 0, %v2048
    %v2050 = vrot.slane %v2002, %v2049
    %2052 = vbcast.lane.b32.xlu0 %v2050, 256
    %v2053 = vpop.permute.xlu0 %2052
    %v2054 = vlaneseq
    %v2055 = vshrl.u32 %v2054, 7
    %v2056 = vsub.s32 1, %v2055
    %v2057 = vrot.slane %v2002, %v2056
    %2059 = vbcast.lane.b32.xlu0 %v2057, 256
    %v2060 = vpop.permute.xlu0 %2059
    %v2061 = vadd.f32 %v2053, %v1399
    %v2062 = vadd.f32 %v2060, %v1399
    %v2063 = vsel %vm1423, %v2061, -inf
    %v2064 = vrot.slane %v2063, 4
    %v2065 = vmax.f32 %v2063, %v2064
    %v2066 = vrot.slane %v2065, 2
    %v2067 = vmax.f32 %v2065, %v2066
    %v2068 = vrot.slane %v2067, 1
    %v2069 = vmax.f32 %v2067, %v2068
    %v2070 = vsel %vm1423, %v2062, -inf
    %v2071 = vrot.slane %v2070, 4
    %v2072 = vmax.f32 %v2070, %v2071
    %v2073 = vrot.slane %v2072, 2
    %v2074 = vmax.f32 %v2072, %v2073
    %v2075 = vrot.slane %v2074, 1
    %v2076 = vmax.f32 %v2074, %v2075
    %v2077 = vsub.f32 %v2061, %v2069
    %v2078 = vsub.f32 %v2062, %v2076
    %v2079 = vmul.f32 %v2077, 1.442695
    %v2080 = vpow.pop %v2079
    %v2081 = vmul.f32 %v2078, 1.442695
    %v2082 = vpow.pop %v2081
    %v2083 = vsel %vm1423, %v2080, 0.0
    %v2084 = vrot.slane %v2083, 4
    %v2085 = vadd.f32 %v2083, %v2084
    %v2086 = vrot.slane %v2085, 2
    %v2087 = vadd.f32 %v2085, %v2086
    %v2088 = vrot.slane %v2087, 1
    %v2089 = vadd.f32 %v2087, %v2088
    %v2090 = vsel %vm1423, %v2082, 0.0
    %v2091 = vrot.slane %v2090, 4
    %v2092 = vadd.f32 %v2090, %v2091
    %v2093 = vrot.slane %v2092, 2
    %v2094 = vadd.f32 %v2092, %v2093
    %v2095 = vrot.slane %v2094, 1
    %v2096 = vadd.f32 %v2094, %v2095
    %v2097 = vlog2.pop %v2089
    %v2098 = vmul.f32 %v2097, 0.6931472
    %v2099 = vlog2.pop %v2096
    %v2100 = vmul.f32 %v2099, 0.6931472
    %v2101 = vadd.f32 %v2069, %v2098
    %v2102 = vadd.f32 %v2076, %v2100
    %v2105 = vsel %vm1663, %v2102, %v2101
    %v2107 = vadd.f32 %v1312, %v2105
    %v2109 = vrot.slane %v2107, 4
    %v2111 = vmul.f32 %v2043, %v2109
    %v2112 = vsub.f32 1.0, %v2043
    %v2113 = vmul.f32 %v2112, %v2002
    %v2114 = vadd.f32 %v2111, %v2113
    %vm2115 = vcmp.eq.s32.totalorder %v1401, %v2046
    %v2116 = vrot.slane %v1312, 4
    %v2118 = vsel %vm2115, %v2116, 0.0
    %v2119 = vsel %vm1454, %v2118, 0.0
    %2120 = vadd.xlane.f32.xlu0 %v2119
    %v2121 = vpop.xlane.xlu0 %2120
    %s2122 = sshra.s32 %s1927, 7
    %s2123 = sand.u32 %s1927, 127
    %s2124 = sadd.s32 %s2122, %s2039
    %s2125 = smul.u32 %s2124, 128
    %s2126 = sshra.s32 %s1927, 7
    %s2127 = sand.u32 %s1927, 127
    %s2128 = sadd.s32 %s2125, %s2127
    %s2129 = sld [smem:[#allocation3 + %s2128]]
    %s2130 = sshra.s32 %s1928, 7
    %s2131 = sand.u32 %s1928, 127
    %s2132 = sadd.s32 %s2130, %s2040
    %s2133 = smul.u32 %s2132, 128
    %s2134 = sshra.s32 %s1928, 7
    %s2135 = sand.u32 %s1928, 127
    %s2136 = sadd.s32 %s2133, %s2135
    %s2137 = sld [smem:[#allocation3 + %s2136]]
    %v2138 = vstv %s2129
    %v2139 = vstv %s2137
    %v2140 = vsel %vm1413, %v2139, %v2138
    %v2141 = vadd.f32 %v2121, %v2140
    %v2142 = vmul.f32 %v2141, %v2043
    %v2143 = vadd.f32 %v2032, %v2142
    %s2144 = scvt.f32.s32.to.zero.pseudo %s2037
    %s2145 = sadd.s32 %s2034, %s2144
    %s2146 = scvt.f32.s32.to.zero.pseudo %s2038
    %s2147 = sadd.s32 %s2036, %s2146
    %s2148 = sld [smem:[#allocation11 + $0x7]]
    %s2149 = sld [smem:[#allocation11 + $0x87]]
    %s2150 = sld [smem:[#allocation8 + $0x8]]
    %s2151 = sld [smem:[#allocation8 + $0x88]]
    %v2152 = vstv %s2148
    %v2153 = vstv %s2149
    %v2154 = vsel %vm1413, %v2153, %v2152
    %v2155 = vstv %s2150
    %v2156 = vstv %s2151
    %v2157 = vsel %vm1413, %v2156, %v2155
    %v2158 = vlaneseq
    %v2159 = vshrl.u32 %v2158, 7
    %v2160 = vsub.s32 0, %v2159
    %v2161 = vrot.slane %v2114, %v2160
    %2163 = vbcast.lane.b32.xlu0 %v2161, 256
    %v2164 = vpop.permute.xlu0 %2163
    %v2165 = vlaneseq
    %v2166 = vshrl.u32 %v2165, 7
    %v2167 = vsub.s32 1, %v2166
    %v2168 = vrot.slane %v2114, %v2167
    %2170 = vbcast.lane.b32.xlu0 %v2168, 256
    %v2171 = vpop.permute.xlu0 %2170
    %v2172 = vadd.f32 %v2164, %v1399
    %v2173 = vadd.f32 %v2171, %v1399
    %v2174 = vsel %vm1423, %v2172, -inf
    %v2175 = vrot.slane %v2174, 4
    %v2176 = vmax.f32 %v2174, %v2175
    %v2177 = vrot.slane %v2176, 2
    %v2178 = vmax.f32 %v2176, %v2177
    %v2179 = vrot.slane %v2178, 1
    %v2180 = vmax.f32 %v2178, %v2179
    %v2181 = vsel %vm1423, %v2173, -inf
    %v2182 = vrot.slane %v2181, 4
    %v2183 = vmax.f32 %v2181, %v2182
    %v2184 = vrot.slane %v2183, 2
    %v2185 = vmax.f32 %v2183, %v2184
    %v2186 = vrot.slane %v2185, 1
    %v2187 = vmax.f32 %v2185, %v2186
    %v2188 = vsub.f32 %v2172, %v2180
    %v2189 = vsub.f32 %v2173, %v2187
    %v2190 = vmul.f32 %v2188, 1.442695
    %v2191 = vpow.pop %v2190
    %v2192 = vmul.f32 %v2189, 1.442695
    %v2193 = vpow.pop %v2192
    %v2194 = vsel %vm1423, %v2191, 0.0
    %v2195 = vrot.slane %v2194, 4
    %v2196 = vadd.f32 %v2194, %v2195
    %v2197 = vrot.slane %v2196, 2
    %v2198 = vadd.f32 %v2196, %v2197
    %v2199 = vrot.slane %v2198, 1
    %v2200 = vadd.f32 %v2198, %v2199
    %v2201 = vsel %vm1423, %v2193, 0.0
    %v2202 = vrot.slane %v2201, 4
    %v2203 = vadd.f32 %v2201, %v2202
    %v2204 = vrot.slane %v2203, 2
    %v2205 = vadd.f32 %v2203, %v2204
    %v2206 = vrot.slane %v2205, 1
    %v2207 = vadd.f32 %v2205, %v2206
    %v2208 = vlog2.pop %v2200
    %v2209 = vmul.f32 %v2208, 0.6931472
    %v2210 = vlog2.pop %v2207
    %v2211 = vmul.f32 %v2210, 0.6931472
    %v2212 = vadd.f32 %v2180, %v2209
    %v2213 = vadd.f32 %v2187, %v2211
    %v2216 = vsel %vm1775, %v2213, %v2212
    %v2218 = vadd.f32 %v1312, %v2216
    %v2220 = vrot.slane %v2218, 6
    %v2222 = vmul.f32 %v2154, %v2220
    %v2223 = vsub.f32 1.0, %v2154
    %v2224 = vmul.f32 %v2223, %v2114
    %v2225 = vadd.f32 %v2222, %v2224
    %vm2226 = vcmp.eq.s32.totalorder %v1401, %v2157
    %v2227 = vrot.slane %v1312, 6
    %v2229 = vsel %vm2226, %v2227, 0.0
    %v2230 = vsel %vm1454, %v2229, 0.0
    %2231 = vadd.xlane.f32.xlu0 %v2230
    %v2232 = vpop.xlane.xlu0 %2231
    %s2233 = sshra.s32 %s2039, 7
    %s2234 = sand.u32 %s2039, 127
    %s2235 = sadd.s32 %s2233, %s2150
    %s2236 = smul.u32 %s2235, 128
    %s2237 = sshra.s32 %s2039, 7
    %s2238 = sand.u32 %s2039, 127
    %s2239 = sadd.s32 %s2236, %s2238
    %s2240 = sld [smem:[#allocation3 + %s2239]]
    %s2241 = sshra.s32 %s2040, 7
    %s2242 = sand.u32 %s2040, 127
    %s2243 = sadd.s32 %s2241, %s2151
    %s2244 = smul.u32 %s2243, 128
    %s2245 = sshra.s32 %s2040, 7
    %s2246 = sand.u32 %s2040, 127
    %s2247 = sadd.s32 %s2244, %s2246
    %s2248 = sld [smem:[#allocation3 + %s2247]]
    %v2249 = vstv %s2240
    %v2250 = vstv %s2248
    %v2251 = vsel %vm1413, %v2250, %v2249
    %v2252 = vadd.f32 %v2232, %v2251
    %v2253 = vmul.f32 %v2252, %v2154
    %v2254 = vadd.f32 %v2143, %v2253
    %s2255 = scvt.f32.s32.to.zero.pseudo %s2148
    %s2256 = sadd.s32 %s2145, %s2255
    %s2257 = scvt.f32.s32.to.zero.pseudo %s2149
    %s2258 = sadd.s32 %s2147, %s2257
    %v2259 = vld [vmem:[%s12] sm:$0x1]
    %v2261 = vlaneseq
    %v2262 = vshrl.u32 %v2261, 7
    %v2263 = vsub.s32 0, %v2262
    %v2264 = vrot.slane %v2259, %v2263
    %v2266 = vadd.f32 %v2225, %v2264
    %v2267 = vsel %vm1454, %v2266, -inf
    %2268 = vmax.xlane.f32.xlu0 %v2267
    %v2269 = vpop.xlane.xlu0 %2268
    %v2270 = vsub.f32 %v2266, %v2269
    %v2271 = vmul.f32 %v2270, 1.442695
    %v2272 = vpow.pop %v2271
    %v2273 = vsel %vm1454, %v2272, 0.0
    %2274 = vadd.xlane.f32.xlu0 %v2273
    %v2275 = vpop.xlane.xlu0 %2274
    %v2276 = vlog2.pop %v2275
    %v2277 = vmul.f32 %v2276, 0.6931472
    %v2278 = vadd.f32 %v2269, %v2277
    %s2279 = sld [smem:[#allocation8 + %s2256]]
    %s2280 = sshra.s32 %s2279, 7
    %s2281 = sand.u32 %s2279, 127
    %s2282 = sadd.s32 %s2280, 2
    %s2283 = smul.u32 %s2282, 128
    %s2284 = sshra.s32 %s2279, 7
    %s2285 = sand.u32 %s2279, 127
    %s2286 = sadd.s32 %s2283, %s2285
    %s2287 = sld [smem:[#allocation3 + %s2286]]
    %s2288 = sshra.s32 %s2258, 7
    %s2289 = sand.u32 %s2258, 127
    %s2290 = sadd.s32 %s2288, 1
    %s2291 = smul.u32 %s2290, 128
    %s2292 = sshra.s32 %s2258, 7
    %s2293 = sand.u32 %s2258, 127
    %s2294 = sadd.s32 %s2291, %s2293
    %s2295 = sld [smem:[#allocation8 + %s2294]]
    %s2296 = sshra.s32 %s2295, 7
    %s2297 = sand.u32 %s2295, 127
    %s2298 = sadd.s32 %s2296, 2
    %s2299 = smul.u32 %s2298, 128
    %s2300 = sshra.s32 %s2295, 7
    %s2301 = sand.u32 %s2295, 127
    %s2302 = sadd.s32 %s2299, %s2301
    %s2303 = sld [smem:[#allocation3 + %s2302]]
    %v2304 = vstv %s2287
    %v2305 = vstv %s2303
    %v2306 = vsel %vm1413, %v2305, %v2304
    %v2307 = vadd.f32 %v2254, %v2306
    %v2308 = vld [vmem:[%s13] sm:$0xff]
    %v2309 = vld [vmem:[%s13 + $0x8] sm:$0xff]
    %s2310 = sld [smem:[#allocation12]]
    %s2311 = sld [smem:[#allocation12 + $0x80]]
    %s2312 = sld [smem:[#allocation9 + $0x1]]
    %s2313 = sld [smem:[#allocation9 + $0x81]]
    %s2314 = sld [smem:[#allocation9]]
    %s2315 = sld [smem:[#allocation9 + $0x80]]
    %v2316 = vstv %s2310
    %v2317 = vstv %s2311
    %v2318 = vsel %vm1413, %v2317, %v2316
    %v2319 = vstv %s2312
    %v2320 = vstv %s2313
    %v2321 = vsel %vm1413, %v2320, %v2319
    %s2323 = sor.u32 256, 8
    %2324 = vbcast.lane.b32.xlu0 %v1405, %s2323
    %v2325 = vpop.permute.xlu0 %2324
    %v2326 = vadd.f32 %v1421, %v2308
    %v2327 = vadd.f32 %v2325, %v2309
    %v2328 = vsel %vm1233, %v2326, -inf
    %v2329 = vsel %vm1233, %v2327, -inf
    %v2330 = vmax.f32 %v2328, %v2329
    %v2331 = vrot.slane %v2330, 4
    %v2332 = vmax.f32 %v2330, %v2331
    %v2333 = vrot.slane %v2332, 2
    %v2334 = vmax.f32 %v2332, %v2333
    %v2335 = vrot.slane %v2334, 1
    %v2336 = vmax.f32 %v2334, %v2335
    %v2337 = vsub.f32 %v2326, %v2336
    %v2338 = vsub.f32 %v2327, %v2336
    %v2339 = vmul.f32 %v2337, 1.442695
    %v2340 = vpow.pop %v2339
    %v2341 = vmul.f32 %v2338, 1.442695
    %v2342 = vpow.pop %v2341
    %v2343 = vsel %vm1233, %v2340, 0.0
    %v2344 = vsel %vm1233, %v2342, 0.0
    %v2345 = vadd.f32 %v2343, %v2344
    %v2346 = vrot.slane %v2345, 4
    %v2347 = vadd.f32 %v2345, %v2346
    %v2348 = vrot.slane %v2347, 2
    %v2349 = vadd.f32 %v2347, %v2348
    %v2350 = vrot.slane %v2349, 1
    %v2351 = vadd.f32 %v2349, %v2350
    %v2352 = vlog2.pop %v2351
    %v2353 = vmul.f32 %v2352, 0.6931472
    %v2354 = vadd.f32 %v2336, %v2353
    %v2357 = vadd.f32 %v1391, %v2354
    %v2358 = vmul.f32 %v2318, %v2357
    %v2359 = vsub.f32 1.0, %v2318
    %v2360 = vmul.f32 %v2359, %v1405
    %v2361 = vadd.f32 %v2358, %v2360
    %vm2362 = vcmp.eq.s32.totalorder %v1401, %v2321
    %v2363 = vsel %vm2362, %v1391, 0.0
    %vm2364 = vcmask 123904
    %v2365 = vsel %vm2364, %v2363, 0.0
    %2366 = vadd.xlane.f32.xlu0 %v2365
    %v2367 = vpop.xlane.xlu0 %2366
    %s2368 = sshra.s32 %s2314, 7
    %s2369 = sand.u32 %s2314, 127
    %s2370 = sadd.s32 %s2368, %s2312
    %s2371 = smul.u32 %s2370, 128
    %s2372 = sshra.s32 %s2314, 7
    %s2373 = sand.u32 %s2314, 127
    %s2374 = sadd.s32 %s2371, %s2373
    %s2375 = sld [smem:[#allocation6 + %s2374]]
    %s2376 = sshra.s32 %s2315, 7
    %s2377 = sand.u32 %s2315, 127
    %s2378 = sadd.s32 %s2376, %s2313
    %s2379 = smul.u32 %s2378, 128
    %s2380 = sshra.s32 %s2315, 7
    %s2381 = sand.u32 %s2315, 127
    %s2382 = sadd.s32 %s2379, %s2381
    %s2383 = sld [smem:[#allocation6 + %s2382]]
    %v2384 = vstv %s2375
    %v2385 = vstv %s2383
    %v2386 = vsel %vm1413, %v2385, %v2384
    %v2387 = vadd.f32 %v2367, %v2386
    %v2388 = vmul.f32 %v2387, %v2318
    %v2389 = vadd.f32 %v2388, 0.0
    %s2390 = scvt.f32.s32.to.zero.pseudo %s2310
    %s2391 = scvt.f32.s32.to.zero.pseudo %s2311
    %s2392 = sld [smem:[#allocation12 + $0x1]]
    %s2393 = sld [smem:[#allocation12 + $0x81]]
    %s2394 = sld [smem:[#allocation9 + $0x2]]
    %s2395 = sld [smem:[#allocation9 + $0x82]]
    %v2396 = vstv %s2392
    %v2397 = vstv %s2393
    %v2398 = vsel %vm1413, %v2397, %v2396
    %v2399 = vstv %s2394
    %v2400 = vstv %s2395
    %v2401 = vsel %vm1413, %v2400, %v2399
    %v2402 = vlaneseq
    %v2403 = vshrl.u32 %v2402, 7
    %v2404 = vsub.s32 0, %v2403
    %v2405 = vrot.slane %v2361, %v2404
    %2407 = vbcast.lane.b32.xlu0 %v2405, 256
    %v2408 = vpop.permute.xlu0 %2407
    %s2410 = sor.u32 256, 8
    %2411 = vbcast.lane.b32.xlu0 %v2405, %s2410
    %v2412 = vpop.permute.xlu0 %2411
    %v2413 = vlaneseq
    %v2414 = vshrl.u32 %v2413, 7
    %v2415 = vsub.s32 1, %v2414
    %v2416 = vrot.slane %v2361, %v2415
    %2418 = vbcast.lane.b32.xlu0 %v2416, 256
    %v2419 = vpop.permute.xlu0 %2418
    %s2421 = sor.u32 256, 8
    %2422 = vbcast.lane.b32.xlu0 %v2416, %s2421
    %v2423 = vpop.permute.xlu0 %2422
    %v2424 = vadd.f32 %v2408, %v2308
    %v2425 = vadd.f32 %v2412, %v2309
    %v2426 = vadd.f32 %v2419, %v2308
    %v2427 = vadd.f32 %v2423, %v2309
    %v2428 = vsel %vm1233, %v2424, -inf
    %v2429 = vsel %vm1233, %v2425, -inf
    %v2430 = vmax.f32 %v2428, %v2429
    %v2431 = vrot.slane %v2430, 4
    %v2432 = vmax.f32 %v2430, %v2431
    %v2433 = vrot.slane %v2432, 2
    %v2434 = vmax.f32 %v2432, %v2433
    %v2435 = vrot.slane %v2434, 1
    %v2436 = vmax.f32 %v2434, %v2435
    %v2437 = vsel %vm1233, %v2426, -inf
    %v2438 = vsel %vm1233, %v2427, -inf
    %v2439 = vmax.f32 %v2437, %v2438
    %v2440 = vrot.slane %v2439, 4
    %v2441 = vmax.f32 %v2439, %v2440
    %v2442 = vrot.slane %v2441, 2
    %v2443 = vmax.f32 %v2441, %v2442
    %v2444 = vrot.slane %v2443, 1
    %v2445 = vmax.f32 %v2443, %v2444
    %v2446 = vsub.f32 %v2424, %v2436
    %v2447 = vsub.f32 %v2425, %v2436
    %v2448 = vsub.f32 %v2426, %v2445
    %v2449 = vsub.f32 %v2427, %v2445
    %v2450 = vmul.f32 %v2446, 1.442695
    %v2451 = vpow.pop %v2450
    %v2452 = vmul.f32 %v2447, 1.442695
    %v2453 = vpow.pop %v2452
    %v2454 = vmul.f32 %v2448, 1.442695
    %v2455 = vpow.pop %v2454
    %v2456 = vmul.f32 %v2449, 1.442695
    %v2457 = vpow.pop %v2456
    %v2458 = vsel %vm1233, %v2451, 0.0
    %v2459 = vsel %vm1233, %v2453, 0.0
    %v2460 = vadd.f32 %v2458, %v2459
    %v2461 = vrot.slane %v2460, 4
    %v2462 = vadd.f32 %v2460, %v2461
    %v2463 = vrot.slane %v2462, 2
    %v2464 = vadd.f32 %v2462, %v2463
    %v2465 = vrot.slane %v2464, 1
    %v2466 = vadd.f32 %v2464, %v2465
    %v2467 = vsel %vm1233, %v2455, 0.0
    %v2468 = vsel %vm1233, %v2457, 0.0
    %v2469 = vadd.f32 %v2467, %v2468
    %v2470 = vrot.slane %v2469, 4
    %v2471 = vadd.f32 %v2469, %v2470
    %v2472 = vrot.slane %v2471, 2
    %v2473 = vadd.f32 %v2471, %v2472
    %v2474 = vrot.slane %v2473, 1
    %v2475 = vadd.f32 %v2473, %v2474
    %v2476 = vlog2.pop %v2466
    %v2477 = vmul.f32 %v2476, 0.6931472
    %v2478 = vlog2.pop %v2475
    %v2479 = vmul.f32 %v2478, 0.6931472
    %v2480 = vadd.f32 %v2436, %v2477
    %v2481 = vadd.f32 %v2445, %v2479
    %v2484 = vsel %vm1550, %v2481, %v2480
    %v2486 = vadd.f32 %v1391, %v2484
    %v2488 = vrot.slane %v2486, 2
    %v2490 = vmul.f32 %v2398, %v2488
    %v2491 = vsub.f32 1.0, %v2398
    %v2492 = vmul.f32 %v2491, %v2361
    %v2493 = vadd.f32 %v2490, %v2492
    %vm2494 = vcmp.eq.s32.totalorder %v1401, %v2401
    %v2496 = vrot.slane %v1391, 2
    %v2498 = vsel %vm2494, %v2496, 0.0
    %v2499 = vsel %vm2364, %v2498, 0.0
    %2500 = vadd.xlane.f32.xlu0 %v2499
    %v2501 = vpop.xlane.xlu0 %2500
    %s2502 = sshra.s32 %s2312, 7
    %s2503 = sand.u32 %s2312, 127
    %s2504 = sadd.s32 %s2502, %s2394
    %s2505 = smul.u32 %s2504, 128
    %s2506 = sshra.s32 %s2312, 7
    %s2507 = sand.u32 %s2312, 127
    %s2508 = sadd.s32 %s2505, %s2507
    %s2509 = sld [smem:[#allocation6 + %s2508]]
    %s2510 = sshra.s32 %s2313, 7
    %s2511 = sand.u32 %s2313, 127
    %s2512 = sadd.s32 %s2510, %s2395
    %s2513 = smul.u32 %s2512, 128
    %s2514 = sshra.s32 %s2313, 7
    %s2515 = sand.u32 %s2313, 127
    %s2516 = sadd.s32 %s2513, %s2515
    %s2517 = sld [smem:[#allocation6 + %s2516]]
    %v2518 = vstv %s2509
    %v2519 = vstv %s2517
    %v2520 = vsel %vm1413, %v2519, %v2518
    %v2521 = vadd.f32 %v2501, %v2520
    %v2522 = vmul.f32 %v2521, %v2398
    %v2523 = vadd.f32 %v2389, %v2522
    %s2524 = scvt.f32.s32.to.zero.pseudo %s2392
    %s2525 = sadd.s32 %s2390, %s2524
    %s2526 = scvt.f32.s32.to.zero.pseudo %s2393
    %s2527 = sadd.s32 %s2391, %s2526
    %s2528 = sld [smem:[#allocation12 + $0x2]]
    %s2529 = sld [smem:[#allocation12 + $0x82]]
    %s2530 = sld [smem:[#allocation9 + $0x3]]
    %s2531 = sld [smem:[#allocation9 + $0x83]]
    %v2532 = vstv %s2528
    %v2533 = vstv %s2529
    %v2534 = vsel %vm1413, %v2533, %v2532
    %v2535 = vstv %s2530
    %v2536 = vstv %s2531
    %v2537 = vsel %vm1413, %v2536, %v2535
    %v2538 = vlaneseq
    %v2539 = vshrl.u32 %v2538, 7
    %v2540 = vsub.s32 0, %v2539
    %v2541 = vrot.slane %v2493, %v2540
    %2543 = vbcast.lane.b32.xlu0 %v2541, 256
    %v2544 = vpop.permute.xlu0 %2543
    %s2546 = sor.u32 256, 8
    %2547 = vbcast.lane.b32.xlu0 %v2541, %s2546
    %v2548 = vpop.permute.xlu0 %2547
    %v2549 = vlaneseq
    %v2550 = vshrl.u32 %v2549, 7
    %v2551 = vsub.s32 1, %v2550
    %v2552 = vrot.slane %v2493, %v2551
    %2554 = vbcast.lane.b32.xlu0 %v2552, 256
    %v2555 = vpop.permute.xlu0 %2554
    %s2557 = sor.u32 256, 8
    %2558 = vbcast.lane.b32.xlu0 %v2552, %s2557
    %v2559 = vpop.permute.xlu0 %2558
    %v2560 = vadd.f32 %v2544, %v2308
    %v2561 = vadd.f32 %v2548, %v2309
    %v2562 = vadd.f32 %v2555, %v2308
    %v2563 = vadd.f32 %v2559, %v2309
    %v2564 = vsel %vm1233, %v2560, -inf
    %v2565 = vsel %vm1233, %v2561, -inf
    %v2566 = vmax.f32 %v2564, %v2565
    %v2567 = vrot.slane %v2566, 4
    %v2568 = vmax.f32 %v2566, %v2567
    %v2569 = vrot.slane %v2568, 2
    %v2570 = vmax.f32 %v2568, %v2569
    %v2571 = vrot.slane %v2570, 1
    %v2572 = vmax.f32 %v2570, %v2571
    %v2573 = vsel %vm1233, %v2562, -inf
    %v2574 = vsel %vm1233, %v2563, -inf
    %v2575 = vmax.f32 %v2573, %v2574
    %v2576 = vrot.slane %v2575, 4
    %v2577 = vmax.f32 %v2575, %v2576
    %v2578 = vrot.slane %v2577, 2
    %v2579 = vmax.f32 %v2577, %v2578
    %v2580 = vrot.slane %v2579, 1
    %v2581 = vmax.f32 %v2579, %v2580
    %v2582 = vsub.f32 %v2560, %v2572
    %v2583 = vsub.f32 %v2561, %v2572
    %v2584 = vsub.f32 %v2562, %v2581
    %v2585 = vsub.f32 %v2563, %v2581
    %v2586 = vmul.f32 %v2582, 1.442695
    %v2587 = vpow.pop %v2586
    %v2588 = vmul.f32 %v2583, 1.442695
    %v2589 = vpow.pop %v2588
    %v2590 = vmul.f32 %v2584, 1.442695
    %v2591 = vpow.pop %v2590
    %v2592 = vmul.f32 %v2585, 1.442695
    %v2593 = vpow.pop %v2592
    %v2594 = vsel %vm1233, %v2587, 0.0
    %v2595 = vsel %vm1233, %v2589, 0.0
    %v2596 = vadd.f32 %v2594, %v2595
    %v2597 = vrot.slane %v2596, 4
    %v2598 = vadd.f32 %v2596, %v2597
    %v2599 = vrot.slane %v2598, 2
    %v2600 = vadd.f32 %v2598, %v2599
    %v2601 = vrot.slane %v2600, 1
    %v2602 = vadd.f32 %v2600, %v2601
    %v2603 = vsel %vm1233, %v2591, 0.0
    %v2604 = vsel %vm1233, %v2593, 0.0
    %v2605 = vadd.f32 %v2603, %v2604
    %v2606 = vrot.slane %v2605, 4
    %v2607 = vadd.f32 %v2605, %v2606
    %v2608 = vrot.slane %v2607, 2
    %v2609 = vadd.f32 %v2607, %v2608
    %v2610 = vrot.slane %v2609, 1
    %v2611 = vadd.f32 %v2609, %v2610
    %v2612 = vlog2.pop %v2602
    %v2613 = vmul.f32 %v2612, 0.6931472
    %v2614 = vlog2.pop %v2611
    %v2615 = vmul.f32 %v2614, 0.6931472
    %v2616 = vadd.f32 %v2572, %v2613
    %v2617 = vadd.f32 %v2581, %v2615
    %v2620 = vsel %vm1663, %v2617, %v2616
    %v2622 = vadd.f32 %v1391, %v2620
    %v2624 = vrot.slane %v2622, 4
    %v2626 = vmul.f32 %v2534, %v2624
    %v2627 = vsub.f32 1.0, %v2534
    %v2628 = vmul.f32 %v2627, %v2493
    %v2629 = vadd.f32 %v2626, %v2628
    %vm2630 = vcmp.eq.s32.totalorder %v1401, %v2537
    %v2631 = vrot.slane %v1391, 4
    %v2633 = vsel %vm2630, %v2631, 0.0
    %v2634 = vsel %vm2364, %v2633, 0.0
    %2635 = vadd.xlane.f32.xlu0 %v2634
    %v2636 = vpop.xlane.xlu0 %2635
    %s2637 = sshra.s32 %s2394, 7
    %s2638 = sand.u32 %s2394, 127
    %s2639 = sadd.s32 %s2637, %s2530
    %s2640 = smul.u32 %s2639, 128
    %s2641 = sshra.s32 %s2394, 7
    %s2642 = sand.u32 %s2394, 127
    %s2643 = sadd.s32 %s2640, %s2642
    %s2644 = sld [smem:[#allocation6 + %s2643]]
    %s2645 = sshra.s32 %s2395, 7
    %s2646 = sand.u32 %s2395, 127
    %s2647 = sadd.s32 %s2645, %s2531
    %s2648 = smul.u32 %s2647, 128
    %s2649 = sshra.s32 %s2395, 7
    %s2650 = sand.u32 %s2395, 127
    %s2651 = sadd.s32 %s2648, %s2650
    %s2652 = sld [smem:[#allocation6 + %s2651]]
    %v2653 = vstv %s2644
    %v2654 = vstv %s2652
    %v2655 = vsel %vm1413, %v2654, %v2653
    %v2656 = vadd.f32 %v2636, %v2655
    %v2657 = vmul.f32 %v2656, %v2534
    %v2658 = vadd.f32 %v2523, %v2657
    %s2659 = scvt.f32.s32.to.zero.pseudo %s2528
    %s2660 = sadd.s32 %s2525, %s2659
    %s2661 = scvt.f32.s32.to.zero.pseudo %s2529
    %s2662 = sadd.s32 %s2527, %s2661
    %s2663 = sld [smem:[#allocation12 + $0x3]]
    %s2664 = sld [smem:[#allocation12 + $0x83]]
    %s2665 = sld [smem:[#allocation9 + $0x4]]
    %s2666 = sld [smem:[#allocation9 + $0x84]]
    %v2667 = vstv %s2663
    %v2668 = vstv %s2664
    %v2669 = vsel %vm1413, %v2668, %v2667
    %v2670 = vstv %s2665
    %v2671 = vstv %s2666
    %v2672 = vsel %vm1413, %v2671, %v2670
    %v2673 = vlaneseq
    %v2674 = vshrl.u32 %v2673, 7
    %v2675 = vsub.s32 0, %v2674
    %v2676 = vrot.slane %v2629, %v2675
    %2678 = vbcast.lane.b32.xlu0 %v2676, 256
    %v2679 = vpop.permute.xlu0 %2678
    %s2681 = sor.u32 256, 8
    %2682 = vbcast.lane.b32.xlu0 %v2676, %s2681
    %v2683 = vpop.permute.xlu0 %2682
    %v2684 = vlaneseq
    %v2685 = vshrl.u32 %v2684, 7
    %v2686 = vsub.s32 1, %v2685
    %v2687 = vrot.slane %v2629, %v2686
    %2689 = vbcast.lane.b32.xlu0 %v2687, 256
    %v2690 = vpop.permute.xlu0 %2689
    %s2692 = sor.u32 256, 8
    %2693 = vbcast.lane.b32.xlu0 %v2687, %s2692
    %v2694 = vpop.permute.xlu0 %2693
    %v2695 = vadd.f32 %v2679, %v2308
    %v2696 = vadd.f32 %v2683, %v2309
    %v2697 = vadd.f32 %v2690, %v2308
    %v2698 = vadd.f32 %v2694, %v2309
    %v2699 = vsel %vm1233, %v2695, -inf
    %v2700 = vsel %vm1233, %v2696, -inf
    %v2701 = vmax.f32 %v2699, %v2700
    %v2702 = vrot.slane %v2701, 4
    %v2703 = vmax.f32 %v2701, %v2702
    %v2704 = vrot.slane %v2703, 2
    %v2705 = vmax.f32 %v2703, %v2704
    %v2706 = vrot.slane %v2705, 1
    %v2707 = vmax.f32 %v2705, %v2706
    %v2708 = vsel %vm1233, %v2697, -inf
    %v2709 = vsel %vm1233, %v2698, -inf
    %v2710 = vmax.f32 %v2708, %v2709
    %v2711 = vrot.slane %v2710, 4
    %v2712 = vmax.f32 %v2710, %v2711
    %v2713 = vrot.slane %v2712, 2
    %v2714 = vmax.f32 %v2712, %v2713
    %v2715 = vrot.slane %v2714, 1
    %v2716 = vmax.f32 %v2714, %v2715
    %v2717 = vsub.f32 %v2695, %v2707
    %v2718 = vsub.f32 %v2696, %v2707
    %v2719 = vsub.f32 %v2697, %v2716
    %v2720 = vsub.f32 %v2698, %v2716
    %v2721 = vmul.f32 %v2717, 1.442695
    %v2722 = vpow.pop %v2721
    %v2723 = vmul.f32 %v2718, 1.442695
    %v2724 = vpow.pop %v2723
    %v2725 = vmul.f32 %v2719, 1.442695
    %v2726 = vpow.pop %v2725
    %v2727 = vmul.f32 %v2720, 1.442695
    %v2728 = vpow.pop %v2727
    %v2729 = vsel %vm1233, %v2722, 0.0
    %v2730 = vsel %vm1233, %v2724, 0.0
    %v2731 = vadd.f32 %v2729, %v2730
    %v2732 = vrot.slane %v2731, 4
    %v2733 = vadd.f32 %v2731, %v2732
    %v2734 = vrot.slane %v2733, 2
    %v2735 = vadd.f32 %v2733, %v2734
    %v2736 = vrot.slane %v2735, 1
    %v2737 = vadd.f32 %v2735, %v2736
    %v2738 = vsel %vm1233, %v2726, 0.0
    %v2739 = vsel %vm1233, %v2728, 0.0
    %v2740 = vadd.f32 %v2738, %v2739
    %v2741 = vrot.slane %v2740, 4
    %v2742 = vadd.f32 %v2740, %v2741
    %v2743 = vrot.slane %v2742, 2
    %v2744 = vadd.f32 %v2742, %v2743
    %v2745 = vrot.slane %v2744, 1
    %v2746 = vadd.f32 %v2744, %v2745
    %v2747 = vlog2.pop %v2737
    %v2748 = vmul.f32 %v2747, 0.6931472
    %v2749 = vlog2.pop %v2746
    %v2750 = vmul.f32 %v2749, 0.6931472
    %v2751 = vadd.f32 %v2707, %v2748
    %v2752 = vadd.f32 %v2716, %v2750
    %v2755 = vsel %vm1775, %v2752, %v2751
    %v2757 = vadd.f32 %v1391, %v2755
    %v2759 = vrot.slane %v2757, 6
    %v2761 = vmul.f32 %v2669, %v2759
    %v2762 = vsub.f32 1.0, %v2669
    %v2763 = vmul.f32 %v2762, %v2629
    %v2764 = vadd.f32 %v2761, %v2763
    %vm2765 = vcmp.eq.s32.totalorder %v1401, %v2672
    %v2766 = vrot.slane %v1391, 6
    %v2768 = vsel %vm2765, %v2766, 0.0
    %v2769 = vsel %vm2364, %v2768, 0.0
    %2770 = vadd.xlane.f32.xlu0 %v2769
    %v2771 = vpop.xlane.xlu0 %2770
    %s2772 = sshra.s32 %s2530, 7
    %s2773 = sand.u32 %s2530, 127
    %s2774 = sadd.s32 %s2772, %s2665
    %s2775 = smul.u32 %s2774, 128
    %s2776 = sshra.s32 %s2530, 7
    %s2777 = sand.u32 %s2530, 127
    %s2778 = sadd.s32 %s2775, %s2777
    %s2779 = sld [smem:[#allocation6 + %s2778]]
    %s2780 = sshra.s32 %s2531, 7
    %s2781 = sand.u32 %s2531, 127
    %s2782 = sadd.s32 %s2780, %s2666
    %s2783 = smul.u32 %s2782, 128
    %s2784 = sshra.s32 %s2531, 7
    %s2785 = sand.u32 %s2531, 127
    %s2786 = sadd.s32 %s2783, %s2785
    %s2787 = sld [smem:[#allocation6 + %s2786]]
    %v2788 = vstv %s2779
    %v2789 = vstv %s2787
    %v2790 = vsel %vm1413, %v2789, %v2788
    %v2791 = vadd.f32 %v2771, %v2790
    %v2792 = vmul.f32 %v2791, %v2669
    %v2793 = vadd.f32 %v2658, %v2792
    %s2794 = scvt.f32.s32.to.zero.pseudo %s2663
    %s2795 = sadd.s32 %s2660, %s2794
    %s2796 = scvt.f32.s32.to.zero.pseudo %s2664
    %s2797 = sadd.s32 %s2662, %s2796
    %s2798 = sld [smem:[#allocation12 + $0x4]]
    %s2799 = sld [smem:[#allocation12 + $0x84]]
    %s2800 = sld [smem:[#allocation9 + $0x5]]
    %s2801 = sld [smem:[#allocation9 + $0x85]]
    %v2802 = vstv %s2798
    %v2803 = vstv %s2799
    %v2804 = vsel %vm1413, %v2803, %v2802
    %v2805 = vstv %s2800
    %v2806 = vstv %s2801
    %v2807 = vsel %vm1413, %v2806, %v2805
    %v2808 = vlaneseq
    %v2809 = vshrl.u32 %v2808, 7
    %v2810 = vsub.s32 0, %v2809
    %v2811 = vrot.slane %v2764, %v2810
    %2813 = vbcast.lane.b32.xlu0 %v2811, 256
    %v2814 = vpop.permute.xlu0 %2813
    %s2816 = sor.u32 256, 8
    %2817 = vbcast.lane.b32.xlu0 %v2811, %s2816
    %v2818 = vpop.permute.xlu0 %2817
    %v2819 = vlaneseq
    %v2820 = vshrl.u32 %v2819, 7
    %v2821 = vsub.s32 1, %v2820
    %v2822 = vrot.slane %v2764, %v2821
    %2824 = vbcast.lane.b32.xlu0 %v2822, 256
    %v2825 = vpop.permute.xlu0 %2824
    %s2827 = sor.u32 256, 8
    %2828 = vbcast.lane.b32.xlu0 %v2822, %s2827
    %v2829 = vpop.permute.xlu0 %2828
    %v2830 = vadd.f32 %v2814, %v2308
    %v2831 = vadd.f32 %v2818, %v2309
    %v2832 = vadd.f32 %v2825, %v2308
    %v2833 = vadd.f32 %v2829, %v2309
    %v2834 = vsel %vm1233, %v2830, -inf
    %v2835 = vsel %vm1233, %v2831, -inf
    %v2836 = vmax.f32 %v2834, %v2835
    %v2837 = vrot.slane %v2836, 4
    %v2838 = vmax.f32 %v2836, %v2837
    %v2839 = vrot.slane %v2838, 2
    %v2840 = vmax.f32 %v2838, %v2839
    %v2841 = vrot.slane %v2840, 1
    %v2842 = vmax.f32 %v2840, %v2841
    %v2843 = vsel %vm1233, %v2832, -inf
    %v2844 = vsel %vm1233, %v2833, -inf
    %v2845 = vmax.f32 %v2843, %v2844
    %v2846 = vrot.slane %v2845, 4
    %v2847 = vmax.f32 %v2845, %v2846
    %v2848 = vrot.slane %v2847, 2
    %v2849 = vmax.f32 %v2847, %v2848
    %v2850 = vrot.slane %v2849, 1
    %v2851 = vmax.f32 %v2849, %v2850
    %v2852 = vsub.f32 %v2830, %v2842
    %v2853 = vsub.f32 %v2831, %v2842
    %v2854 = vsub.f32 %v2832, %v2851
    %v2855 = vsub.f32 %v2833, %v2851
    %v2856 = vmul.f32 %v2852, 1.442695
    %v2857 = vpow.pop %v2856
    %v2858 = vmul.f32 %v2853, 1.442695
    %v2859 = vpow.pop %v2858
    %v2860 = vmul.f32 %v2854, 1.442695
    %v2861 = vpow.pop %v2860
    %v2862 = vmul.f32 %v2855, 1.442695
    %v2863 = vpow.pop %v2862
    %v2864 = vsel %vm1233, %v2857, 0.0
    %v2865 = vsel %vm1233, %v2859, 0.0
    %v2866 = vadd.f32 %v2864, %v2865
    %v2867 = vrot.slane %v2866, 4
    %v2868 = vadd.f32 %v2866, %v2867
    %v2869 = vrot.slane %v2868, 2
    %v2870 = vadd.f32 %v2868, %v2869
    %v2871 = vrot.slane %v2870, 1
    %v2872 = vadd.f32 %v2870, %v2871
    %v2873 = vsel %vm1233, %v2861, 0.0
    %v2874 = vsel %vm1233, %v2863, 0.0
    %v2875 = vadd.f32 %v2873, %v2874
    %v2876 = vrot.slane %v2875, 4
    %v2877 = vadd.f32 %v2875, %v2876
    %v2878 = vrot.slane %v2877, 2
    %v2879 = vadd.f32 %v2877, %v2878
    %v2880 = vrot.slane %v2879, 1
    %v2881 = vadd.f32 %v2879, %v2880
    %v2882 = vlog2.pop %v2872
    %v2883 = vmul.f32 %v2882, 0.6931472
    %v2884 = vlog2.pop %v2881
    %v2885 = vmul.f32 %v2884, 0.6931472
    %v2886 = vadd.f32 %v2842, %v2883
    %v2887 = vadd.f32 %v2851, %v2885
    %v2890 = vsel %vm1445, %v2887, %v2886
    %v2892 = vadd.f32 %v1396, %v2890
    %v2893 = vmul.f32 %v2804, %v2892
    %v2894 = vsub.f32 1.0, %v2804
    %v2895 = vmul.f32 %v2894, %v2764
    %v2896 = vadd.f32 %v2893, %v2895
    %vm2897 = vcmp.eq.s32.totalorder %v1401, %v2807
    %v2898 = vsel %vm2897, %v1396, 0.0
    %v2899 = vsel %vm2364, %v2898, 0.0
    %2900 = vadd.xlane.f32.xlu0 %v2899
    %v2901 = vpop.xlane.xlu0 %2900
    %s2902 = sshra.s32 %s2665, 7
    %s2903 = sand.u32 %s2665, 127
    %s2904 = sadd.s32 %s2902, %s2800
    %s2905 = smul.u32 %s2904, 128
    %s2906 = sshra.s32 %s2665, 7
    %s2907 = sand.u32 %s2665, 127
    %s2908 = sadd.s32 %s2905, %s2907
    %s2909 = sld [smem:[#allocation6 + %s2908]]
    %s2910 = sshra.s32 %s2666, 7
    %s2911 = sand.u32 %s2666, 127
    %s2912 = sadd.s32 %s2910, %s2801
    %s2913 = smul.u32 %s2912, 128
    %s2914 = sshra.s32 %s2666, 7
    %s2915 = sand.u32 %s2666, 127
    %s2916 = sadd.s32 %s2913, %s2915
    %s2917 = sld [smem:[#allocation6 + %s2916]]
    %v2918 = vstv %s2909
    %v2919 = vstv %s2917
    %v2920 = vsel %vm1413, %v2919, %v2918
    %v2921 = vadd.f32 %v2901, %v2920
    %v2922 = vmul.f32 %v2921, %v2804
    %v2923 = vadd.f32 %v2793, %v2922
    %s2924 = scvt.f32.s32.to.zero.pseudo %s2798
    %s2925 = sadd.s32 %s2795, %s2924
    %s2926 = scvt.f32.s32.to.zero.pseudo %s2799
    %s2927 = sadd.s32 %s2797, %s2926
    %s2928 = sld [smem:[#allocation12 + $0x5]]
    %s2929 = sld [smem:[#allocation12 + $0x85]]
    %s2930 = sld [smem:[#allocation9 + $0x6]]
    %s2931 = sld [smem:[#allocation9 + $0x86]]
    %v2932 = vstv %s2928
    %v2933 = vstv %s2929
    %v2934 = vsel %vm1413, %v2933, %v2932
    %v2935 = vstv %s2930
    %v2936 = vstv %s2931
    %v2937 = vsel %vm1413, %v2936, %v2935
    %v2938 = vlaneseq
    %v2939 = vshrl.u32 %v2938, 7
    %v2940 = vsub.s32 0, %v2939
    %v2941 = vrot.slane %v2896, %v2940
    %2943 = vbcast.lane.b32.xlu0 %v2941, 256
    %v2944 = vpop.permute.xlu0 %2943
    %s2946 = sor.u32 256, 8
    %2947 = vbcast.lane.b32.xlu0 %v2941, %s2946
    %v2948 = vpop.permute.xlu0 %2947
    %v2949 = vlaneseq
    %v2950 = vshrl.u32 %v2949, 7
    %v2951 = vsub.s32 1, %v2950
    %v2952 = vrot.slane %v2896, %v2951
    %2954 = vbcast.lane.b32.xlu0 %v2952, 256
    %v2955 = vpop.permute.xlu0 %2954
    %s2957 = sor.u32 256, 8
    %2958 = vbcast.lane.b32.xlu0 %v2952, %s2957
    %v2959 = vpop.permute.xlu0 %2958
    %v2960 = vadd.f32 %v2944, %v2308
    %v2961 = vadd.f32 %v2948, %v2309
    %v2962 = vadd.f32 %v2955, %v2308
    %v2963 = vadd.f32 %v2959, %v2309
    %v2964 = vsel %vm1233, %v2960, -inf
    %v2965 = vsel %vm1233, %v2961, -inf
    %v2966 = vmax.f32 %v2964, %v2965
    %v2967 = vrot.slane %v2966, 4
    %v2968 = vmax.f32 %v2966, %v2967
    %v2969 = vrot.slane %v2968, 2
    %v2970 = vmax.f32 %v2968, %v2969
    %v2971 = vrot.slane %v2970, 1
    %v2972 = vmax.f32 %v2970, %v2971
    %v2973 = vsel %vm1233, %v2962, -inf
    %v2974 = vsel %vm1233, %v2963, -inf
    %v2975 = vmax.f32 %v2973, %v2974
    %v2976 = vrot.slane %v2975, 4
    %v2977 = vmax.f32 %v2975, %v2976
    %v2978 = vrot.slane %v2977, 2
    %v2979 = vmax.f32 %v2977, %v2978
    %v2980 = vrot.slane %v2979, 1
    %v2981 = vmax.f32 %v2979, %v2980
    %v2982 = vsub.f32 %v2960, %v2972
    %v2983 = vsub.f32 %v2961, %v2972
    %v2984 = vsub.f32 %v2962, %v2981
    %v2985 = vsub.f32 %v2963, %v2981
    %v2986 = vmul.f32 %v2982, 1.442695
    %v2987 = vpow.pop %v2986
    %v2988 = vmul.f32 %v2983, 1.442695
    %v2989 = vpow.pop %v2988
    %v2990 = vmul.f32 %v2984, 1.442695
    %v2991 = vpow.pop %v2990
    %v2992 = vmul.f32 %v2985, 1.442695
    %v2993 = vpow.pop %v2992
    %v2994 = vsel %vm1233, %v2987, 0.0
    %v2995 = vsel %vm1233, %v2989, 0.0
    %v2996 = vadd.f32 %v2994, %v2995
    %v2997 = vrot.slane %v2996, 4
    %v2998 = vadd.f32 %v2996, %v2997
    %v2999 = vrot.slane %v2998, 2
    %v3000 = vadd.f32 %v2998, %v2999
    %v3001 = vrot.slane %v3000, 1
    %v3002 = vadd.f32 %v3000, %v3001
    %v3003 = vsel %vm1233, %v2991, 0.0
    %v3004 = vsel %vm1233, %v2993, 0.0
    %v3005 = vadd.f32 %v3003, %v3004
    %v3006 = vrot.slane %v3005, 4
    %v3007 = vadd.f32 %v3005, %v3006
    %v3008 = vrot.slane %v3007, 2
    %v3009 = vadd.f32 %v3007, %v3008
    %v3010 = vrot.slane %v3009, 1
    %v3011 = vadd.f32 %v3009, %v3010
    %v3012 = vlog2.pop %v3002
    %v3013 = vmul.f32 %v3012, 0.6931472
    %v3014 = vlog2.pop %v3011
    %v3015 = vmul.f32 %v3014, 0.6931472
    %v3016 = vadd.f32 %v2972, %v3013
    %v3017 = vadd.f32 %v2981, %v3015
    %v3020 = vsel %vm1550, %v3017, %v3016
    %v3022 = vadd.f32 %v1396, %v3020
    %v3024 = vrot.slane %v3022, 2
    %v3026 = vmul.f32 %v2934, %v3024
    %v3027 = vsub.f32 1.0, %v2934
    %v3028 = vmul.f32 %v3027, %v2896
    %v3029 = vadd.f32 %v3026, %v3028
    %vm3030 = vcmp.eq.s32.totalorder %v1401, %v2937
    %v3032 = vrot.slane %v1396, 2
    %v3034 = vsel %vm3030, %v3032, 0.0
    %v3035 = vsel %vm2364, %v3034, 0.0
    %3036 = vadd.xlane.f32.xlu0 %v3035
    %v3037 = vpop.xlane.xlu0 %3036
    %s3038 = sshra.s32 %s2800, 7
    %s3039 = sand.u32 %s2800, 127
    %s3040 = sadd.s32 %s3038, %s2930
    %s3041 = smul.u32 %s3040, 128
    %s3042 = sshra.s32 %s2800, 7
    %s3043 = sand.u32 %s2800, 127
    %s3044 = sadd.s32 %s3041, %s3043
    %s3045 = sld [smem:[#allocation6 + %s3044]]
    %s3046 = sshra.s32 %s2801, 7
    %s3047 = sand.u32 %s2801, 127
    %s3048 = sadd.s32 %s3046, %s2931
    %s3049 = smul.u32 %s3048, 128
    %s3050 = sshra.s32 %s2801, 7
    %s3051 = sand.u32 %s2801, 127
    %s3052 = sadd.s32 %s3049, %s3051
    %s3053 = sld [smem:[#allocation6 + %s3052]]
    %v3054 = vstv %s3045
    %v3055 = vstv %s3053
    %v3056 = vsel %vm1413, %v3055, %v3054
    %v3057 = vadd.f32 %v3037, %v3056
    %v3058 = vmul.f32 %v3057, %v2934
    %v3059 = vadd.f32 %v2923, %v3058
    %s3060 = scvt.f32.s32.to.zero.pseudo %s2928
    %s3061 = sadd.s32 %s2925, %s3060
    %s3062 = scvt.f32.s32.to.zero.pseudo %s2929
    %s3063 = sadd.s32 %s2927, %s3062
    %s3064 = sld [smem:[#allocation12 + $0x6]]
    %s3065 = sld [smem:[#allocation12 + $0x86]]
    %s3066 = sld [smem:[#allocation9 + $0x7]]
    %s3067 = sld [smem:[#allocation9 + $0x87]]
    %v3068 = vstv %s3064
    %v3069 = vstv %s3065
    %v3070 = vsel %vm1413, %v3069, %v3068
    %v3071 = vstv %s3066
    %v3072 = vstv %s3067
    %v3073 = vsel %vm1413, %v3072, %v3071
    %v3074 = vlaneseq
    %v3075 = vshrl.u32 %v3074, 7
    %v3076 = vsub.s32 0, %v3075
    %v3077 = vrot.slane %v3029, %v3076
    %3079 = vbcast.lane.b32.xlu0 %v3077, 256
    %v3080 = vpop.permute.xlu0 %3079
    %s3082 = sor.u32 256, 8
    %3083 = vbcast.lane.b32.xlu0 %v3077, %s3082
    %v3084 = vpop.permute.xlu0 %3083
    %v3085 = vlaneseq
    %v3086 = vshrl.u32 %v3085, 7
    %v3087 = vsub.s32 1, %v3086
    %v3088 = vrot.slane %v3029, %v3087
    %3090 = vbcast.lane.b32.xlu0 %v3088, 256
    %v3091 = vpop.permute.xlu0 %3090
    %s3093 = sor.u32 256, 8
    %3094 = vbcast.lane.b32.xlu0 %v3088, %s3093
    %v3095 = vpop.permute.xlu0 %3094
    %v3096 = vadd.f32 %v3080, %v2308
    %v3097 = vadd.f32 %v3084, %v2309
    %v3098 = vadd.f32 %v3091, %v2308
    %v3099 = vadd.f32 %v3095, %v2309
    %v3100 = vsel %vm1233, %v3096, -inf
    %v3101 = vsel %vm1233, %v3097, -inf
    %v3102 = vmax.f32 %v3100, %v3101
    %v3103 = vrot.slane %v3102, 4
    %v3104 = vmax.f32 %v3102, %v3103
    %v3105 = vrot.slane %v3104, 2
    %v3106 = vmax.f32 %v3104, %v3105
    %v3107 = vrot.slane %v3106, 1
    %v3108 = vmax.f32 %v3106, %v3107
    %v3109 = vsel %vm1233, %v3098, -inf
    %v3110 = vsel %vm1233, %v3099, -inf
    %v3111 = vmax.f32 %v3109, %v3110
    %v3112 = vrot.slane %v3111, 4
    %v3113 = vmax.f32 %v3111, %v3112
    %v3114 = vrot.slane %v3113, 2
    %v3115 = vmax.f32 %v3113, %v3114
    %v3116 = vrot.slane %v3115, 1
    %v3117 = vmax.f32 %v3115, %v3116
    %v3118 = vsub.f32 %v3096, %v3108
    %v3119 = vsub.f32 %v3097, %v3108
    %v3120 = vsub.f32 %v3098, %v3117
    %v3121 = vsub.f32 %v3099, %v3117
    %v3122 = vmul.f32 %v3118, 1.442695
    %v3123 = vpow.pop %v3122
    %v3124 = vmul.f32 %v3119, 1.442695
    %v3125 = vpow.pop %v3124
    %v3126 = vmul.f32 %v3120, 1.442695
    %v3127 = vpow.pop %v3126
    %v3128 = vmul.f32 %v3121, 1.442695
    %v3129 = vpow.pop %v3128
    %v3130 = vsel %vm1233, %v3123, 0.0
    %v3131 = vsel %vm1233, %v3125, 0.0
    %v3132 = vadd.f32 %v3130, %v3131
    %v3133 = vrot.slane %v3132, 4
    %v3134 = vadd.f32 %v3132, %v3133
    %v3135 = vrot.slane %v3134, 2
    %v3136 = vadd.f32 %v3134, %v3135
    %v3137 = vrot.slane %v3136, 1
    %v3138 = vadd.f32 %v3136, %v3137
    %v3139 = vsel %vm1233, %v3127, 0.0
    %v3140 = vsel %vm1233, %v3129, 0.0
    %v3141 = vadd.f32 %v3139, %v3140
    %v3142 = vrot.slane %v3141, 4
    %v3143 = vadd.f32 %v3141, %v3142
    %v3144 = vrot.slane %v3143, 2
    %v3145 = vadd.f32 %v3143, %v3144
    %v3146 = vrot.slane %v3145, 1
    %v3147 = vadd.f32 %v3145, %v3146
    %v3148 = vlog2.pop %v3138
    %v3149 = vmul.f32 %v3148, 0.6931472
    %v3150 = vlog2.pop %v3147
    %v3151 = vmul.f32 %v3150, 0.6931472
    %v3152 = vadd.f32 %v3108, %v3149
    %v3153 = vadd.f32 %v3117, %v3151
    %v3156 = vsel %vm1663, %v3153, %v3152
    %v3158 = vadd.f32 %v1396, %v3156
    %v3160 = vrot.slane %v3158, 4
    %v3162 = vmul.f32 %v3070, %v3160
    %v3163 = vsub.f32 1.0, %v3070
    %v3164 = vmul.f32 %v3163, %v3029
    %v3165 = vadd.f32 %v3162, %v3164
    %vm3166 = vcmp.eq.s32.totalorder %v1401, %v3073
    %v3167 = vrot.slane %v1396, 4
    %v3169 = vsel %vm3166, %v3167, 0.0
    %v3170 = vsel %vm2364, %v3169, 0.0
    %3171 = vadd.xlane.f32.xlu0 %v3170
    %v3172 = vpop.xlane.xlu0 %3171
    %s3173 = sshra.s32 %s2930, 7
    %s3174 = sand.u32 %s2930, 127
    %s3175 = sadd.s32 %s3173, %s3066
    %s3176 = smul.u32 %s3175, 128
    %s3177 = sshra.s32 %s2930, 7
    %s3178 = sand.u32 %s2930, 127
    %s3179 = sadd.s32 %s3176, %s3178
    %s3180 = sld [smem:[#allocation6 + %s3179]]
    %s3181 = sshra.s32 %s2931, 7
    %s3182 = sand.u32 %s2931, 127
    %s3183 = sadd.s32 %s3181, %s3067
    %s3184 = smul.u32 %s3183, 128
    %s3185 = sshra.s32 %s2931, 7
    %s3186 = sand.u32 %s2931, 127
    %s3187 = sadd.s32 %s3184, %s3186
    %s3188 = sld [smem:[#allocation6 + %s3187]]
    %v3189 = vstv %s3180
    %v3190 = vstv %s3188
    %v3191 = vsel %vm1413, %v3190, %v3189
    %v3192 = vadd.f32 %v3172, %v3191
    %v3193 = vmul.f32 %v3192, %v3070
    %v3194 = vadd.f32 %v3059, %v3193
    %s3195 = scvt.f32.s32.to.zero.pseudo %s3064
    %s3196 = sadd.s32 %s3061, %s3195
    %s3197 = scvt.f32.s32.to.zero.pseudo %s3065
    %s3198 = sadd.s32 %s3063, %s3197
    %s3199 = sld [smem:[#allocation12 + $0x7]]
    %s3200 = sld [smem:[#allocation12 + $0x87]]
    %s3201 = sld [smem:[#allocation9 + $0x8]]
    %s3202 = sld [smem:[#allocation9 + $0x88]]
    %v3203 = vstv %s3199
    %v3204 = vstv %s3200
    %v3205 = vsel %vm1413, %v3204, %v3203
    %v3206 = vstv %s3201
    %v3207 = vstv %s3202
    %v3208 = vsel %vm1413, %v3207, %v3206
    %v3209 = vlaneseq
    %v3210 = vshrl.u32 %v3209, 7
    %v3211 = vsub.s32 0, %v3210
    %v3212 = vrot.slane %v3165, %v3211
    %3214 = vbcast.lane.b32.xlu0 %v3212, 256
    %v3215 = vpop.permute.xlu0 %3214
    %s3217 = sor.u32 256, 8
    %3218 = vbcast.lane.b32.xlu0 %v3212, %s3217
    %v3219 = vpop.permute.xlu0 %3218
    %v3220 = vlaneseq
    %v3221 = vshrl.u32 %v3220, 7
    %v3222 = vsub.s32 1, %v3221
    %v3223 = vrot.slane %v3165, %v3222
    %3225 = vbcast.lane.b32.xlu0 %v3223, 256
    %v3226 = vpop.permute.xlu0 %3225
    %s3228 = sor.u32 256, 8
    %3229 = vbcast.lane.b32.xlu0 %v3223, %s3228
    %v3230 = vpop.permute.xlu0 %3229
    %v3231 = vadd.f32 %v3215, %v2308
    %v3232 = vadd.f32 %v3219, %v2309
    %v3233 = vadd.f32 %v3226, %v2308
    %v3234 = vadd.f32 %v3230, %v2309
    %v3235 = vsel %vm1233, %v3231, -inf
    %v3236 = vsel %vm1233, %v3232, -inf
    %v3237 = vmax.f32 %v3235, %v3236
    %v3238 = vrot.slane %v3237, 4
    %v3239 = vmax.f32 %v3237, %v3238
    %v3240 = vrot.slane %v3239, 2
    %v3241 = vmax.f32 %v3239, %v3240
    %v3242 = vrot.slane %v3241, 1
    %v3243 = vmax.f32 %v3241, %v3242
    %v3244 = vsel %vm1233, %v3233, -inf
    %v3245 = vsel %vm1233, %v3234, -inf
    %v3246 = vmax.f32 %v3244, %v3245
    %v3247 = vrot.slane %v3246, 4
    %v3248 = vmax.f32 %v3246, %v3247
    %v3249 = vrot.slane %v3248, 2
    %v3250 = vmax.f32 %v3248, %v3249
    %v3251 = vrot.slane %v3250, 1
    %v3252 = vmax.f32 %v3250, %v3251
    %v3253 = vsub.f32 %v3231, %v3243
    %v3254 = vsub.f32 %v3232, %v3243
    %v3255 = vsub.f32 %v3233, %v3252
    %v3256 = vsub.f32 %v3234, %v3252
    %v3257 = vmul.f32 %v3253, 1.442695
    %v3258 = vpow.pop %v3257
    %v3259 = vmul.f32 %v3254, 1.442695
    %v3260 = vpow.pop %v3259
    %v3261 = vmul.f32 %v3255, 1.442695
    %v3262 = vpow.pop %v3261
    %v3263 = vmul.f32 %v3256, 1.442695
    %v3264 = vpow.pop %v3263
    %v3265 = vsel %vm1233, %v3258, 0.0
    %v3266 = vsel %vm1233, %v3260, 0.0
    %v3267 = vadd.f32 %v3265, %v3266
    %v3268 = vrot.slane %v3267, 4
    %v3269 = vadd.f32 %v3267, %v3268
    %v3270 = vrot.slane %v3269, 2
    %v3271 = vadd.f32 %v3269, %v3270
    %v3272 = vrot.slane %v3271, 1
    %v3273 = vadd.f32 %v3271, %v3272
    %v3274 = vsel %vm1233, %v3262, 0.0
    %v3275 = vsel %vm1233, %v3264, 0.0
    %v3276 = vadd.f32 %v3274, %v3275
    %v3277 = vrot.slane %v3276, 4
    %v3278 = vadd.f32 %v3276, %v3277
    %v3279 = vrot.slane %v3278, 2
    %v3280 = vadd.f32 %v3278, %v3279
    %v3281 = vrot.slane %v3280, 1
    %v3282 = vadd.f32 %v3280, %v3281
    %v3283 = vlog2.pop %v3273
    %v3284 = vmul.f32 %v3283, 0.6931472
    %v3285 = vlog2.pop %v3282
    %v3286 = vmul.f32 %v3285, 0.6931472
    %v3287 = vadd.f32 %v3243, %v3284
    %v3288 = vadd.f32 %v3252, %v3286
    %v3291 = vsel %vm1775, %v3288, %v3287
    %v3293 = vadd.f32 %v1396, %v3291
    %v3295 = vrot.slane %v3293, 6
    %v3297 = vmul.f32 %v3205, %v3295
    %v3298 = vsub.f32 1.0, %v3205
    %v3299 = vmul.f32 %v3298, %v3165
    %v3300 = vadd.f32 %v3297, %v3299
    %vm3301 = vcmp.eq.s32.totalorder %v1401, %v3208
    %v3302 = vrot.slane %v1396, 6
    %v3304 = vsel %vm3301, %v3302, 0.0
    %v3305 = vsel %vm2364, %v3304, 0.0
    %3306 = vadd.xlane.f32.xlu0 %v3305
    %v3307 = vpop.xlane.xlu0 %3306
    %s3308 = sshra.s32 %s3066, 7
    %s3309 = sand.u32 %s3066, 127
    %s3310 = sadd.s32 %s3308, %s3201
    %s3311 = smul.u32 %s3310, 128
    %s3312 = sshra.s32 %s3066, 7
    %s3313 = sand.u32 %s3066, 127
    %s3314 = sadd.s32 %s3311, %s3313
    %s3315 = sld [smem:[#allocation6 + %s3314]]
    %s3316 = sshra.s32 %s3067, 7
    %s3317 = sand.u32 %s3067, 127
    %s3318 = sadd.s32 %s3316, %s3202
    %s3319 = smul.u32 %s3318, 128
    %s3320 = sshra.s32 %s3067, 7
    %s3321 = sand.u32 %s3067, 127
    %s3322 = sadd.s32 %s3319, %s3321
    %s3323 = sld [smem:[#allocation6 + %s3322]]
    %v3324 = vstv %s3315
    %v3325 = vstv %s3323
    %v3326 = vsel %vm1413, %v3325, %v3324
    %v3327 = vadd.f32 %v3307, %v3326
    %v3328 = vmul.f32 %v3327, %v3205
    %v3329 = vadd.f32 %v3194, %v3328
    %s3330 = scvt.f32.s32.to.zero.pseudo %s3199
    %s3331 = sadd.s32 %s3196, %s3330
    %s3332 = scvt.f32.s32.to.zero.pseudo %s3200
    %s3333 = sadd.s32 %s3198, %s3332
    %v3334 = vld [vmem:[%s14] sm:$0x1]
    %v3336 = vlaneseq
    %v3337 = vshrl.u32 %v3336, 7
    %v3338 = vsub.s32 0, %v3337
    %v3339 = vrot.slane %v3334, %v3338
    %v3341 = vadd.f32 %v3300, %v3339
    %v3342 = vsel %vm2364, %v3341, -inf
    %3343 = vmax.xlane.f32.xlu0 %v3342
    %v3344 = vpop.xlane.xlu0 %3343
    %v3345 = vsub.f32 %v3341, %v3344
    %v3346 = vmul.f32 %v3345, 1.442695
    %v3347 = vpow.pop %v3346
    %v3348 = vsel %vm2364, %v3347, 0.0
    %3349 = vadd.xlane.f32.xlu0 %v3348
    %v3350 = vpop.xlane.xlu0 %3349
    %v3351 = vlog2.pop %v3350
    %v3352 = vmul.f32 %v3351, 0.6931472
    %v3353 = vadd.f32 %v3344, %v3352
    %s3354 = sld [smem:[#allocation9 + %s3331]]
    %s3355 = sshra.s32 %s3354, 7
    %s3356 = sand.u32 %s3354, 127
    %s3357 = sadd.s32 %s3355, 2
    %s3358 = smul.u32 %s3357, 128
    %s3359 = sshra.s32 %s3354, 7
    %s3360 = sand.u32 %s3354, 127
    %s3361 = sadd.s32 %s3358, %s3360
    %s3362 = sld [smem:[#allocation6 + %s3361]]
    %s3363 = sshra.s32 %s3333, 7
    %s3364 = sand.u32 %s3333, 127
    %s3365 = sadd.s32 %s3363, 1
    %s3366 = smul.u32 %s3365, 128
    %s3367 = sshra.s32 %s3333, 7
    %s3368 = sand.u32 %s3333, 127
    %s3369 = sadd.s32 %s3366, %s3368
    %s3370 = sld [smem:[#allocation9 + %s3369]]
    %s3371 = sshra.s32 %s3370, 7
    %s3372 = sand.u32 %s3370, 127
    %s3373 = sadd.s32 %s3371, 2
    %s3374 = smul.u32 %s3373, 128
    %s3375 = sshra.s32 %s3370, 7
    %s3376 = sand.u32 %s3370, 127
    %s3377 = sadd.s32 %s3374, %s3376
    %s3378 = sld [smem:[#allocation6 + %s3377]]
    %v3379 = vstv %s3362
    %v3380 = vstv %s3378
    %v3381 = vsel %vm1413, %v3380, %v3379
    %v3382 = vadd.f32 %v3329, %v3381
    %v3383 = vadd.f32 %v2278, %v3353
    %v3384 = vadd.f32 %v2307, %v3382
    %v3385 = vsub.f32 %v3383, %v3384
    %v3386 = vmul.f32 %v3385, %v3385
    %vm3387 = vcmask 1041408
    %v3388 = vsel %vm3387, %v3386, 0.0
    %v3389 = vrot.slane %v3388, 4
    %v3390 = vadd.f32 %v3388, %v3389
    %v3391 = vrot.slane %v3390, 2
    %v3392 = vadd.f32 %v3390, %v3391
    %v3393 = vrot.slane %v3392, 1
    %v3394 = vadd.f32 %v3392, %v3393
    %v3395 = vmul.f32 %v3394, 0.5
    %vm3396 = vcmask 0
    %3397 = vst.msk [vmem:[#allocation14] sm:$0x1] %vm3396, %v3395
    // Predicated region
    $region110: #{rnn_two_crf_forward.1} parent=1 // pred_check
      _
    $region111: #{rnn_two_crf_forward.1} parent=1 // pred_check_branch
      %3399 = sbr.rel (0) target = $region113
    $region112: #{rnn_two_crf_forward.1} parent=1 // pred_region
      %s3401 = ssub.s32 16, 16
      %3402 = vsyncadd [#allocation4], %s3401
      %s3404 = sshll.u32 [#allocation14], 4
      %s3405 = int_to_ptr.vmem [resolvable:$true] %s3404
      %3407 = dma.vmem_to_hbm [thread:$0]  %s3405, 16, %s21, [#allocation4]
    $region113: #{rnn_two_crf_forward.1} parent=1 // pred_fallthru
      _
    // Predicated region
    $region114: #{rnn_two_crf_forward.1} parent=1 // pred_check
      _
    $region115: #{rnn_two_crf_forward.1} parent=1 // pred_check_branch
      %3409 = sbr.rel (0) target = $region117
    $region116: #{rnn_two_crf_forward.1} parent=1 // pred_region
      %3410 = dma.done [#allocation4], 16
    $region117: #{rnn_two_crf_forward.1} parent=1 // pred_fallthru
      _
    %3411 = vsyncpa [#allocation4], 1
    %3412 = vsyncpa [#allocation5], 1
    %3413 = vsyncpa [#allocation7], 1
    %3414 = vsyncpa [#allocation10], 1
    %3415 = vsyncpa [#allocation13], 1

</llo_original>
